<compile_context>
chip_gen: v6e
topology: v6e:2x2x1
jax: 0.10.0
libtpu: 0.0.40
codegen_flags: <defaults>
</compile_context>

<pallas_src>
import functools
import math

import jax
import jax.numpy as jnp
from jax.experimental import pallas as pl
from jax.experimental.pallas import tpu as pltpu

PI = 3.141592          # same constant as the PyTorch reference
EPS = 1e-06


# ----------------------------- Pallas kernels -----------------------------

def conv_pool_kernel(p_ref, w_ref, b_ref, o_ref):
    # p_ref: [4, tm, K]  (4 = the 2x2 pool corners)
    # w_ref: [K, Cout]   b_ref: [1, Cout]   o_ref: [tm, Cout]
    w = w_ref[...]
    d0 = jnp.dot(p_ref[0], w, preferred_element_type=jnp.float32)
    d1 = jnp.dot(p_ref[1], w, preferred_element_type=jnp.float32)
    d2 = jnp.dot(p_ref[2], w, preferred_element_type=jnp.float32)
    d3 = jnp.dot(p_ref[3], w, preferred_element_type=jnp.float32)
    m = jnp.maximum(jnp.maximum(d0, d1), jnp.maximum(d2, d3))
    # max-pool / ReLU commute with the shared bias: relu(max_i(conv_i) + b)
    o_ref[...] = jnp.maximum(m + b_ref[...], 0.0)


def head_kernel(x_ref, w3_ref, b3_ref, w4_ref, b4_ref,
                wth_ref, bphi_ref, wphi_ref, w5_ref, o_ref,
                *, scaling, radius, phi_L):
    # Fused: fc3 + ReLU + fc4 + Spherization.spherize + fc5 (bias-free).
    h = jnp.dot(x_ref[...], w3_ref[...],
                preferred_element_type=jnp.float32) + b3_ref[...]   # [tm, 120]
    h = jnp.maximum(h, 0.0)
    h = jnp.dot(h, w4_ref[...],
                preferred_element_type=jnp.float32) + b4_ref[...]   # [tm, 84]
    # --- spherize (2-D branch), all f32 elementwise ---
    xs = scaling * h
    sig = pl.reciprocal(1.0 + jnp.exp(-xs), approx=True)            # sigmoid (EUP)
    ang = (PI / 2.0 - phi_L) * sig + phi_L                          # angularize
    theta = jnp.dot(ang, wth_ref[...],
                    preferred_element_type=jnp.float32)             # [tm, 85]
    v_sin = jnp.sin(theta)
    v_cos = jnp.cos(theta + bphi_ref[...])
    z = jnp.dot(jnp.log(jnp.abs(v_sin) + EPS), wphi_ref[...],
                preferred_element_type=jnp.float32) + jnp.log(jnp.abs(v_cos) + EPS)
    sph = radius * jnp.exp(z)                                       # [tm, 85]
    o_ref[...] = jnp.dot(sph, w5_ref[...],
                         preferred_element_type=jnp.float32)        # [tm, 10]


# ----------------------------- wrappers ------------------------------------

def _pick_tm(m, bytes_per_row):
    # Largest multiple-of-8 divisor of m, capped so one input block stays
    # <= 4 MiB (double-buffered ~8 MiB: safe on v5e/v6e/v7x scoped VMEM).
    cap = min(1024, max(8, (4 << 20) // max(int(bytes_per_row), 1)))
    best, t = 0, 8
    while t <= min(m, cap):
        if m % t == 0:
            best = t
        t += 8
    return best if best else m      # full extent is always a legal block


def conv_relu_pool(patches4, w_t, b2):
    # patches4: [4, M, K] f32, w_t: [K, Cout] f32, b2: [1, Cout] f32
    _, m, k = patches4.shape
    cout = w_t.shape[1]
    tm = _pick_tm(m, 4 * k * 4)
    return pl.pallas_call(
        conv_pool_kernel,
        out_shape=jax.ShapeDtypeStruct((m, cout), jnp.float32),
        grid=(m // tm,),
        in_specs=[pl.BlockSpec((4, tm, k), lambda i: (0, i, 0)),
                  pl.BlockSpec((k, cout), lambda i: (0, 0)),
                  pl.BlockSpec((1, cout), lambda i: (0, 0))],
        out_specs=pl.BlockSpec((tm, cout), lambda i: (i, 0)),
        compiler_params=pltpu.CompilerParams(
            dimension_semantics=("parallel",)),
    )(patches4, w_t, b2)


def spheric_head(x, p, *, phi_L, scaling=1.0, radius=1.0):
    # x: [N, 400]; all weights resident in VMEM for every grid step.
    n, k = x.shape
    nout = p["fc5_wt"].shape[1]
    tm = _pick_tm(n, k * 4)
    kernel = functools.partial(head_kernel, scaling=scaling,
                               radius=radius, phi_L=phi_L)

    def full(a):
        return pl.BlockSpec(a.shape, lambda i: (0, 0))

    return pl.pallas_call(
        kernel,
        out_shape=jax.ShapeDtypeStruct((n, nout), jnp.float32),
        grid=(n // tm,),
        in_specs=[pl.BlockSpec((tm, k), lambda i: (i, 0)),
                  full(p["fc3_wt"]), full(p["fc3_b"]),
                  full(p["fc4_wt"]), full(p["fc4_b"]),
                  full(p["w_theta_t"]), full(p["b_phi"]),
                  full(p["w_phi"]), full(p["fc5_wt"])],
        out_specs=pl.BlockSpec((tm, nout), lambda i: (i, 0)),
        compiler_params=pltpu.CompilerParams(
            dimension_semantics=("parallel",)),
    )(x, p["fc3_wt"], p["fc3_b"], p["fc4_wt"], p["fc4_b"],
      p["w_theta_t"], p["b_phi"], p["w_phi"], p["fc5_wt"])


def _pooled_conv_patches(x_nhwc, kh, kw, pad):
    # Stride-2 im2col per 2x2-pool corner (channels-last, no transposes).
    # Returns patches [4, N*Hp*Wp, kh*kw*C] with feature order (i, j, c).
    n, h, w, c = x_nhwc.shape
    if pad:
        x_nhwc = jnp.pad(x_nhwc, ((0, 0), (pad, pad), (pad, pad), (0, 0)))
    ho = h + 2 * pad - kh + 1
    wo = w + 2 * pad - kw + 1
    hp, wp = ho // 2, wo // 2
    corners = []
    for di in range(2):
        for dj in range(2):
            cols = []
            for i in range(kh):
                for j in range(kw):
                    r0, c0 = di + i, dj + j
                    cols.append(x_nhwc[:, r0:r0 + 2 * (hp - 1) + 1:2,
                                          c0:c0 + 2 * (wp - 1) + 1:2, :])
            pm = jnp.concatenate(cols, axis=-1)            # [N,Hp,Wp,kh*kw*C]
            corners.append(pm.reshape(n * hp * wp, kh * kw * c))
    return jnp.stack(corners, axis=0), hp, wp


# ----------------------------- model setup ---------------------------------

def make_spherization_buffers(n_dims=84, delta=1e-06):
    L = 0.01
    upper = PI / 2.0 * (1.0 - L)
    phi_L = math.asin(delta ** (1.0 / n_dims))
    phi_L = phi_L if phi_L < upper else upper
    eye = jnp.eye(n_dims, dtype=jnp.float32)
    w_theta = jnp.concatenate([eye, eye[-1:]], axis=0)                  # [n+1, n]
    w_phi = jnp.triu(jnp.ones((n_dims + 1, n_dims + 1), jnp.float32), k=1)
    w_phi = w_phi.at[-2, -1].set(0.0)
    b_phi = jnp.zeros((n_dims + 1,), jnp.float32).at[-1].set(-PI / 2.0)
    return float(phi_L), w_theta, w_phi, b_phi


def init_params(key):
    ks = jax.random.split(key, 9)
    rnd = lambda k, shp, s: s * jax.random.normal(k, shp, dtype=jnp.float32)
    return {
        "conv1_w": rnd(ks[0], (6, 1, 5, 5), 0.20),
        "conv1_b": rnd(ks[1], (6,), 0.10),
        "conv2_w": rnd(ks[2], (16, 6, 5, 5), 0.08),
        "conv2_b": rnd(ks[3], (16,), 0.10),
        "fc3_w":   rnd(ks[4], (120, 400), 0.05),
        "fc3_b":   rnd(ks[5], (120,), 0.10),
        "fc4_w":   rnd(ks[6], (84, 120), 0.09),
        "fc4_b":   rnd(ks[7], (84,), 0.10),
        "fc5_w":   rnd(ks[8], (10, 85), 0.10),   # Linear((84+1)*1, 10, bias=False)
    }


def prepare_params(params, buffers):
    # One-time prep into kernel-ready layouts (no per-forward transposes).
    phi_L, w_theta, w_phi, b_phi = buffers

    def conv_wt(w):  # [Cout, Cin, KH, KW] -> [(i, j, cin), Cout]
        cout, cin, kh, kw = w.shape
        return jnp.transpose(w, (2, 3, 1, 0)).reshape(kh * kw * cin, cout)

    # fc3 columns are (c,h,w)-ordered in the PyTorch reference; the conv path
    # here produces (h,w,c)-ordered features, so permute fc3's columns once.
    fc3_hwc = jnp.transpose(params["fc3_w"].reshape(120, 16, 5, 5),
                            (0, 2, 3, 1)).reshape(120, 400)

    prep = {
        "conv1_wt": conv_wt(params["conv1_w"]),
        "conv1_b":  params["conv1_b"].reshape(1, -1),
        "conv2_wt": conv_wt(params["conv2_w"]),
        "conv2_b":  params["conv2_b"].reshape(1, -1),
        "fc3_wt":   fc3_hwc.T,
        "fc3_b":    params["fc3_b"].reshape(1, -1),
        "fc4_wt":   params["fc4_w"].T,
        "fc4_b":    params["fc4_b"].reshape(1, -1),
        "fc5_wt":   params["fc5_w"].T,
        "w_theta_t": w_theta.T,
        "w_phi":     w_phi,
        "b_phi":     b_phi.reshape(1, -1),
    }
    return prep, float(phi_L)


def spheric_cnn_forward(prep, x, *, phi_L, scaling=1.0, radius=1.0):
    # x: [N, 1, 28, 28] NCHW (as in the PyTorch reference).
    # TODO(synk): for large batches, cast conv/fc inputs+weights to bf16 with
    # f32 accumulation (v6e/v7x MXU); left in f32 here (latency-bound, v5e-safe).
    n = x.shape[0]
    x = jnp.transpose(x, (0, 2, 3, 1))                           # NHWC
    p1, hp1, wp1 = _pooled_conv_patches(x, 5, 5, pad=2)          # [4, N*196, 25]
    y1 = conv_relu_pool(p1, prep["conv1_wt"], prep["conv1_b"])   # [N*196, 6]
    y1 = y1.reshape(n, hp1, wp1, 6)
    p2, hp2, wp2 = _pooled_conv_patches(y1, 5, 5, pad=0)         # [4, N*25, 150]
    y2 = conv_relu_pool(p2, prep["conv2_wt"], prep["conv2_b"])   # [N*25, 16]
    feat = y2.reshape(n, hp2 * wp2 * 16)                         # [N, 400] (h,w,c)
    return spheric_head(feat, prep, phi_L=phi_L,
                        scaling=scaling, radius=radius)          # [N, 10]


if __name__ == "__main__":
    key = jax.random.PRNGKey(0)
    pkey, xkey = jax.random.split(key)
    params = init_params(pkey)
    buffers = make_spherization_buffers(n_dims=84, delta=1e-06)
    prep, phi_L = prepare_params(params, buffers)
    x = jax.random.normal(xkey, (2, 1, 28, 28), dtype=jnp.float32)

    fwd = jax.jit(functools.partial(spheric_cnn_forward, phi_L=phi_L))
    out = jax.block_until_ready(fwd(prep, x))

    assert out.shape == (2, 10), out.shape
    assert bool(jnp.all(jnp.isfinite(out)))
    print("KERNEL_OK")
</pallas_src>

<mosaic_0001>
module attributes {stable_mosaic.version = 11 : i64} {
  func.func @conv_pool_kernel(%arg0: i32, %arg1: memref<4x392x25xf32, #tpu.memory_space<vmem>>, %arg2: memref<25x6xf32, #tpu.memory_space<vmem>>, %arg3: memref<1x6xf32, #tpu.memory_space<vmem>>, %arg4: memref<392x6xf32, #tpu.memory_space<vmem>>) attributes {dimension_semantics = [#tpu.dimension_semantics<parallel>], iteration_bounds = array<i64: 1>, scalar_prefetch = 0 : i64, scratch_operands = 0 : i64, tpu.core_type = #tpu.core_type<tc>, window_params = [{transform_indices = @transform_0, window_bounds = array<i64: 4, 392, 25>}, {pipeline_mode = #tpu.pipeline_mode<synchronous>, transform_indices = @transform_1, window_bounds = array<i64: 25, 6>}, {pipeline_mode = #tpu.pipeline_mode<synchronous>, transform_indices = @transform_2, window_bounds = array<i64: 1, 6>}, {transform_indices = @transform_3, window_bounds = array<i64: 392, 6>}]} {
    %c0 = arith.constant 0 : index
    %c0_0 = arith.constant 0 : index
    %0 = vector.load %arg2[%c0, %c0_0] : memref<25x6xf32, #tpu.memory_space<vmem>>, vector<25x6xf32>
    %c0_1 = arith.constant 0 : index
    %c0_2 = arith.constant 0 : index
    %c0_3 = arith.constant 0 : index
    %1 = vector.load %arg1[%c0_1, %c0_2, %c0_3] : memref<4x392x25xf32, #tpu.memory_space<vmem>>, vector<1x392x25xf32>
    %2 = vector.shape_cast %1 : vector<1x392x25xf32> to vector<392x25xf32>
    %cst = arith.constant dense<0.000000e+00> : vector<392x6xf32>
    %3 = tpu.matmul %2, %0, %cst {dimension_numbers = #tpu.dot_dimension_numbers<[1], [0], [0], [1], [0, 0, 1, 1], [], []>} : vector<392x25xf32>, vector<25x6xf32>, vector<392x6xf32> -> vector<392x6xf32>
    %c1 = arith.constant 1 : index
    %c0_4 = arith.constant 0 : index
    %c0_5 = arith.constant 0 : index
    %4 = vector.load %arg1[%c1, %c0_4, %c0_5] : memref<4x392x25xf32, #tpu.memory_space<vmem>>, vector<1x392x25xf32>
    %5 = vector.shape_cast %4 : vector<1x392x25xf32> to vector<392x25xf32>
    %cst_6 = arith.constant dense<0.000000e+00> : vector<392x6xf32>
    %6 = tpu.matmul %5, %0, %cst_6 {dimension_numbers = #tpu.dot_dimension_numbers<[1], [0], [0], [1], [0, 0, 1, 1], [], []>} : vector<392x25xf32>, vector<25x6xf32>, vector<392x6xf32> -> vector<392x6xf32>
    %c2 = arith.constant 2 : index
    %c0_7 = arith.constant 0 : index
    %c0_8 = arith.constant 0 : index
    %7 = vector.load %arg1[%c2, %c0_7, %c0_8] : memref<4x392x25xf32, #tpu.memory_space<vmem>>, vector<1x392x25xf32>
    %8 = vector.shape_cast %7 : vector<1x392x25xf32> to vector<392x25xf32>
    %cst_9 = arith.constant dense<0.000000e+00> : vector<392x6xf32>
    %9 = tpu.matmul %8, %0, %cst_9 {dimension_numbers = #tpu.dot_dimension_numbers<[1], [0], [0], [1], [0, 0, 1, 1], [], []>} : vector<392x25xf32>, vector<25x6xf32>, vector<392x6xf32> -> vector<392x6xf32>
    %c3 = arith.constant 3 : index
    %c0_10 = arith.constant 0 : index
    %c0_11 = arith.constant 0 : index
    %10 = vector.load %arg1[%c3, %c0_10, %c0_11] : memref<4x392x25xf32, #tpu.memory_space<vmem>>, vector<1x392x25xf32>
    %11 = vector.shape_cast %10 : vector<1x392x25xf32> to vector<392x25xf32>
    %cst_12 = arith.constant dense<0.000000e+00> : vector<392x6xf32>
    %12 = tpu.matmul %11, %0, %cst_12 {dimension_numbers = #tpu.dot_dimension_numbers<[1], [0], [0], [1], [0, 0, 1, 1], [], []>} : vector<392x25xf32>, vector<25x6xf32>, vector<392x6xf32> -> vector<392x6xf32>
    %13 = arith.maximumf %3, %6 : vector<392x6xf32>
    %14 = arith.maximumf %9, %12 : vector<392x6xf32>
    %15 = arith.maximumf %13, %14 : vector<392x6xf32>
    %c0_13 = arith.constant 0 : index
    %c0_14 = arith.constant 0 : index
    %16 = vector.load %arg3[%c0_13, %c0_14] : memref<1x6xf32, #tpu.memory_space<vmem>>, vector<1x6xf32>
    %17 = vector.broadcast %16 : vector<1x6xf32> to vector<392x6xf32>
    %18 = arith.addf %15, %17 : vector<392x6xf32>
    %cst_15 = arith.constant 0.000000e+00 : f32
    %19 = vector.broadcast %cst_15 : f32 to vector<392x6xf32>
    %20 = arith.maximumf %18, %19 : vector<392x6xf32>
    %c0_16 = arith.constant 0 : index
    %c0_17 = arith.constant 0 : index
    %21 = vector.load %arg4[%c0_16, %c0_17] : memref<392x6xf32, #tpu.memory_space<vmem>>, vector<392x6xf32>
    tpu.vector_store %arg4[%c0_16, %c0_17], %20 {strides = array<i32>} : memref<392x6xf32, #tpu.memory_space<vmem>>, vector<392x6xf32>,
    return
  }
  func.func @transform_0(%arg0: i32) -> (i32, i32, i32) {
    %c0_i32 = arith.constant 0 : i32
    %c0_i32_0 = arith.constant 0 : i32
    %c0_i32_1 = arith.constant 0 : i32
    return %c0_i32, %arg0, %c0_i32_0 : i32, i32, i32
  }
  func.func @transform_1(%arg0: i32) -> (i32, i32) {
    %c0_i32 = arith.constant 0 : i32
    %c0_i32_0 = arith.constant 0 : i32
    %c0_i32_1 = arith.constant 0 : i32
    return %c0_i32, %c0_i32_0 : i32, i32
  }
  func.func @transform_2(%arg0: i32) -> (i32, i32) {
    %c0_i32 = arith.constant 0 : i32
    %c0_i32_0 = arith.constant 0 : i32
    %c0_i32_1 = arith.constant 0 : i32
    return %c0_i32, %c0_i32_0 : i32, i32
  }
  func.func @transform_3(%arg0: i32) -> (i32, i32) {
    %c0_i32 = arith.constant 0 : i32
    %c0_i32_0 = arith.constant 0 : i32
    return %arg0, %c0_i32 : i32, i32
  }
}

module attributes {stable_mosaic.version = 11 : i64} {
  func.func @conv_pool_kernel(%arg0: i32, %arg1: memref<4x50x150xf32, #tpu.memory_space<vmem>>, %arg2: memref<150x16xf32, #tpu.memory_space<vmem>>, %arg3: memref<1x16xf32, #tpu.memory_space<vmem>>, %arg4: memref<50x16xf32, #tpu.memory_space<vmem>>) attributes {dimension_semantics = [#tpu.dimension_semantics<parallel>], iteration_bounds = array<i64: 1>, scalar_prefetch = 0 : i64, scratch_operands = 0 : i64, tpu.core_type = #tpu.core_type<tc>, window_params = [{transform_indices = @transform_0, window_bounds = array<i64: 4, 50, 150>}, {pipeline_mode = #tpu.pipeline_mode<synchronous>, transform_indices = @transform_1, window_bounds = array<i64: 150, 16>}, {pipeline_mode = #tpu.pipeline_mode<synchronous>, transform_indices = @transform_2, window_bounds = array<i64: 1, 16>}, {transform_indices = @transform_3, window_bounds = array<i64: 50, 16>}]} {
    %c0 = arith.constant 0 : index
    %c0_0 = arith.constant 0 : index
    %0 = vector.load %arg2[%c0, %c0_0] : memref<150x16xf32, #tpu.memory_space<vmem>>, vector<150x16xf32>
    %c0_1 = arith.constant 0 : index
    %c0_2 = arith.constant 0 : index
    %c0_3 = arith.constant 0 : index
    %1 = vector.load %arg1[%c0_1, %c0_2, %c0_3] : memref<4x50x150xf32, #tpu.memory_space<vmem>>, vector<1x50x150xf32>
    %2 = vector.shape_cast %1 : vector<1x50x150xf32> to vector<50x150xf32>
    %cst = arith.constant dense<0.000000e+00> : vector<50x16xf32>
    %3 = tpu.matmul %2, %0, %cst {dimension_numbers = #tpu.dot_dimension_numbers<[1], [0], [0], [1], [0, 0, 1, 1], [], []>} : vector<50x150xf32>, vector<150x16xf32>, vector<50x16xf32> -> vector<50x16xf32>
    %c1 = arith.constant 1 : index
    %c0_4 = arith.constant 0 : index
    %c0_5 = arith.constant 0 : index
    %4 = vector.load %arg1[%c1, %c0_4, %c0_5] : memref<4x50x150xf32, #tpu.memory_space<vmem>>, vector<1x50x150xf32>
    %5 = vector.shape_cast %4 : vector<1x50x150xf32> to vector<50x150xf32>
    %cst_6 = arith.constant dense<0.000000e+00> : vector<50x16xf32>
    %6 = tpu.matmul %5, %0, %cst_6 {dimension_numbers = #tpu.dot_dimension_numbers<[1], [0], [0], [1], [0, 0, 1, 1], [], []>} : vector<50x150xf32>, vector<150x16xf32>, vector<50x16xf32> -> vector<50x16xf32>
    %c2 = arith.constant 2 : index
    %c0_7 = arith.constant 0 : index
    %c0_8 = arith.constant 0 : index
    %7 = vector.load %arg1[%c2, %c0_7, %c0_8] : memref<4x50x150xf32, #tpu.memory_space<vmem>>, vector<1x50x150xf32>
    %8 = vector.shape_cast %7 : vector<1x50x150xf32> to vector<50x150xf32>
    %cst_9 = arith.constant dense<0.000000e+00> : vector<50x16xf32>
    %9 = tpu.matmul %8, %0, %cst_9 {dimension_numbers = #tpu.dot_dimension_numbers<[1], [0], [0], [1], [0, 0, 1, 1], [], []>} : vector<50x150xf32>, vector<150x16xf32>, vector<50x16xf32> -> vector<50x16xf32>
    %c3 = arith.constant 3 : index
    %c0_10 = arith.constant 0 : index
    %c0_11 = arith.constant 0 : index
    %10 = vector.load %arg1[%c3, %c0_10, %c0_11] : memref<4x50x150xf32, #tpu.memory_space<vmem>>, vector<1x50x150xf32>
    %11 = vector.shape_cast %10 : vector<1x50x150xf32> to vector<50x150xf32>
    %cst_12 = arith.constant dense<0.000000e+00> : vector<50x16xf32>
    %12 = tpu.matmul %11, %0, %cst_12 {dimension_numbers = #tpu.dot_dimension_numbers<[1], [0], [0], [1], [0, 0, 1, 1], [], []>} : vector<50x150xf32>, vector<150x16xf32>, vector<50x16xf32> -> vector<50x16xf32>
    %13 = arith.maximumf %3, %6 : vector<50x16xf32>
    %14 = arith.maximumf %9, %12 : vector<50x16xf32>
    %15 = arith.maximumf %13, %14 : vector<50x16xf32>
    %c0_13 = arith.constant 0 : index
    %c0_14 = arith.constant 0 : index
    %16 = vector.load %arg3[%c0_13, %c0_14] : memref<1x16xf32, #tpu.memory_space<vmem>>, vector<1x16xf32>
    %17 = vector.broadcast %16 : vector<1x16xf32> to vector<50x16xf32>
    %18 = arith.addf %15, %17 : vector<50x16xf32>
    %cst_15 = arith.constant 0.000000e+00 : f32
    %19 = vector.broadcast %cst_15 : f32 to vector<50x16xf32>
    %20 = arith.maximumf %18, %19 : vector<50x16xf32>
    %c0_16 = arith.constant 0 : index
    %c0_17 = arith.constant 0 : index
    %21 = vector.load %arg4[%c0_16, %c0_17] : memref<50x16xf32, #tpu.memory_space<vmem>>, vector<50x16xf32>
    tpu.vector_store %arg4[%c0_16, %c0_17], %20 {strides = array<i32>} : memref<50x16xf32, #tpu.memory_space<vmem>>, vector<50x16xf32>,
    return
  }
  func.func @transform_0(%arg0: i32) -> (i32, i32, i32) {
    %c0_i32 = arith.constant 0 : i32
    %c0_i32_0 = arith.constant 0 : i32
    %c0_i32_1 = arith.constant 0 : i32
    return %c0_i32, %arg0, %c0_i32_0 : i32, i32, i32
  }
  func.func @transform_1(%arg0: i32) -> (i32, i32) {
    %c0_i32 = arith.constant 0 : i32
    %c0_i32_0 = arith.constant 0 : i32
    %c0_i32_1 = arith.constant 0 : i32
    return %c0_i32, %c0_i32_0 : i32, i32
  }
  func.func @transform_2(%arg0: i32) -> (i32, i32) {
    %c0_i32 = arith.constant 0 : i32
    %c0_i32_0 = arith.constant 0 : i32
    %c0_i32_1 = arith.constant 0 : i32
    return %c0_i32, %c0_i32_0 : i32, i32
  }
  func.func @transform_3(%arg0: i32) -> (i32, i32) {
    %c0_i32 = arith.constant 0 : i32
    %c0_i32_0 = arith.constant 0 : i32
    return %arg0, %c0_i32 : i32, i32
  }
}

module attributes {stable_mosaic.version = 11 : i64} {
  func.func @head_kernel(%arg0: i32, %arg1: memref<2x400xf32, #tpu.memory_space<vmem>>, %arg2: memref<400x120xf32, #tpu.memory_space<vmem>>, %arg3: memref<1x120xf32, #tpu.memory_space<vmem>>, %arg4: memref<120x84xf32, #tpu.memory_space<vmem>>, %arg5: memref<1x84xf32, #tpu.memory_space<vmem>>, %arg6: memref<84x85xf32, #tpu.memory_space<vmem>>, %arg7: memref<1x85xf32, #tpu.memory_space<vmem>>, %arg8: memref<85x85xf32, #tpu.memory_space<vmem>>, %arg9: memref<85x10xf32, #tpu.memory_space<vmem>>, %arg10: memref<2x10xf32, #tpu.memory_space<vmem>>) attributes {dimension_semantics = [#tpu.dimension_semantics<parallel>], iteration_bounds = array<i64: 1>, scalar_prefetch = 0 : i64, scratch_operands = 0 : i64, tpu.core_type = #tpu.core_type<tc>, window_params = [{transform_indices = @transform_0, window_bounds = array<i64: 2, 400>}, {pipeline_mode = #tpu.pipeline_mode<synchronous>, transform_indices = @transform_1, window_bounds = array<i64: 400, 120>}, {pipeline_mode = #tpu.pipeline_mode<synchronous>, transform_indices = @transform_2, window_bounds = array<i64: 1, 120>}, {pipeline_mode = #tpu.pipeline_mode<synchronous>, transform_indices = @transform_3, window_bounds = array<i64: 120, 84>}, {pipeline_mode = #tpu.pipeline_mode<synchronous>, transform_indices = @transform_4, window_bounds = array<i64: 1, 84>}, {pipeline_mode = #tpu.pipeline_mode<synchronous>, transform_indices = @transform_5, window_bounds = array<i64: 84, 85>}, {pipeline_mode = #tpu.pipeline_mode<synchronous>, transform_indices = @transform_6, window_bounds = array<i64: 1, 85>}, {pipeline_mode = #tpu.pipeline_mode<synchronous>, transform_indices = @transform_7, window_bounds = array<i64: 85, 85>}, {pipeline_mode = #tpu.pipeline_mode<synchronous>, transform_indices = @transform_8, window_bounds = array<i64: 85, 10>}, {transform_indices = @transform_9, window_bounds = array<i64: 2, 10>}]} {
    %c0 = arith.constant 0 : index
    %c0_0 = arith.constant 0 : index
    %0 = vector.load %arg1[%c0, %c0_0] : memref<2x400xf32, #tpu.memory_space<vmem>>, vector<2x400xf32>
    %c0_1 = arith.constant 0 : index
    %c0_2 = arith.constant 0 : index
    %1 = vector.load %arg2[%c0_1, %c0_2] : memref<400x120xf32, #tpu.memory_space<vmem>>, vector<400x120xf32>
    %cst = arith.constant dense<0.000000e+00> : vector<2x120xf32>
    %2 = tpu.matmul %0, %1, %cst {dimension_numbers = #tpu.dot_dimension_numbers<[1], [0], [0], [1], [0, 0, 1, 1], [], []>} : vector<2x400xf32>, vector<400x120xf32>, vector<2x120xf32> -> vector<2x120xf32>
    %c0_3 = arith.constant 0 : index
    %c0_4 = arith.constant 0 : index
    %3 = vector.load %arg3[%c0_3, %c0_4] : memref<1x120xf32, #tpu.memory_space<vmem>>, vector<1x120xf32>
    %4 = vector.broadcast %3 : vector<1x120xf32> to vector<2x120xf32>
    %5 = arith.addf %2, %4 : vector<2x120xf32>
    %cst_5 = arith.constant 0.000000e+00 : f32
    %6 = vector.broadcast %cst_5 : f32 to vector<2x120xf32>
    %7 = arith.maximumf %5, %6 : vector<2x120xf32>
    %c0_6 = arith.constant 0 : index
    %c0_7 = arith.constant 0 : index
    %8 = vector.load %arg4[%c0_6, %c0_7] : memref<120x84xf32, #tpu.memory_space<vmem>>, vector<120x84xf32>
    %cst_8 = arith.constant dense<0.000000e+00> : vector<2x84xf32>
    %9 = tpu.matmul %7, %8, %cst_8 {dimension_numbers = #tpu.dot_dimension_numbers<[1], [0], [0], [1], [0, 0, 1, 1], [], []>} : vector<2x120xf32>, vector<120x84xf32>, vector<2x84xf32> -> vector<2x84xf32>
    %c0_9 = arith.constant 0 : index
    %c0_10 = arith.constant 0 : index
    %10 = vector.load %arg5[%c0_9, %c0_10] : memref<1x84xf32, #tpu.memory_space<vmem>>, vector<1x84xf32>
    %11 = vector.broadcast %10 : vector<1x84xf32> to vector<2x84xf32>
    %12 = arith.addf %9, %11 : vector<2x84xf32>
    %cst_11 = arith.constant 1.000000e+00 : f32
    %13 = vector.broadcast %cst_11 : f32 to vector<2x84xf32>
    %14 = arith.mulf %13, %12 : vector<2x84xf32>
    %cst_12 = arith.constant 0.000000e+00 : f32
    %15 = vector.broadcast %cst_12 : f32 to vector<2x84xf32>
    %16 = arith.subf %15, %14 : vector<2x84xf32>
    %17 = math.exp %16 : vector<2x84xf32>
    %cst_13 = arith.constant 1.000000e+00 : f32
    %18 = vector.broadcast %cst_13 : f32 to vector<2x84xf32>
    %19 = arith.addf %18, %17 : vector<2x84xf32>
    %20 = tpu.reciprocal %19 {approx = true} : vector<2x84xf32> -> vector<2x84xf32>
    %cst_14 = arith.constant 0.55794847 : f32
    %21 = vector.broadcast %cst_14 : f32 to vector<2x84xf32>
    %22 = arith.mulf %21, %20 : vector<2x84xf32>
    %cst_15 = arith.constant 1.01284754 : f32
    %23 = vector.broadcast %cst_15 : f32 to vector<2x84xf32>
    %24 = arith.addf %22, %23 : vector<2x84xf32>
    %c0_16 = arith.constant 0 : index
    %c0_17 = arith.constant 0 : index
    %25 = vector.load %arg6[%c0_16, %c0_17] : memref<84x85xf32, #tpu.memory_space<vmem>>, vector<84x85xf32>
    %cst_18 = arith.constant dense<0.000000e+00> : vector<2x85xf32>
    %26 = tpu.matmul %24, %25, %cst_18 {dimension_numbers = #tpu.dot_dimension_numbers<[1], [0], [0], [1], [0, 0, 1, 1], [], []>} : vector<2x84xf32>, vector<84x85xf32>, vector<2x85xf32> -> vector<2x85xf32>
    %27 = math.sin %26 : vector<2x85xf32>
    %c0_19 = arith.constant 0 : index
    %c0_20 = arith.constant 0 : index
    %28 = vector.load %arg7[%c0_19, %c0_20] : memref<1x85xf32, #tpu.memory_space<vmem>>, vector<1x85xf32>
    %29 = vector.broadcast %28 : vector<1x85xf32> to vector<2x85xf32>
    %30 = arith.addf %26, %29 : vector<2x85xf32>
    %31 = math.cos %30 : vector<2x85xf32>
    %32 = math.absf %27 : vector<2x85xf32>
    %cst_21 = arith.constant 9.99999997E-7 : f32
    %33 = vector.broadcast %cst_21 : f32 to vector<2x85xf32>
    %34 = arith.addf %32, %33 : vector<2x85xf32>
    %35 = math.log %34 : vector<2x85xf32>
    %c0_22 = arith.constant 0 : index
    %c0_23 = arith.constant 0 : index
    %36 = vector.load %arg8[%c0_22, %c0_23] : memref<85x85xf32, #tpu.memory_space<vmem>>, vector<85x85xf32>
    %cst_24 = arith.constant dense<0.000000e+00> : vector<2x85xf32>
    %37 = tpu.matmul %35, %36, %cst_24 {dimension_numbers = #tpu.dot_dimension_numbers<[1], [0], [0], [1], [0, 0, 1, 1], [], []>} : vector<2x85xf32>, vector<85x85xf32>, vector<2x85xf32> -> vector<2x85xf32>
    %38 = math.absf %31 : vector<2x85xf32>
    %cst_25 = arith.constant 9.99999997E-7 : f32
    %39 = vector.broadcast %cst_25 : f32 to vector<2x85xf32>
    %40 = arith.addf %38, %39 : vector<2x85xf32>
    %41 = math.log %40 : vector<2x85xf32>
    %42 = arith.addf %37, %41 : vector<2x85xf32>
    %43 = math.exp %42 : vector<2x85xf32>
    %cst_26 = arith.constant 1.000000e+00 : f32
    %44 = vector.broadcast %cst_26 : f32 to vector<2x85xf32>
    %45 = arith.mulf %44, %43 : vector<2x85xf32>
    %c0_27 = arith.constant 0 : index
    %c0_28 = arith.constant 0 : index
    %46 = vector.load %arg9[%c0_27, %c0_28] : memref<85x10xf32, #tpu.memory_space<vmem>>, vector<85x10xf32>
    %cst_29 = arith.constant dense<0.000000e+00> : vector<2x10xf32>
    %47 = tpu.matmul %45, %46, %cst_29 {dimension_numbers = #tpu.dot_dimension_numbers<[1], [0], [0], [1], [0, 0, 1, 1], [], []>} : vector<2x85xf32>, vector<85x10xf32>, vector<2x10xf32> -> vector<2x10xf32>
    %c0_30 = arith.constant 0 : index
    %c0_31 = arith.constant 0 : index
    %48 = vector.load %arg10[%c0_30, %c0_31] : memref<2x10xf32, #tpu.memory_space<vmem>>, vector<2x10xf32>
    tpu.vector_store %arg10[%c0_30, %c0_31], %47 {strides = array<i32>} : memref<2x10xf32, #tpu.memory_space<vmem>>, vector<2x10xf32>,
    return
  }
  func.func @transform_0(%arg0: i32) -> (i32, i32) {
    %c0_i32 = arith.constant 0 : i32
    %c0_i32_0 = arith.constant 0 : i32
    return %arg0, %c0_i32 : i32, i32
  }
  func.func @transform_1(%arg0: i32) -> (i32, i32) {
    %c0_i32 = arith.constant 0 : i32
    %c0_i32_0 = arith.constant 0 : i32
    %c0_i32_1 = arith.constant 0 : i32
    return %c0_i32, %c0_i32_0 : i32, i32
  }
  func.func @transform_2(%arg0: i32) -> (i32, i32) {
    %c0_i32 = arith.constant 0 : i32
    %c0_i32_0 = arith.constant 0 : i32
    %c0_i32_1 = arith.constant 0 : i32
    return %c0_i32, %c0_i32_0 : i32, i32
  }
  func.func @transform_3(%arg0: i32) -> (i32, i32) {
    %c0_i32 = arith.constant 0 : i32
    %c0_i32_0 = arith.constant 0 : i32
    %c0_i32_1 = arith.constant 0 : i32
    return %c0_i32, %c0_i32_0 : i32, i32
  }
  func.func @transform_4(%arg0: i32) -> (i32, i32) {
    %c0_i32 = arith.constant 0 : i32
    %c0_i32_0 = arith.constant 0 : i32
    %c0_i32_1 = arith.constant 0 : i32
    return %c0_i32, %c0_i32_0 : i32, i32
  }
  func.func @transform_5(%arg0: i32) -> (i32, i32) {
    %c0_i32 = arith.constant 0 : i32
    %c0_i32_0 = arith.constant 0 : i32
    %c0_i32_1 = arith.constant 0 : i32
    return %c0_i32, %c0_i32_0 : i32, i32
  }
  func.func @transform_6(%arg0: i32) -> (i32, i32) {
    %c0_i32 = arith.constant 0 : i32
    %c0_i32_0 = arith.constant 0 : i32
    %c0_i32_1 = arith.constant 0 : i32
    return %c0_i32, %c0_i32_0 : i32, i32
  }
  func.func @transform_7(%arg0: i32) -> (i32, i32) {
    %c0_i32 = arith.constant 0 : i32
    %c0_i32_0 = arith.constant 0 : i32
    %c0_i32_1 = arith.constant 0 : i32
    return %c0_i32, %c0_i32_0 : i32, i32
  }
  func.func @transform_8(%arg0: i32) -> (i32, i32) {
    %c0_i32 = arith.constant 0 : i32
    %c0_i32_0 = arith.constant 0 : i32
    %c0_i32_1 = arith.constant 0 : i32
    return %c0_i32, %c0_i32_0 : i32, i32
  }
  func.func @transform_9(%arg0: i32) -> (i32, i32) {
    %c0_i32 = arith.constant 0 : i32
    %c0_i32_0 = arith.constant 0 : i32
    return %arg0, %c0_i32 : i32, i32
  }
}

</mosaic_0001>

<llo_original>
// kernel: spheric_cnn_forward.3
$region0: #{spheric_cnn_forward.3}
  #allocation0 [shape = 'u32[]', space=smem, size = 0x4, offset = 0x4, fixed_abs, tag = 'smem constant byte address 0x4 - core index']
  #allocation1 [shape = 'u32[144,128]{1,0:T(1,128)}', space=vmem, size = 0x12000, scoped, tag = 'internal scratch']
  %s0 = inlined_call_operand.vmem [shape: f32[4,392,25], index: 0, kind: input, shape index: {}]
  %s1 = inlined_call_operand.vmem [shape: f32[25,6], index: 1, kind: input, shape index: {}]
  %s2 = inlined_call_operand.vmem [shape: f32[1,6], index: 2, kind: input, shape index: {}]
  %s3 = inlined_call_operand.vmem [shape: f32[392,6], index: 3, kind: output, shape index: {}]
  %s4 = sld [smem:[#allocation0]]
  $region22: #{spheric_cnn_forward.3} parent=0
    _
  %s6 = ssub.s32 1, %s4
  %s7 = scalar_select 0, %s6, %s4
  // Predicated region
  $region2: #{spheric_cnn_forward.3} parent=0 // pred_check
    _
  $region3: #{spheric_cnn_forward.3} parent=0 // pred_check_branch
    %9 = sbr.rel (0) target = $region5
  $region4: #{spheric_cnn_forward.3} parent=0 // pred_region
    _
  $region5: #{spheric_cnn_forward.3} parent=0 // pred_fallthru
    _
  // Predicated region
  $region6: #{spheric_cnn_forward.3} parent=0 // pred_check
    _
  $region7: #{spheric_cnn_forward.3} parent=0 // pred_check_branch
    %11 = sbr.rel (0) target = $region9
  $region8: #{spheric_cnn_forward.3} parent=0 // pred_region
    _
  $region9: #{spheric_cnn_forward.3} parent=0 // pred_fallthru
    _
  // Predicated region
  $region10: #{spheric_cnn_forward.3} parent=0 // pred_check
    _
  $region11: #{spheric_cnn_forward.3} parent=0 // pred_check_branch
    %13 = sbr.rel (0) target = $region13
  $region12: #{spheric_cnn_forward.3} parent=0 // pred_region
    _
  $region13: #{spheric_cnn_forward.3} parent=0 // pred_fallthru
    _
  %v14 = vld [vmem:[%s1] sm:$0xff]
  %v15 = vld [vmem:[%s1 + $0x8] sm:$0xff]
  %v16 = vld [vmem:[%s1 + $0x10] sm:$0xff]
  %v17 = vld [vmem:[%s1 + $0x18] sm:$0x1]
  %v18 = vld [vmem:[%s0] sm:$0xff]
  %v19 = vld [vmem:[%s0 + $0x8] sm:$0xff]
  %v20 = vld [vmem:[%s0 + $0x10] sm:$0xff]
  %v21 = vld [vmem:[%s0 + $0x18] sm:$0xff]
  %v22 = vld [vmem:[%s0 + $0x20] sm:$0xff]
  %v23 = vld [vmem:[%s0 + $0x28] sm:$0xff]
  %v24 = vld [vmem:[%s0 + $0x30] sm:$0xff]
  %v25 = vld [vmem:[%s0 + $0x38] sm:$0xff]
  %v26 = vld [vmem:[%s0 + $0x40] sm:$0xff]
  %v27 = vld [vmem:[%s0 + $0x48] sm:$0xff]
  %v28 = vld [vmem:[%s0 + $0x50] sm:$0xff]
  %v29 = vld [vmem:[%s0 + $0x58] sm:$0xff]
  %v30 = vld [vmem:[%s0 + $0x60] sm:$0xff]
  %v31 = vld [vmem:[%s0 + $0x68] sm:$0xff]
  %v32 = vld [vmem:[%s0 + $0x70] sm:$0xff]
  %v33 = vld [vmem:[%s0 + $0x78] sm:$0xff]
  %v34 = vld [vmem:[%s0 + $0x80] sm:$0xff]
  %v35 = vld [vmem:[%s0 + $0x88] sm:$0xff]
  %v36 = vld [vmem:[%s0 + $0x90] sm:$0xff]
  %v37 = vld [vmem:[%s0 + $0x98] sm:$0xff]
  %v38 = vld [vmem:[%s0 + $0xa0] sm:$0xff]
  %v39 = vld [vmem:[%s0 + $0xa8] sm:$0xff]
  %v40 = vld [vmem:[%s0 + $0xb0] sm:$0xff]
  %v41 = vld [vmem:[%s0 + $0xb8] sm:$0xff]
  %v42 = vld [vmem:[%s0 + $0xc0] sm:$0xff]
  %v43 = vld [vmem:[%s0 + $0xc8] sm:$0xff]
  %v44 = vld [vmem:[%s0 + $0xd0] sm:$0xff]
  %v45 = vld [vmem:[%s0 + $0xd8] sm:$0xff]
  %v46 = vld [vmem:[%s0 + $0xe0] sm:$0xff]
  %v47 = vld [vmem:[%s0 + $0xe8] sm:$0xff]
  %v48 = vld [vmem:[%s0 + $0xf0] sm:$0xff]
  %v49 = vld [vmem:[%s0 + $0xf8] sm:$0xff]
  %v50 = vld [vmem:[%s0 + $0x100] sm:$0xff]
  %v51 = vld [vmem:[%s0 + $0x108] sm:$0xff]
  %v52 = vld [vmem:[%s0 + $0x110] sm:$0xff]
  %v53 = vld [vmem:[%s0 + $0x118] sm:$0xff]
  %v54 = vld [vmem:[%s0 + $0x120] sm:$0xff]
  %v55 = vld [vmem:[%s0 + $0x128] sm:$0xff]
  %v56 = vld [vmem:[%s0 + $0x130] sm:$0xff]
  %v57 = vld [vmem:[%s0 + $0x138] sm:$0xff]
  %v58 = vld [vmem:[%s0 + $0x140] sm:$0xff]
  %v59 = vld [vmem:[%s0 + $0x148] sm:$0xff]
  %v60 = vld [vmem:[%s0 + $0x150] sm:$0xff]
  %v61 = vld [vmem:[%s0 + $0x158] sm:$0xff]
  %v62 = vld [vmem:[%s0 + $0x160] sm:$0xff]
  %v63 = vld [vmem:[%s0 + $0x168] sm:$0xff]
  %v64 = vld [vmem:[%s0 + $0x170] sm:$0xff]
  %v65 = vld [vmem:[%s0 + $0x178] sm:$0xff]
  %v66 = vld [vmem:[%s0 + $0x180] sm:$0xff]
  %vm67 = vcmask 203776
  %v69 = vsel %vm67, %v18, 0
  %v72 = vsel %vm67, %v19, 0
  %v75 = vsel %vm67, %v20, 0
  %v78 = vsel %vm67, %v21, 0
  %v81 = vsel %vm67, %v22, 0
  %v84 = vsel %vm67, %v23, 0
  %v87 = vsel %vm67, %v24, 0
  %v90 = vsel %vm67, %v25, 0
  %v93 = vsel %vm67, %v26, 0
  %v96 = vsel %vm67, %v27, 0
  %v99 = vsel %vm67, %v28, 0
  %v102 = vsel %vm67, %v29, 0
  %v105 = vsel %vm67, %v30, 0
  %v108 = vsel %vm67, %v31, 0
  %v111 = vsel %vm67, %v32, 0
  %v114 = vsel %vm67, %v33, 0
  %v117 = vsel %vm67, %v34, 0
  %v120 = vsel %vm67, %v35, 0
  %v123 = vsel %vm67, %v36, 0
  %v126 = vsel %vm67, %v37, 0
  %v129 = vsel %vm67, %v38, 0
  %v132 = vsel %vm67, %v39, 0
  %v135 = vsel %vm67, %v40, 0
  %v138 = vsel %vm67, %v41, 0
  %v141 = vsel %vm67, %v42, 0
  %v144 = vsel %vm67, %v43, 0
  %v147 = vsel %vm67, %v44, 0
  %v150 = vsel %vm67, %v45, 0
  %v153 = vsel %vm67, %v46, 0
  %v156 = vsel %vm67, %v47, 0
  %v159 = vsel %vm67, %v48, 0
  %v162 = vsel %vm67, %v49, 0
  %v165 = vsel %vm67, %v50, 0
  %v168 = vsel %vm67, %v51, 0
  %v171 = vsel %vm67, %v52, 0
  %v174 = vsel %vm67, %v53, 0
  %v177 = vsel %vm67, %v54, 0
  %v180 = vsel %vm67, %v55, 0
  %v183 = vsel %vm67, %v56, 0
  %v186 = vsel %vm67, %v57, 0
  %v189 = vsel %vm67, %v58, 0
  %v192 = vsel %vm67, %v59, 0
  %v195 = vsel %vm67, %v60, 0
  %v198 = vsel %vm67, %v61, 0
  %v201 = vsel %vm67, %v62, 0
  %v204 = vsel %vm67, %v63, 0
  %v207 = vsel %vm67, %v64, 0
  %v210 = vsel %vm67, %v65, 0
  %v213 = vsel %vm67, %v66, 0
  %vm215 = vcmask 1040384
  %v217 = vsel %vm215, %v17, 0
  %219 = vmatprep.subr.mxu0 0.0
  %220 = vmatpush1.msra.mxu0 0.0
  %221 = vmatprep.subr.mxu0 0.0
  %222 = vmatpush1.msra.mxu0 0.0
  %223 = vmatprep.subr.mxu0 0.0
  %224 = vmatpush1.msra.mxu0 0.0
  %225 = vmatprep.subr.mxu0 0.0
  %226 = vmatpush1.msra.mxu0 0.0
  %227 = vmatprep.subr.mxu0 0.0
  %228 = vmatpush1.msra.mxu0 0.0
  %229 = vmatprep.subr.mxu0 0.0
  %230 = vmatpush1.msra.mxu0 0.0
  %231 = vmatprep.subr.mxu0 0.0
  %232 = vmatpush1.msra.mxu0 0.0
  %233 = vmatprep.subr.mxu0 0.0
  %234 = vmatpush1.msra.mxu0 0.0
  %235 = vmatprep.subr.mxu0 0.0
  %236 = vmatpush1.msra.mxu0 0.0
  %237 = vmatprep.subr.mxu0 0.0
  %238 = vmatpush1.msra.mxu0 0.0
  %239 = vmatprep.subr.mxu0 0.0
  %240 = vmatpush1.msra.mxu0 0.0
  %241 = vmatprep.subr.mxu0 0.0
  %242 = vmatpush1.msra.mxu0 0.0
  %243 = vmatprep.subr.mxu0 0.0
  %244 = vmatpush1.msra.mxu0 %v217
  %245 = vmatprep.subr.mxu0 0.0
  %246 = vmatpush1.msra.mxu0 %v16
  %247 = vmatprep.subr.mxu0 0.0
  %248 = vmatpush1.msra.mxu0 %v15
  %249 = vmatprep.subr.mxu0 0.0
  %250 = vmatpush1.msra.mxu0 %v14
  %251 = vmatprep.subr.mxu0 0.0
  %252 = vmatpush2.msra.mxu0 0.0
  %253 = vmatprep.subr.mxu0 0.0
  %254 = vmatpush2.msra.mxu0 0.0
  %255 = vmatprep.subr.mxu0 0.0
  %256 = vmatpush2.msra.mxu0 0.0
  %257 = vmatprep.subr.mxu0 0.0
  %258 = vmatpush2.msra.mxu0 0.0
  %259 = vmatprep.subr.mxu0 0.0
  %260 = vmatpush2.msra.mxu0 0.0
  %261 = vmatprep.subr.mxu0 0.0
  %262 = vmatpush2.msra.mxu0 0.0
  %263 = vmatprep.subr.mxu0 0.0
  %264 = vmatpush2.msra.mxu0 0.0
  %265 = vmatprep.subr.mxu0 0.0
  %266 = vmatpush2.msra.mxu0 0.0
  %267 = vmatprep.subr.mxu0 0.0
  %268 = vmatpush2.msra.mxu0 0.0
  %269 = vmatprep.subr.mxu0 0.0
  %270 = vmatpush2.msra.mxu0 0.0
  %271 = vmatprep.subr.mxu0 0.0
  %272 = vmatpush2.msra.mxu0 0.0
  %273 = vmatprep.subr.mxu0 0.0
  %274 = vmatpush2.msra.mxu0 0.0
  %275 = vmatprep.subr.mxu0 0.0
  %276 = vmatpush2.msra.mxu0 0.0
  %277 = vmatprep.subr.mxu0 0.0
  %278 = vmatpush2.msra.mxu0 0.0
  %279 = vmatprep.subr.mxu0 0.0
  %280 = vmatpush2.msra.mxu0 0.0
  %281 = vmatprep.subr.mxu0 0.0
  %282 = vmatpush2.msra.mxu0 0.0
  %283 = vmatprep.mubr.f32.mxu0 0.0
  %284 = vmatmul.mubr.f32.gmra.mxu0 %v69
  %v285 = vpop.f32.mrf.mxu0
  %v286 = vadd.f32 0.0, %v285
  %v287 = vpop.f32.mrf.mxu0
  %288 = vmatprep.mubr.f32.mxu0 0.0
  %289 = vmatmul.mubr.f32.gmra.mxu0 %v72
  %v290 = vpop.f32.mrf.mxu0
  %v291 = vadd.f32 0.0, %v290
  %v292 = vpop.f32.mrf.mxu0
  %293 = vmatprep.mubr.f32.mxu0 0.0
  %294 = vmatmul.mubr.f32.gmra.mxu0 %v75
  %v295 = vpop.f32.mrf.mxu0
  %v296 = vadd.f32 0.0, %v295
  %v297 = vpop.f32.mrf.mxu0
  %298 = vmatprep.mubr.f32.mxu0 0.0
  %299 = vmatmul.mubr.f32.gmra.mxu0 %v78
  %v300 = vpop.f32.mrf.mxu0
  %v301 = vadd.f32 0.0, %v300
  %v302 = vpop.f32.mrf.mxu0
  %303 = vmatprep.mubr.f32.mxu0 0.0
  %304 = vmatmul.mubr.f32.gmra.mxu0 %v81
  %v305 = vpop.f32.mrf.mxu0
  %v306 = vadd.f32 0.0, %v305
  %v307 = vpop.f32.mrf.mxu0
  %308 = vmatprep.mubr.f32.mxu0 0.0
  %309 = vmatmul.mubr.f32.gmra.mxu0 %v84
  %v310 = vpop.f32.mrf.mxu0
  %v311 = vadd.f32 0.0, %v310
  %v312 = vpop.f32.mrf.mxu0
  %313 = vmatprep.mubr.f32.mxu0 0.0
  %314 = vmatmul.mubr.f32.gmra.mxu0 %v87
  %v315 = vpop.f32.mrf.mxu0
  %v316 = vadd.f32 0.0, %v315
  %v317 = vpop.f32.mrf.mxu0
  %318 = vmatprep.mubr.f32.mxu0 0.0
  %319 = vmatmul.mubr.f32.gmra.mxu0 %v90
  %v320 = vpop.f32.mrf.mxu0
  %v321 = vadd.f32 0.0, %v320
  %v322 = vpop.f32.mrf.mxu0
  %323 = vmatprep.mubr.f32.mxu0 0.0
  %324 = vmatmul.mubr.f32.gmra.mxu0 %v93
  %v325 = vpop.f32.mrf.mxu0
  %v326 = vadd.f32 0.0, %v325
  %v327 = vpop.f32.mrf.mxu0
  %328 = vmatprep.mubr.f32.mxu0 0.0
  %329 = vmatmul.mubr.f32.gmra.mxu0 %v96
  %v330 = vpop.f32.mrf.mxu0
  %v331 = vadd.f32 0.0, %v330
  %v332 = vpop.f32.mrf.mxu0
  %333 = vmatprep.mubr.f32.mxu0 0.0
  %334 = vmatmul.mubr.f32.gmra.mxu0 %v99
  %v335 = vpop.f32.mrf.mxu0
  %v336 = vadd.f32 0.0, %v335
  %v337 = vpop.f32.mrf.mxu0
  %338 = vmatprep.mubr.f32.mxu0 0.0
  %339 = vmatmul.mubr.f32.gmra.mxu0 %v102
  %v340 = vpop.f32.mrf.mxu0
  %v341 = vadd.f32 0.0, %v340
  %v342 = vpop.f32.mrf.mxu0
  %343 = vmatprep.mubr.f32.mxu0 0.0
  %344 = vmatmul.mubr.f32.gmra.mxu0 %v105
  %v345 = vpop.f32.mrf.mxu0
  %v346 = vadd.f32 0.0, %v345
  %v347 = vpop.f32.mrf.mxu0
  %348 = vmatprep.mubr.f32.mxu0 0.0
  %349 = vmatmul.mubr.f32.gmra.mxu0 %v108
  %v350 = vpop.f32.mrf.mxu0
  %v351 = vadd.f32 0.0, %v350
  %v352 = vpop.f32.mrf.mxu0
  %353 = vmatprep.mubr.f32.mxu0 0.0
  %354 = vmatmul.mubr.f32.gmra.mxu0 %v111
  %v355 = vpop.f32.mrf.mxu0
  %v356 = vadd.f32 0.0, %v355
  %v357 = vpop.f32.mrf.mxu0
  %358 = vmatprep.mubr.f32.mxu0 0.0
  %359 = vmatmul.mubr.f32.gmra.mxu0 %v114
  %v360 = vpop.f32.mrf.mxu0
  %v361 = vadd.f32 0.0, %v360
  %v362 = vpop.f32.mrf.mxu0
  %363 = vmatprep.mubr.f32.mxu0 0.0
  %364 = vmatmul.mubr.f32.gmra.mxu0 %v117
  %v365 = vpop.f32.mrf.mxu0
  %v366 = vadd.f32 0.0, %v365
  %v367 = vpop.f32.mrf.mxu0
  %368 = vmatprep.mubr.f32.mxu0 0.0
  %369 = vmatmul.mubr.f32.gmra.mxu0 %v120
  %v370 = vpop.f32.mrf.mxu0
  %v371 = vadd.f32 0.0, %v370
  %v372 = vpop.f32.mrf.mxu0
  %373 = vmatprep.mubr.f32.mxu0 0.0
  %374 = vmatmul.mubr.f32.gmra.mxu0 %v123
  %v375 = vpop.f32.mrf.mxu0
  %v376 = vadd.f32 0.0, %v375
  %v377 = vpop.f32.mrf.mxu0
  %378 = vmatprep.mubr.f32.mxu0 0.0
  %379 = vmatmul.mubr.f32.gmra.mxu0 %v126
  %v380 = vpop.f32.mrf.mxu0
  %v381 = vadd.f32 0.0, %v380
  %v382 = vpop.f32.mrf.mxu0
  %383 = vmatprep.mubr.f32.mxu0 0.0
  %384 = vmatmul.mubr.f32.gmra.mxu0 %v129
  %v385 = vpop.f32.mrf.mxu0
  %v386 = vadd.f32 0.0, %v385
  %v387 = vpop.f32.mrf.mxu0
  %388 = vmatprep.mubr.f32.mxu0 0.0
  %389 = vmatmul.mubr.f32.gmra.mxu0 %v132
  %v390 = vpop.f32.mrf.mxu0
  %v391 = vadd.f32 0.0, %v390
  %v392 = vpop.f32.mrf.mxu0
  %393 = vmatprep.mubr.f32.mxu0 0.0
  %394 = vmatmul.mubr.f32.gmra.mxu0 %v135
  %v395 = vpop.f32.mrf.mxu0
  %v396 = vadd.f32 0.0, %v395
  %v397 = vpop.f32.mrf.mxu0
  %398 = vmatprep.mubr.f32.mxu0 0.0
  %399 = vmatmul.mubr.f32.gmra.mxu0 %v138
  %v400 = vpop.f32.mrf.mxu0
  %v401 = vadd.f32 0.0, %v400
  %v402 = vpop.f32.mrf.mxu0
  %403 = vmatprep.mubr.f32.mxu0 0.0
  %404 = vmatmul.mubr.f32.gmra.mxu0 %v141
  %v405 = vpop.f32.mrf.mxu0
  %v406 = vadd.f32 0.0, %v405
  %v407 = vpop.f32.mrf.mxu0
  %408 = vmatprep.mubr.f32.mxu0 0.0
  %409 = vmatmul.mubr.f32.gmra.mxu0 %v144
  %v410 = vpop.f32.mrf.mxu0
  %v411 = vadd.f32 0.0, %v410
  %v412 = vpop.f32.mrf.mxu0
  %413 = vmatprep.mubr.f32.mxu0 0.0
  %414 = vmatmul.mubr.f32.gmra.mxu0 %v147
  %v415 = vpop.f32.mrf.mxu0
  %v416 = vadd.f32 0.0, %v415
  %v417 = vpop.f32.mrf.mxu0
  %418 = vmatprep.mubr.f32.mxu0 0.0
  %419 = vmatmul.mubr.f32.gmra.mxu0 %v150
  %v420 = vpop.f32.mrf.mxu0
  %v421 = vadd.f32 0.0, %v420
  %v422 = vpop.f32.mrf.mxu0
  %423 = vmatprep.mubr.f32.mxu0 0.0
  %424 = vmatmul.mubr.f32.gmra.mxu0 %v153
  %v425 = vpop.f32.mrf.mxu0
  %v426 = vadd.f32 0.0, %v425
  %v427 = vpop.f32.mrf.mxu0
  %428 = vmatprep.mubr.f32.mxu0 0.0
  %429 = vmatmul.mubr.f32.gmra.mxu0 %v156
  %v430 = vpop.f32.mrf.mxu0
  %v431 = vadd.f32 0.0, %v430
  %v432 = vpop.f32.mrf.mxu0
  %433 = vmatprep.mubr.f32.mxu0 0.0
  %434 = vmatmul.mubr.f32.gmra.mxu0 %v159
  %v435 = vpop.f32.mrf.mxu0
  %v436 = vadd.f32 0.0, %v435
  %v437 = vpop.f32.mrf.mxu0
  %438 = vmatprep.mubr.f32.mxu0 0.0
  %439 = vmatmul.mubr.f32.gmra.mxu0 %v162
  %v440 = vpop.f32.mrf.mxu0
  %v441 = vadd.f32 0.0, %v440
  %v442 = vpop.f32.mrf.mxu0
  %443 = vmatprep.mubr.f32.mxu0 0.0
  %444 = vmatmul.mubr.f32.gmra.mxu0 %v165
  %v445 = vpop.f32.mrf.mxu0
  %v446 = vadd.f32 0.0, %v445
  %v447 = vpop.f32.mrf.mxu0
  %448 = vmatprep.mubr.f32.mxu0 0.0
  %449 = vmatmul.mubr.f32.gmra.mxu0 %v168
  %v450 = vpop.f32.mrf.mxu0
  %v451 = vadd.f32 0.0, %v450
  %v452 = vpop.f32.mrf.mxu0
  %453 = vmatprep.mubr.f32.mxu0 0.0
  %454 = vmatmul.mubr.f32.gmra.mxu0 %v171
  %v455 = vpop.f32.mrf.mxu0
  %v456 = vadd.f32 0.0, %v455
  %v457 = vpop.f32.mrf.mxu0
  %458 = vmatprep.mubr.f32.mxu0 0.0
  %459 = vmatmul.mubr.f32.gmra.mxu0 %v174
  %v460 = vpop.f32.mrf.mxu0
  %v461 = vadd.f32 0.0, %v460
  %v462 = vpop.f32.mrf.mxu0
  %463 = vmatprep.mubr.f32.mxu0 0.0
  %464 = vmatmul.mubr.f32.gmra.mxu0 %v177
  %v465 = vpop.f32.mrf.mxu0
  %v466 = vadd.f32 0.0, %v465
  %v467 = vpop.f32.mrf.mxu0
  %468 = vmatprep.mubr.f32.mxu0 0.0
  %469 = vmatmul.mubr.f32.gmra.mxu0 %v180
  %v470 = vpop.f32.mrf.mxu0
  %v471 = vadd.f32 0.0, %v470
  %v472 = vpop.f32.mrf.mxu0
  %473 = vmatprep.mubr.f32.mxu0 0.0
  %474 = vmatmul.mubr.f32.gmra.mxu0 %v183
  %v475 = vpop.f32.mrf.mxu0
  %v476 = vadd.f32 0.0, %v475
  %v477 = vpop.f32.mrf.mxu0
  %478 = vmatprep.mubr.f32.mxu0 0.0
  %479 = vmatmul.mubr.f32.gmra.mxu0 %v186
  %v480 = vpop.f32.mrf.mxu0
  %v481 = vadd.f32 0.0, %v480
  %v482 = vpop.f32.mrf.mxu0
  %483 = vmatprep.mubr.f32.mxu0 0.0
  %484 = vmatmul.mubr.f32.gmra.mxu0 %v189
  %v485 = vpop.f32.mrf.mxu0
  %v486 = vadd.f32 0.0, %v485
  %v487 = vpop.f32.mrf.mxu0
  %488 = vmatprep.mubr.f32.mxu0 0.0
  %489 = vmatmul.mubr.f32.gmra.mxu0 %v192
  %v490 = vpop.f32.mrf.mxu0
  %v491 = vadd.f32 0.0, %v490
  %v492 = vpop.f32.mrf.mxu0
  %493 = vmatprep.mubr.f32.mxu0 0.0
  %494 = vmatmul.mubr.f32.gmra.mxu0 %v195
  %v495 = vpop.f32.mrf.mxu0
  %v496 = vadd.f32 0.0, %v495
  %v497 = vpop.f32.mrf.mxu0
  %498 = vmatprep.mubr.f32.mxu0 0.0
  %499 = vmatmul.mubr.f32.gmra.mxu0 %v198
  %v500 = vpop.f32.mrf.mxu0
  %v501 = vadd.f32 0.0, %v500
  %v502 = vpop.f32.mrf.mxu0
  %503 = vmatprep.mubr.f32.mxu0 0.0
  %504 = vmatmul.mubr.f32.gmra.mxu0 %v201
  %v505 = vpop.f32.mrf.mxu0
  %v506 = vadd.f32 0.0, %v505
  %v507 = vpop.f32.mrf.mxu0
  %508 = vmatprep.mubr.f32.mxu0 0.0
  %509 = vmatmul.mubr.f32.gmra.mxu0 %v204
  %v510 = vpop.f32.mrf.mxu0
  %v511 = vadd.f32 0.0, %v510
  %v512 = vpop.f32.mrf.mxu0
  %513 = vmatprep.mubr.f32.mxu0 0.0
  %514 = vmatmul.mubr.f32.gmra.mxu0 %v207
  %v515 = vpop.f32.mrf.mxu0
  %v516 = vadd.f32 0.0, %v515
  %v517 = vpop.f32.mrf.mxu0
  %518 = vmatprep.mubr.f32.mxu0 0.0
  %519 = vmatmul.mubr.f32.gmra.mxu0 %v210
  %v520 = vpop.f32.mrf.mxu0
  %v521 = vadd.f32 0.0, %v520
  %v522 = vpop.f32.mrf.mxu0
  %523 = vmatprep.mubr.f32.mxu0 0.0
  %524 = vmatmul.mubr.f32.gmra.mxu0 %v213
  %v525 = vpop.f32.mrf.mxu0
  %v526 = vadd.f32 0.0, %v525
  %v527 = vpop.f32.mrf.mxu0
  %528 = vdwg.mxu0
  %s529 = scalar_lea.vmem %s0, 392
  %v530 = vld [vmem:[%s529] sm:$0xff]
  %v531 = vld [vmem:[%s529 + $0x8] sm:$0xff]
  %v532 = vld [vmem:[%s529 + $0x10] sm:$0xff]
  %v533 = vld [vmem:[%s529 + $0x18] sm:$0xff]
  %v534 = vld [vmem:[%s529 + $0x20] sm:$0xff]
  %v535 = vld [vmem:[%s529 + $0x28] sm:$0xff]
  %v536 = vld [vmem:[%s529 + $0x30] sm:$0xff]
  %v537 = vld [vmem:[%s529 + $0x38] sm:$0xff]
  %v538 = vld [vmem:[%s529 + $0x40] sm:$0xff]
  %v539 = vld [vmem:[%s529 + $0x48] sm:$0xff]
  %v540 = vld [vmem:[%s529 + $0x50] sm:$0xff]
  %v541 = vld [vmem:[%s529 + $0x58] sm:$0xff]
  %v542 = vld [vmem:[%s529 + $0x60] sm:$0xff]
  %v543 = vld [vmem:[%s529 + $0x68] sm:$0xff]
  %v544 = vld [vmem:[%s529 + $0x70] sm:$0xff]
  %v545 = vld [vmem:[%s529 + $0x78] sm:$0xff]
  %v546 = vld [vmem:[%s529 + $0x80] sm:$0xff]
  %v547 = vld [vmem:[%s529 + $0x88] sm:$0xff]
  %v548 = vld [vmem:[%s529 + $0x90] sm:$0xff]
  %v549 = vld [vmem:[%s529 + $0x98] sm:$0xff]
  %v550 = vld [vmem:[%s529 + $0xa0] sm:$0xff]
  %v551 = vld [vmem:[%s529 + $0xa8] sm:$0xff]
  %v552 = vld [vmem:[%s529 + $0xb0] sm:$0xff]
  %v553 = vld [vmem:[%s529 + $0xb8] sm:$0xff]
  %v554 = vld [vmem:[%s529 + $0xc0] sm:$0xff]
  %v555 = vld [vmem:[%s529 + $0xc8] sm:$0xff]
  %v556 = vld [vmem:[%s529 + $0xd0] sm:$0xff]
  %v557 = vld [vmem:[%s529 + $0xd8] sm:$0xff]
  %v558 = vld [vmem:[%s529 + $0xe0] sm:$0xff]
  %v559 = vld [vmem:[%s529 + $0xe8] sm:$0xff]
  %v560 = vld [vmem:[%s529 + $0xf0] sm:$0xff]
  %v561 = vld [vmem:[%s529 + $0xf8] sm:$0xff]
  %v562 = vld [vmem:[%s529 + $0x100] sm:$0xff]
  %v563 = vld [vmem:[%s529 + $0x108] sm:$0xff]
  %v564 = vld [vmem:[%s529 + $0x110] sm:$0xff]
  %v565 = vld [vmem:[%s529 + $0x118] sm:$0xff]
  %v566 = vld [vmem:[%s529 + $0x120] sm:$0xff]
  %v567 = vld [vmem:[%s529 + $0x128] sm:$0xff]
  %v568 = vld [vmem:[%s529 + $0x130] sm:$0xff]
  %v569 = vld [vmem:[%s529 + $0x138] sm:$0xff]
  %v570 = vld [vmem:[%s529 + $0x140] sm:$0xff]
  %v571 = vld [vmem:[%s529 + $0x148] sm:$0xff]
  %v572 = vld [vmem:[%s529 + $0x150] sm:$0xff]
  %v573 = vld [vmem:[%s529 + $0x158] sm:$0xff]
  %v574 = vld [vmem:[%s529 + $0x160] sm:$0xff]
  %v575 = vld [vmem:[%s529 + $0x168] sm:$0xff]
  %v576 = vld [vmem:[%s529 + $0x170] sm:$0xff]
  %v577 = vld [vmem:[%s529 + $0x178] sm:$0xff]
  %v578 = vld [vmem:[%s529 + $0x180] sm:$0xff]
  %v580 = vsel %vm67, %v530, 0
  %v583 = vsel %vm67, %v531, 0
  %v586 = vsel %vm67, %v532, 0
  %v589 = vsel %vm67, %v533, 0
  %v592 = vsel %vm67, %v534, 0
  %v595 = vsel %vm67, %v535, 0
  %v598 = vsel %vm67, %v536, 0
  %v601 = vsel %vm67, %v537, 0
  %v604 = vsel %vm67, %v538, 0
  %v607 = vsel %vm67, %v539, 0
  %v610 = vsel %vm67, %v540, 0
  %v613 = vsel %vm67, %v541, 0
  %v616 = vsel %vm67, %v542, 0
  %v619 = vsel %vm67, %v543, 0
  %v622 = vsel %vm67, %v544, 0
  %v625 = vsel %vm67, %v545, 0
  %v628 = vsel %vm67, %v546, 0
  %v631 = vsel %vm67, %v547, 0
  %v634 = vsel %vm67, %v548, 0
  %v637 = vsel %vm67, %v549, 0
  %v640 = vsel %vm67, %v550, 0
  %v643 = vsel %vm67, %v551, 0
  %v646 = vsel %vm67, %v552, 0
  %v649 = vsel %vm67, %v553, 0
  %v652 = vsel %vm67, %v554, 0
  %v655 = vsel %vm67, %v555, 0
  %v658 = vsel %vm67, %v556, 0
  %v661 = vsel %vm67, %v557, 0
  %v664 = vsel %vm67, %v558, 0
  %v667 = vsel %vm67, %v559, 0
  %v670 = vsel %vm67, %v560, 0
  %v673 = vsel %vm67, %v561, 0
  %v676 = vsel %vm67, %v562, 0
  %v679 = vsel %vm67, %v563, 0
  %v682 = vsel %vm67, %v564, 0
  %v685 = vsel %vm67, %v565, 0
  %v688 = vsel %vm67, %v566, 0
  %v691 = vsel %vm67, %v567, 0
  %v694 = vsel %vm67, %v568, 0
  %v697 = vsel %vm67, %v569, 0
  %v700 = vsel %vm67, %v570, 0
  %v703 = vsel %vm67, %v571, 0
  %v706 = vsel %vm67, %v572, 0
  %v709 = vsel %vm67, %v573, 0
  %v712 = vsel %vm67, %v574, 0
  %v715 = vsel %vm67, %v575, 0
  %v718 = vsel %vm67, %v576, 0
  %v721 = vsel %vm67, %v577, 0
  %v724 = vsel %vm67, %v578, 0
  %726 = vmatprep.subr.mxu0 0.0
  %727 = vmatpush1.msra.mxu0 0.0
  %728 = vmatprep.subr.mxu0 0.0
  %729 = vmatpush1.msra.mxu0 0.0
  %730 = vmatprep.subr.mxu0 0.0
  %731 = vmatpush1.msra.mxu0 0.0
  %732 = vmatprep.subr.mxu0 0.0
  %733 = vmatpush1.msra.mxu0 0.0
  %734 = vmatprep.subr.mxu0 0.0
  %735 = vmatpush1.msra.mxu0 0.0
  %736 = vmatprep.subr.mxu0 0.0
  %737 = vmatpush1.msra.mxu0 0.0
  %738 = vmatprep.subr.mxu0 0.0
  %739 = vmatpush1.msra.mxu0 0.0
  %740 = vmatprep.subr.mxu0 0.0
  %741 = vmatpush1.msra.mxu0 0.0
  %742 = vmatprep.subr.mxu0 0.0
  %743 = vmatpush1.msra.mxu0 0.0
  %744 = vmatprep.subr.mxu0 0.0
  %745 = vmatpush1.msra.mxu0 0.0
  %746 = vmatprep.subr.mxu0 0.0
  %747 = vmatpush1.msra.mxu0 0.0
  %748 = vmatprep.subr.mxu0 0.0
  %749 = vmatpush1.msra.mxu0 0.0
  %750 = vmatprep.subr.mxu0 0.0
  %751 = vmatpush1.msra.mxu0 %v217
  %752 = vmatprep.subr.mxu0 0.0
  %753 = vmatpush1.msra.mxu0 %v16
  %754 = vmatprep.subr.mxu0 0.0
  %755 = vmatpush1.msra.mxu0 %v15
  %756 = vmatprep.subr.mxu0 0.0
  %757 = vmatpush1.msra.mxu0 %v14
  %758 = vmatprep.subr.mxu0 0.0
  %759 = vmatpush2.msra.mxu0 0.0
  %760 = vmatprep.subr.mxu0 0.0
  %761 = vmatpush2.msra.mxu0 0.0
  %762 = vmatprep.subr.mxu0 0.0
  %763 = vmatpush2.msra.mxu0 0.0
  %764 = vmatprep.subr.mxu0 0.0
  %765 = vmatpush2.msra.mxu0 0.0
  %766 = vmatprep.subr.mxu0 0.0
  %767 = vmatpush2.msra.mxu0 0.0
  %768 = vmatprep.subr.mxu0 0.0
  %769 = vmatpush2.msra.mxu0 0.0
  %770 = vmatprep.subr.mxu0 0.0
  %771 = vmatpush2.msra.mxu0 0.0
  %772 = vmatprep.subr.mxu0 0.0
  %773 = vmatpush2.msra.mxu0 0.0
  %774 = vmatprep.subr.mxu0 0.0
  %775 = vmatpush2.msra.mxu0 0.0
  %776 = vmatprep.subr.mxu0 0.0
  %777 = vmatpush2.msra.mxu0 0.0
  %778 = vmatprep.subr.mxu0 0.0
  %779 = vmatpush2.msra.mxu0 0.0
  %780 = vmatprep.subr.mxu0 0.0
  %781 = vmatpush2.msra.mxu0 0.0
  %782 = vmatprep.subr.mxu0 0.0
  %783 = vmatpush2.msra.mxu0 0.0
  %784 = vmatprep.subr.mxu0 0.0
  %785 = vmatpush2.msra.mxu0 0.0
  %786 = vmatprep.subr.mxu0 0.0
  %787 = vmatpush2.msra.mxu0 0.0
  %788 = vmatprep.subr.mxu0 0.0
  %789 = vmatpush2.msra.mxu0 0.0
  %790 = vmatprep.mubr.f32.mxu0 0.0
  %791 = vmatmul.mubr.f32.gmra.mxu0 %v580
  %v792 = vpop.f32.mrf.mxu0
  %v793 = vadd.f32 0.0, %v792
  %v794 = vpop.f32.mrf.mxu0
  %795 = vmatprep.mubr.f32.mxu0 0.0
  %796 = vmatmul.mubr.f32.gmra.mxu0 %v583
  %v797 = vpop.f32.mrf.mxu0
  %v798 = vadd.f32 0.0, %v797
  %v799 = vpop.f32.mrf.mxu0
  %800 = vmatprep.mubr.f32.mxu0 0.0
  %801 = vmatmul.mubr.f32.gmra.mxu0 %v586
  %v802 = vpop.f32.mrf.mxu0
  %v803 = vadd.f32 0.0, %v802
  %v804 = vpop.f32.mrf.mxu0
  %805 = vmatprep.mubr.f32.mxu0 0.0
  %806 = vmatmul.mubr.f32.gmra.mxu0 %v589
  %v807 = vpop.f32.mrf.mxu0
  %v808 = vadd.f32 0.0, %v807
  %v809 = vpop.f32.mrf.mxu0
  %810 = vmatprep.mubr.f32.mxu0 0.0
  %811 = vmatmul.mubr.f32.gmra.mxu0 %v592
  %v812 = vpop.f32.mrf.mxu0
  %v813 = vadd.f32 0.0, %v812
  %v814 = vpop.f32.mrf.mxu0
  %815 = vmatprep.mubr.f32.mxu0 0.0
  %816 = vmatmul.mubr.f32.gmra.mxu0 %v595
  %v817 = vpop.f32.mrf.mxu0
  %v818 = vadd.f32 0.0, %v817
  %v819 = vpop.f32.mrf.mxu0
  %820 = vmatprep.mubr.f32.mxu0 0.0
  %821 = vmatmul.mubr.f32.gmra.mxu0 %v598
  %v822 = vpop.f32.mrf.mxu0
  %v823 = vadd.f32 0.0, %v822
  %v824 = vpop.f32.mrf.mxu0
  %825 = vmatprep.mubr.f32.mxu0 0.0
  %826 = vmatmul.mubr.f32.gmra.mxu0 %v601
  %v827 = vpop.f32.mrf.mxu0
  %v828 = vadd.f32 0.0, %v827
  %v829 = vpop.f32.mrf.mxu0
  %830 = vmatprep.mubr.f32.mxu0 0.0
  %831 = vmatmul.mubr.f32.gmra.mxu0 %v604
  %v832 = vpop.f32.mrf.mxu0
  %v833 = vadd.f32 0.0, %v832
  %v834 = vpop.f32.mrf.mxu0
  %835 = vmatprep.mubr.f32.mxu0 0.0
  %836 = vmatmul.mubr.f32.gmra.mxu0 %v607
  %v837 = vpop.f32.mrf.mxu0
  %v838 = vadd.f32 0.0, %v837
  %v839 = vpop.f32.mrf.mxu0
  %840 = vmatprep.mubr.f32.mxu0 0.0
  %841 = vmatmul.mubr.f32.gmra.mxu0 %v610
  %v842 = vpop.f32.mrf.mxu0
  %v843 = vadd.f32 0.0, %v842
  %v844 = vpop.f32.mrf.mxu0
  %845 = vmatprep.mubr.f32.mxu0 0.0
  %846 = vmatmul.mubr.f32.gmra.mxu0 %v613
  %v847 = vpop.f32.mrf.mxu0
  %v848 = vadd.f32 0.0, %v847
  %v849 = vpop.f32.mrf.mxu0
  %850 = vmatprep.mubr.f32.mxu0 0.0
  %851 = vmatmul.mubr.f32.gmra.mxu0 %v616
  %v852 = vpop.f32.mrf.mxu0
  %v853 = vadd.f32 0.0, %v852
  %v854 = vpop.f32.mrf.mxu0
  %855 = vmatprep.mubr.f32.mxu0 0.0
  %856 = vmatmul.mubr.f32.gmra.mxu0 %v619
  %v857 = vpop.f32.mrf.mxu0
  %v858 = vadd.f32 0.0, %v857
  %v859 = vpop.f32.mrf.mxu0
  %860 = vmatprep.mubr.f32.mxu0 0.0
  %861 = vmatmul.mubr.f32.gmra.mxu0 %v622
  %v862 = vpop.f32.mrf.mxu0
  %v863 = vadd.f32 0.0, %v862
  %v864 = vpop.f32.mrf.mxu0
  %865 = vmatprep.mubr.f32.mxu0 0.0
  %866 = vmatmul.mubr.f32.gmra.mxu0 %v625
  %v867 = vpop.f32.mrf.mxu0
  %v868 = vadd.f32 0.0, %v867
  %v869 = vpop.f32.mrf.mxu0
  %870 = vmatprep.mubr.f32.mxu0 0.0
  %871 = vmatmul.mubr.f32.gmra.mxu0 %v628
  %v872 = vpop.f32.mrf.mxu0
  %v873 = vadd.f32 0.0, %v872
  %v874 = vpop.f32.mrf.mxu0
  %875 = vmatprep.mubr.f32.mxu0 0.0
  %876 = vmatmul.mubr.f32.gmra.mxu0 %v631
  %v877 = vpop.f32.mrf.mxu0
  %v878 = vadd.f32 0.0, %v877
  %v879 = vpop.f32.mrf.mxu0
  %880 = vmatprep.mubr.f32.mxu0 0.0
  %881 = vmatmul.mubr.f32.gmra.mxu0 %v634
  %v882 = vpop.f32.mrf.mxu0
  %v883 = vadd.f32 0.0, %v882
  %v884 = vpop.f32.mrf.mxu0
  %885 = vmatprep.mubr.f32.mxu0 0.0
  %886 = vmatmul.mubr.f32.gmra.mxu0 %v637
  %v887 = vpop.f32.mrf.mxu0
  %v888 = vadd.f32 0.0, %v887
  %v889 = vpop.f32.mrf.mxu0
  %890 = vmatprep.mubr.f32.mxu0 0.0
  %891 = vmatmul.mubr.f32.gmra.mxu0 %v640
  %v892 = vpop.f32.mrf.mxu0
  %v893 = vadd.f32 0.0, %v892
  %v894 = vpop.f32.mrf.mxu0
  %895 = vmatprep.mubr.f32.mxu0 0.0
  %896 = vmatmul.mubr.f32.gmra.mxu0 %v643
  %v897 = vpop.f32.mrf.mxu0
  %v898 = vadd.f32 0.0, %v897
  %v899 = vpop.f32.mrf.mxu0
  %900 = vmatprep.mubr.f32.mxu0 0.0
  %901 = vmatmul.mubr.f32.gmra.mxu0 %v646
  %v902 = vpop.f32.mrf.mxu0
  %v903 = vadd.f32 0.0, %v902
  %v904 = vpop.f32.mrf.mxu0
  %905 = vmatprep.mubr.f32.mxu0 0.0
  %906 = vmatmul.mubr.f32.gmra.mxu0 %v649
  %v907 = vpop.f32.mrf.mxu0
  %v908 = vadd.f32 0.0, %v907
  %v909 = vpop.f32.mrf.mxu0
  %910 = vmatprep.mubr.f32.mxu0 0.0
  %911 = vmatmul.mubr.f32.gmra.mxu0 %v652
  %v912 = vpop.f32.mrf.mxu0
  %v913 = vadd.f32 0.0, %v912
  %v914 = vpop.f32.mrf.mxu0
  %915 = vmatprep.mubr.f32.mxu0 0.0
  %916 = vmatmul.mubr.f32.gmra.mxu0 %v655
  %v917 = vpop.f32.mrf.mxu0
  %v918 = vadd.f32 0.0, %v917
  %v919 = vpop.f32.mrf.mxu0
  %920 = vmatprep.mubr.f32.mxu0 0.0
  %921 = vmatmul.mubr.f32.gmra.mxu0 %v658
  %v922 = vpop.f32.mrf.mxu0
  %v923 = vadd.f32 0.0, %v922
  %v924 = vpop.f32.mrf.mxu0
  %925 = vmatprep.mubr.f32.mxu0 0.0
  %926 = vmatmul.mubr.f32.gmra.mxu0 %v661
  %v927 = vpop.f32.mrf.mxu0
  %v928 = vadd.f32 0.0, %v927
  %v929 = vpop.f32.mrf.mxu0
  %930 = vmatprep.mubr.f32.mxu0 0.0
  %931 = vmatmul.mubr.f32.gmra.mxu0 %v664
  %v932 = vpop.f32.mrf.mxu0
  %v933 = vadd.f32 0.0, %v932
  %v934 = vpop.f32.mrf.mxu0
  %935 = vmatprep.mubr.f32.mxu0 0.0
  %936 = vmatmul.mubr.f32.gmra.mxu0 %v667
  %v937 = vpop.f32.mrf.mxu0
  %v938 = vadd.f32 0.0, %v937
  %v939 = vpop.f32.mrf.mxu0
  %940 = vmatprep.mubr.f32.mxu0 0.0
  %941 = vmatmul.mubr.f32.gmra.mxu0 %v670
  %v942 = vpop.f32.mrf.mxu0
  %v943 = vadd.f32 0.0, %v942
  %v944 = vpop.f32.mrf.mxu0
  %945 = vmatprep.mubr.f32.mxu0 0.0
  %946 = vmatmul.mubr.f32.gmra.mxu0 %v673
  %v947 = vpop.f32.mrf.mxu0
  %v948 = vadd.f32 0.0, %v947
  %v949 = vpop.f32.mrf.mxu0
  %950 = vmatprep.mubr.f32.mxu0 0.0
  %951 = vmatmul.mubr.f32.gmra.mxu0 %v676
  %v952 = vpop.f32.mrf.mxu0
  %v953 = vadd.f32 0.0, %v952
  %v954 = vpop.f32.mrf.mxu0
  %955 = vmatprep.mubr.f32.mxu0 0.0
  %956 = vmatmul.mubr.f32.gmra.mxu0 %v679
  %v957 = vpop.f32.mrf.mxu0
  %v958 = vadd.f32 0.0, %v957
  %v959 = vpop.f32.mrf.mxu0
  %960 = vmatprep.mubr.f32.mxu0 0.0
  %961 = vmatmul.mubr.f32.gmra.mxu0 %v682
  %v962 = vpop.f32.mrf.mxu0
  %v963 = vadd.f32 0.0, %v962
  %v964 = vpop.f32.mrf.mxu0
  %965 = vmatprep.mubr.f32.mxu0 0.0
  %966 = vmatmul.mubr.f32.gmra.mxu0 %v685
  %v967 = vpop.f32.mrf.mxu0
  %v968 = vadd.f32 0.0, %v967
  %v969 = vpop.f32.mrf.mxu0
  %970 = vmatprep.mubr.f32.mxu0 0.0
  %971 = vmatmul.mubr.f32.gmra.mxu0 %v688
  %v972 = vpop.f32.mrf.mxu0
  %v973 = vadd.f32 0.0, %v972
  %v974 = vpop.f32.mrf.mxu0
  %975 = vmatprep.mubr.f32.mxu0 0.0
  %976 = vmatmul.mubr.f32.gmra.mxu0 %v691
  %v977 = vpop.f32.mrf.mxu0
  %v978 = vadd.f32 0.0, %v977
  %v979 = vpop.f32.mrf.mxu0
  %980 = vmatprep.mubr.f32.mxu0 0.0
  %981 = vmatmul.mubr.f32.gmra.mxu0 %v694
  %v982 = vpop.f32.mrf.mxu0
  %v983 = vadd.f32 0.0, %v982
  %v984 = vpop.f32.mrf.mxu0
  %985 = vmatprep.mubr.f32.mxu0 0.0
  %986 = vmatmul.mubr.f32.gmra.mxu0 %v697
  %v987 = vpop.f32.mrf.mxu0
  %v988 = vadd.f32 0.0, %v987
  %v989 = vpop.f32.mrf.mxu0
  %990 = vmatprep.mubr.f32.mxu0 0.0
  %991 = vmatmul.mubr.f32.gmra.mxu0 %v700
  %v992 = vpop.f32.mrf.mxu0
  %v993 = vadd.f32 0.0, %v992
  %v994 = vpop.f32.mrf.mxu0
  %995 = vmatprep.mubr.f32.mxu0 0.0
  %996 = vmatmul.mubr.f32.gmra.mxu0 %v703
  %v997 = vpop.f32.mrf.mxu0
  %v998 = vadd.f32 0.0, %v997
  %v999 = vpop.f32.mrf.mxu0
  %1000 = vmatprep.mubr.f32.mxu0 0.0
  %1001 = vmatmul.mubr.f32.gmra.mxu0 %v706
  %v1002 = vpop.f32.mrf.mxu0
  %v1003 = vadd.f32 0.0, %v1002
  %v1004 = vpop.f32.mrf.mxu0
  %1005 = vmatprep.mubr.f32.mxu0 0.0
  %1006 = vmatmul.mubr.f32.gmra.mxu0 %v709
  %v1007 = vpop.f32.mrf.mxu0
  %v1008 = vadd.f32 0.0, %v1007
  %v1009 = vpop.f32.mrf.mxu0
  %1010 = vmatprep.mubr.f32.mxu0 0.0
  %1011 = vmatmul.mubr.f32.gmra.mxu0 %v712
  %v1012 = vpop.f32.mrf.mxu0
  %v1013 = vadd.f32 0.0, %v1012
  %v1014 = vpop.f32.mrf.mxu0
  %1015 = vmatprep.mubr.f32.mxu0 0.0
  %1016 = vmatmul.mubr.f32.gmra.mxu0 %v715
  %v1017 = vpop.f32.mrf.mxu0
  %v1018 = vadd.f32 0.0, %v1017
  %v1019 = vpop.f32.mrf.mxu0
  %1020 = vmatprep.mubr.f32.mxu0 0.0
  %1021 = vmatmul.mubr.f32.gmra.mxu0 %v718
  %v1022 = vpop.f32.mrf.mxu0
  %v1023 = vadd.f32 0.0, %v1022
  %v1024 = vpop.f32.mrf.mxu0
  %1025 = vmatprep.mubr.f32.mxu0 0.0
  %1026 = vmatmul.mubr.f32.gmra.mxu0 %v721
  %v1027 = vpop.f32.mrf.mxu0
  %v1028 = vadd.f32 0.0, %v1027
  %v1029 = vpop.f32.mrf.mxu0
  %1030 = vmatprep.mubr.f32.mxu0 0.0
  %1031 = vmatmul.mubr.f32.gmra.mxu0 %v724
  %v1032 = vpop.f32.mrf.mxu0
  %v1033 = vadd.f32 0.0, %v1032
  %v1034 = vpop.f32.mrf.mxu0
  %1035 = vdwg.mxu0
  %s1036 = scalar_lea.vmem %s0, 784
  %v1037 = vld [vmem:[%s1036] sm:$0xff]
  %v1038 = vld [vmem:[%s1036 + $0x8] sm:$0xff]
  %v1039 = vld [vmem:[%s1036 + $0x10] sm:$0xff]
  %v1040 = vld [vmem:[%s1036 + $0x18] sm:$0xff]
  %v1041 = vld [vmem:[%s1036 + $0x20] sm:$0xff]
  %v1042 = vld [vmem:[%s1036 + $0x28] sm:$0xff]
  %v1043 = vld [vmem:[%s1036 + $0x30] sm:$0xff]
  %v1044 = vld [vmem:[%s1036 + $0x38] sm:$0xff]
  %v1045 = vld [vmem:[%s1036 + $0x40] sm:$0xff]
  %v1046 = vld [vmem:[%s1036 + $0x48] sm:$0xff]
  %v1047 = vld [vmem:[%s1036 + $0x50] sm:$0xff]
  %v1048 = vld [vmem:[%s1036 + $0x58] sm:$0xff]
  %v1049 = vld [vmem:[%s1036 + $0x60] sm:$0xff]
  %v1050 = vld [vmem:[%s1036 + $0x68] sm:$0xff]
  %v1051 = vld [vmem:[%s1036 + $0x70] sm:$0xff]
  %v1052 = vld [vmem:[%s1036 + $0x78] sm:$0xff]
  %v1053 = vld [vmem:[%s1036 + $0x80] sm:$0xff]
  %v1054 = vld [vmem:[%s1036 + $0x88] sm:$0xff]
  %v1055 = vld [vmem:[%s1036 + $0x90] sm:$0xff]
  %v1056 = vld [vmem:[%s1036 + $0x98] sm:$0xff]
  %v1057 = vld [vmem:[%s1036 + $0xa0] sm:$0xff]
  %v1058 = vld [vmem:[%s1036 + $0xa8] sm:$0xff]
  %v1059 = vld [vmem:[%s1036 + $0xb0] sm:$0xff]
  %v1060 = vld [vmem:[%s1036 + $0xb8] sm:$0xff]
  %v1061 = vld [vmem:[%s1036 + $0xc0] sm:$0xff]
  %v1062 = vld [vmem:[%s1036 + $0xc8] sm:$0xff]
  %v1063 = vld [vmem:[%s1036 + $0xd0] sm:$0xff]
  %v1064 = vld [vmem:[%s1036 + $0xd8] sm:$0xff]
  %v1065 = vld [vmem:[%s1036 + $0xe0] sm:$0xff]
  %v1066 = vld [vmem:[%s1036 + $0xe8] sm:$0xff]
  %v1067 = vld [vmem:[%s1036 + $0xf0] sm:$0xff]
  %v1068 = vld [vmem:[%s1036 + $0xf8] sm:$0xff]
  %v1069 = vld [vmem:[%s1036 + $0x100] sm:$0xff]
  %v1070 = vld [vmem:[%s1036 + $0x108] sm:$0xff]
  %v1071 = vld [vmem:[%s1036 + $0x110] sm:$0xff]
  %v1072 = vld [vmem:[%s1036 + $0x118] sm:$0xff]
  %v1073 = vld [vmem:[%s1036 + $0x120] sm:$0xff]
  %v1074 = vld [vmem:[%s1036 + $0x128] sm:$0xff]
  %v1075 = vld [vmem:[%s1036 + $0x130] sm:$0xff]
  %v1076 = vld [vmem:[%s1036 + $0x138] sm:$0xff]
  %v1077 = vld [vmem:[%s1036 + $0x140] sm:$0xff]
  %v1078 = vld [vmem:[%s1036 + $0x148] sm:$0xff]
  %v1079 = vld [vmem:[%s1036 + $0x150] sm:$0xff]
  %v1080 = vld [vmem:[%s1036 + $0x158] sm:$0xff]
  %v1081 = vld [vmem:[%s1036 + $0x160] sm:$0xff]
  %v1082 = vld [vmem:[%s1036 + $0x168] sm:$0xff]
  %v1083 = vld [vmem:[%s1036 + $0x170] sm:$0xff]
  %v1084 = vld [vmem:[%s1036 + $0x178] sm:$0xff]
  %v1085 = vld [vmem:[%s1036 + $0x180] sm:$0xff]
  %v1087 = vsel %vm67, %v1037, 0
  %v1090 = vsel %vm67, %v1038, 0
  %v1093 = vsel %vm67, %v1039, 0
  %v1096 = vsel %vm67, %v1040, 0
  %v1099 = vsel %vm67, %v1041, 0
  %v1102 = vsel %vm67, %v1042, 0
  %v1105 = vsel %vm67, %v1043, 0
  %v1108 = vsel %vm67, %v1044, 0
  %v1111 = vsel %vm67, %v1045, 0
  %v1114 = vsel %vm67, %v1046, 0
  %v1117 = vsel %vm67, %v1047, 0
  %v1120 = vsel %vm67, %v1048, 0
  %v1123 = vsel %vm67, %v1049, 0
  %v1126 = vsel %vm67, %v1050, 0
  %v1129 = vsel %vm67, %v1051, 0
  %v1132 = vsel %vm67, %v1052, 0
  %v1135 = vsel %vm67, %v1053, 0
  %v1138 = vsel %vm67, %v1054, 0
  %v1141 = vsel %vm67, %v1055, 0
  %v1144 = vsel %vm67, %v1056, 0
  %v1147 = vsel %vm67, %v1057, 0
  %v1150 = vsel %vm67, %v1058, 0
  %v1153 = vsel %vm67, %v1059, 0
  %v1156 = vsel %vm67, %v1060, 0
  %v1159 = vsel %vm67, %v1061, 0
  %v1162 = vsel %vm67, %v1062, 0
  %v1165 = vsel %vm67, %v1063, 0
  %v1168 = vsel %vm67, %v1064, 0
  %v1171 = vsel %vm67, %v1065, 0
  %v1174 = vsel %vm67, %v1066, 0
  %v1177 = vsel %vm67, %v1067, 0
  %v1180 = vsel %vm67, %v1068, 0
  %v1183 = vsel %vm67, %v1069, 0
  %v1186 = vsel %vm67, %v1070, 0
  %v1189 = vsel %vm67, %v1071, 0
  %v1192 = vsel %vm67, %v1072, 0
  %v1195 = vsel %vm67, %v1073, 0
  %v1198 = vsel %vm67, %v1074, 0
  %v1201 = vsel %vm67, %v1075, 0
  %v1204 = vsel %vm67, %v1076, 0
  %v1207 = vsel %vm67, %v1077, 0
  %v1210 = vsel %vm67, %v1078, 0
  %v1213 = vsel %vm67, %v1079, 0
  %v1216 = vsel %vm67, %v1080, 0
  %v1219 = vsel %vm67, %v1081, 0
  %v1222 = vsel %vm67, %v1082, 0
  %v1225 = vsel %vm67, %v1083, 0
  %v1228 = vsel %vm67, %v1084, 0
  %v1231 = vsel %vm67, %v1085, 0
  %1233 = vmatprep.subr.mxu0 0.0
  %1234 = vmatpush1.msra.mxu0 0.0
  %1235 = vmatprep.subr.mxu0 0.0
  %1236 = vmatpush1.msra.mxu0 0.0
  %1237 = vmatprep.subr.mxu0 0.0
  %1238 = vmatpush1.msra.mxu0 0.0
  %1239 = vmatprep.subr.mxu0 0.0
  %1240 = vmatpush1.msra.mxu0 0.0
  %1241 = vmatprep.subr.mxu0 0.0
  %1242 = vmatpush1.msra.mxu0 0.0
  %1243 = vmatprep.subr.mxu0 0.0
  %1244 = vmatpush1.msra.mxu0 0.0
  %1245 = vmatprep.subr.mxu0 0.0
  %1246 = vmatpush1.msra.mxu0 0.0
  %1247 = vmatprep.subr.mxu0 0.0
  %1248 = vmatpush1.msra.mxu0 0.0
  %1249 = vmatprep.subr.mxu0 0.0
  %1250 = vmatpush1.msra.mxu0 0.0
  %1251 = vmatprep.subr.mxu0 0.0
  %1252 = vmatpush1.msra.mxu0 0.0
  %1253 = vmatprep.subr.mxu0 0.0
  %1254 = vmatpush1.msra.mxu0 0.0
  %1255 = vmatprep.subr.mxu0 0.0
  %1256 = vmatpush1.msra.mxu0 0.0
  %1257 = vmatprep.subr.mxu0 0.0
  %1258 = vmatpush1.msra.mxu0 %v217
  %1259 = vmatprep.subr.mxu0 0.0
  %1260 = vmatpush1.msra.mxu0 %v16
  %1261 = vmatprep.subr.mxu0 0.0
  %1262 = vmatpush1.msra.mxu0 %v15
  %1263 = vmatprep.subr.mxu0 0.0
  %1264 = vmatpush1.msra.mxu0 %v14
  %1265 = vmatprep.subr.mxu0 0.0
  %1266 = vmatpush2.msra.mxu0 0.0
  %1267 = vmatprep.subr.mxu0 0.0
  %1268 = vmatpush2.msra.mxu0 0.0
  %1269 = vmatprep.subr.mxu0 0.0
  %1270 = vmatpush2.msra.mxu0 0.0
  %1271 = vmatprep.subr.mxu0 0.0
  %1272 = vmatpush2.msra.mxu0 0.0
  %1273 = vmatprep.subr.mxu0 0.0
  %1274 = vmatpush2.msra.mxu0 0.0
  %1275 = vmatprep.subr.mxu0 0.0
  %1276 = vmatpush2.msra.mxu0 0.0
  %1277 = vmatprep.subr.mxu0 0.0
  %1278 = vmatpush2.msra.mxu0 0.0
  %1279 = vmatprep.subr.mxu0 0.0
  %1280 = vmatpush2.msra.mxu0 0.0
  %1281 = vmatprep.subr.mxu0 0.0
  %1282 = vmatpush2.msra.mxu0 0.0
  %1283 = vmatprep.subr.mxu0 0.0
  %1284 = vmatpush2.msra.mxu0 0.0
  %1285 = vmatprep.subr.mxu0 0.0
  %1286 = vmatpush2.msra.mxu0 0.0
  %1287 = vmatprep.subr.mxu0 0.0
  %1288 = vmatpush2.msra.mxu0 0.0
  %1289 = vmatprep.subr.mxu0 0.0
  %1290 = vmatpush2.msra.mxu0 0.0
  %1291 = vmatprep.subr.mxu0 0.0
  %1292 = vmatpush2.msra.mxu0 0.0
  %1293 = vmatprep.subr.mxu0 0.0
  %1294 = vmatpush2.msra.mxu0 0.0
  %1295 = vmatprep.subr.mxu0 0.0
  %1296 = vmatpush2.msra.mxu0 0.0
  %1297 = vmatprep.mubr.f32.mxu0 0.0
  %1298 = vmatmul.mubr.f32.gmra.mxu0 %v1087
  %v1299 = vpop.f32.mrf.mxu0
  %v1300 = vadd.f32 0.0, %v1299
  %v1301 = vpop.f32.mrf.mxu0
  %1302 = vmatprep.mubr.f32.mxu0 0.0
  %1303 = vmatmul.mubr.f32.gmra.mxu0 %v1090
  %v1304 = vpop.f32.mrf.mxu0
  %v1305 = vadd.f32 0.0, %v1304
  %v1306 = vpop.f32.mrf.mxu0
  %1307 = vmatprep.mubr.f32.mxu0 0.0
  %1308 = vmatmul.mubr.f32.gmra.mxu0 %v1093
  %v1309 = vpop.f32.mrf.mxu0
  %v1310 = vadd.f32 0.0, %v1309
  %v1311 = vpop.f32.mrf.mxu0
  %1312 = vmatprep.mubr.f32.mxu0 0.0
  %1313 = vmatmul.mubr.f32.gmra.mxu0 %v1096
  %v1314 = vpop.f32.mrf.mxu0
  %v1315 = vadd.f32 0.0, %v1314
  %v1316 = vpop.f32.mrf.mxu0
  %1317 = vmatprep.mubr.f32.mxu0 0.0
  %1318 = vmatmul.mubr.f32.gmra.mxu0 %v1099
  %v1319 = vpop.f32.mrf.mxu0
  %v1320 = vadd.f32 0.0, %v1319
  %v1321 = vpop.f32.mrf.mxu0
  %1322 = vmatprep.mubr.f32.mxu0 0.0
  %1323 = vmatmul.mubr.f32.gmra.mxu0 %v1102
  %v1324 = vpop.f32.mrf.mxu0
  %v1325 = vadd.f32 0.0, %v1324
  %v1326 = vpop.f32.mrf.mxu0
  %1327 = vmatprep.mubr.f32.mxu0 0.0
  %1328 = vmatmul.mubr.f32.gmra.mxu0 %v1105
  %v1329 = vpop.f32.mrf.mxu0
  %v1330 = vadd.f32 0.0, %v1329
  %v1331 = vpop.f32.mrf.mxu0
  %1332 = vmatprep.mubr.f32.mxu0 0.0
  %1333 = vmatmul.mubr.f32.gmra.mxu0 %v1108
  %v1334 = vpop.f32.mrf.mxu0
  %v1335 = vadd.f32 0.0, %v1334
  %v1336 = vpop.f32.mrf.mxu0
  %1337 = vmatprep.mubr.f32.mxu0 0.0
  %1338 = vmatmul.mubr.f32.gmra.mxu0 %v1111
  %v1339 = vpop.f32.mrf.mxu0
  %v1340 = vadd.f32 0.0, %v1339
  %v1341 = vpop.f32.mrf.mxu0
  %1342 = vmatprep.mubr.f32.mxu0 0.0
  %1343 = vmatmul.mubr.f32.gmra.mxu0 %v1114
  %v1344 = vpop.f32.mrf.mxu0
  %v1345 = vadd.f32 0.0, %v1344
  %v1346 = vpop.f32.mrf.mxu0
  %1347 = vmatprep.mubr.f32.mxu0 0.0
  %1348 = vmatmul.mubr.f32.gmra.mxu0 %v1117
  %v1349 = vpop.f32.mrf.mxu0
  %v1350 = vadd.f32 0.0, %v1349
  %v1351 = vpop.f32.mrf.mxu0
  %1352 = vmatprep.mubr.f32.mxu0 0.0
  %1353 = vmatmul.mubr.f32.gmra.mxu0 %v1120
  %v1354 = vpop.f32.mrf.mxu0
  %v1355 = vadd.f32 0.0, %v1354
  %v1356 = vpop.f32.mrf.mxu0
  %1357 = vmatprep.mubr.f32.mxu0 0.0
  %1358 = vmatmul.mubr.f32.gmra.mxu0 %v1123
  %v1359 = vpop.f32.mrf.mxu0
  %v1360 = vadd.f32 0.0, %v1359
  %v1361 = vpop.f32.mrf.mxu0
  %1362 = vmatprep.mubr.f32.mxu0 0.0
  %1363 = vmatmul.mubr.f32.gmra.mxu0 %v1126
  %v1364 = vpop.f32.mrf.mxu0
  %v1365 = vadd.f32 0.0, %v1364
  %v1366 = vpop.f32.mrf.mxu0
  %1367 = vmatprep.mubr.f32.mxu0 0.0
  %1368 = vmatmul.mubr.f32.gmra.mxu0 %v1129
  %v1369 = vpop.f32.mrf.mxu0
  %v1370 = vadd.f32 0.0, %v1369
  %v1371 = vpop.f32.mrf.mxu0
  %1372 = vmatprep.mubr.f32.mxu0 0.0
  %1373 = vmatmul.mubr.f32.gmra.mxu0 %v1132
  %v1374 = vpop.f32.mrf.mxu0
  %v1375 = vadd.f32 0.0, %v1374
  %v1376 = vpop.f32.mrf.mxu0
  %1377 = vmatprep.mubr.f32.mxu0 0.0
  %1378 = vmatmul.mubr.f32.gmra.mxu0 %v1135
  %v1379 = vpop.f32.mrf.mxu0
  %v1380 = vadd.f32 0.0, %v1379
  %v1381 = vpop.f32.mrf.mxu0
  %1382 = vmatprep.mubr.f32.mxu0 0.0
  %1383 = vmatmul.mubr.f32.gmra.mxu0 %v1138
  %v1384 = vpop.f32.mrf.mxu0
  %v1385 = vadd.f32 0.0, %v1384
  %v1386 = vpop.f32.mrf.mxu0
  %1387 = vmatprep.mubr.f32.mxu0 0.0
  %1388 = vmatmul.mubr.f32.gmra.mxu0 %v1141
  %v1389 = vpop.f32.mrf.mxu0
  %v1390 = vadd.f32 0.0, %v1389
  %v1391 = vpop.f32.mrf.mxu0
  %1392 = vmatprep.mubr.f32.mxu0 0.0
  %1393 = vmatmul.mubr.f32.gmra.mxu0 %v1144
  %v1394 = vpop.f32.mrf.mxu0
  %v1395 = vadd.f32 0.0, %v1394
  %v1396 = vpop.f32.mrf.mxu0
  %1397 = vmatprep.mubr.f32.mxu0 0.0
  %1398 = vmatmul.mubr.f32.gmra.mxu0 %v1147
  %v1399 = vpop.f32.mrf.mxu0
  %v1400 = vadd.f32 0.0, %v1399
  %v1401 = vpop.f32.mrf.mxu0
  %1402 = vmatprep.mubr.f32.mxu0 0.0
  %1403 = vmatmul.mubr.f32.gmra.mxu0 %v1150
  %v1404 = vpop.f32.mrf.mxu0
  %v1405 = vadd.f32 0.0, %v1404
  %v1406 = vpop.f32.mrf.mxu0
  %1407 = vmatprep.mubr.f32.mxu0 0.0
  %1408 = vmatmul.mubr.f32.gmra.mxu0 %v1153
  %v1409 = vpop.f32.mrf.mxu0
  %v1410 = vadd.f32 0.0, %v1409
  %v1411 = vpop.f32.mrf.mxu0
  %1412 = vmatprep.mubr.f32.mxu0 0.0
  %1413 = vmatmul.mubr.f32.gmra.mxu0 %v1156
  %v1414 = vpop.f32.mrf.mxu0
  %v1415 = vadd.f32 0.0, %v1414
  %v1416 = vpop.f32.mrf.mxu0
  %1417 = vmatprep.mubr.f32.mxu0 0.0
  %1418 = vmatmul.mubr.f32.gmra.mxu0 %v1159
  %v1419 = vpop.f32.mrf.mxu0
  %v1420 = vadd.f32 0.0, %v1419
  %v1421 = vpop.f32.mrf.mxu0
  %1422 = vmatprep.mubr.f32.mxu0 0.0
  %1423 = vmatmul.mubr.f32.gmra.mxu0 %v1162
  %v1424 = vpop.f32.mrf.mxu0
  %v1425 = vadd.f32 0.0, %v1424
  %v1426 = vpop.f32.mrf.mxu0
  %1427 = vmatprep.mubr.f32.mxu0 0.0
  %1428 = vmatmul.mubr.f32.gmra.mxu0 %v1165
  %v1429 = vpop.f32.mrf.mxu0
  %v1430 = vadd.f32 0.0, %v1429
  %v1431 = vpop.f32.mrf.mxu0
  %1432 = vmatprep.mubr.f32.mxu0 0.0
  %1433 = vmatmul.mubr.f32.gmra.mxu0 %v1168
  %v1434 = vpop.f32.mrf.mxu0
  %v1435 = vadd.f32 0.0, %v1434
  %v1436 = vpop.f32.mrf.mxu0
  %1437 = vmatprep.mubr.f32.mxu0 0.0
  %1438 = vmatmul.mubr.f32.gmra.mxu0 %v1171
  %v1439 = vpop.f32.mrf.mxu0
  %v1440 = vadd.f32 0.0, %v1439
  %v1441 = vpop.f32.mrf.mxu0
  %1442 = vmatprep.mubr.f32.mxu0 0.0
  %1443 = vmatmul.mubr.f32.gmra.mxu0 %v1174
  %v1444 = vpop.f32.mrf.mxu0
  %v1445 = vadd.f32 0.0, %v1444
  %v1446 = vpop.f32.mrf.mxu0
  %1447 = vmatprep.mubr.f32.mxu0 0.0
  %1448 = vmatmul.mubr.f32.gmra.mxu0 %v1177
  %v1449 = vpop.f32.mrf.mxu0
  %v1450 = vadd.f32 0.0, %v1449
  %v1451 = vpop.f32.mrf.mxu0
  %1452 = vmatprep.mubr.f32.mxu0 0.0
  %1453 = vmatmul.mubr.f32.gmra.mxu0 %v1180
  %v1454 = vpop.f32.mrf.mxu0
  %v1455 = vadd.f32 0.0, %v1454
  %v1456 = vpop.f32.mrf.mxu0
  %1457 = vmatprep.mubr.f32.mxu0 0.0
  %1458 = vmatmul.mubr.f32.gmra.mxu0 %v1183
  %v1459 = vpop.f32.mrf.mxu0
  %v1460 = vadd.f32 0.0, %v1459
  %v1461 = vpop.f32.mrf.mxu0
  %1462 = vmatprep.mubr.f32.mxu0 0.0
  %1463 = vmatmul.mubr.f32.gmra.mxu0 %v1186
  %v1464 = vpop.f32.mrf.mxu0
  %v1465 = vadd.f32 0.0, %v1464
  %v1466 = vpop.f32.mrf.mxu0
  %1467 = vmatprep.mubr.f32.mxu0 0.0
  %1468 = vmatmul.mubr.f32.gmra.mxu0 %v1189
  %v1469 = vpop.f32.mrf.mxu0
  %v1470 = vadd.f32 0.0, %v1469
  %v1471 = vpop.f32.mrf.mxu0
  %1472 = vmatprep.mubr.f32.mxu0 0.0
  %1473 = vmatmul.mubr.f32.gmra.mxu0 %v1192
  %v1474 = vpop.f32.mrf.mxu0
  %v1475 = vadd.f32 0.0, %v1474
  %v1476 = vpop.f32.mrf.mxu0
  %1477 = vmatprep.mubr.f32.mxu0 0.0
  %1478 = vmatmul.mubr.f32.gmra.mxu0 %v1195
  %v1479 = vpop.f32.mrf.mxu0
  %v1480 = vadd.f32 0.0, %v1479
  %v1481 = vpop.f32.mrf.mxu0
  %1482 = vmatprep.mubr.f32.mxu0 0.0
  %1483 = vmatmul.mubr.f32.gmra.mxu0 %v1198
  %v1484 = vpop.f32.mrf.mxu0
  %v1485 = vadd.f32 0.0, %v1484
  %v1486 = vpop.f32.mrf.mxu0
  %1487 = vmatprep.mubr.f32.mxu0 0.0
  %1488 = vmatmul.mubr.f32.gmra.mxu0 %v1201
  %v1489 = vpop.f32.mrf.mxu0
  %v1490 = vadd.f32 0.0, %v1489
  %v1491 = vpop.f32.mrf.mxu0
  %1492 = vmatprep.mubr.f32.mxu0 0.0
  %1493 = vmatmul.mubr.f32.gmra.mxu0 %v1204
  %v1494 = vpop.f32.mrf.mxu0
  %v1495 = vadd.f32 0.0, %v1494
  %v1496 = vpop.f32.mrf.mxu0
  %1497 = vmatprep.mubr.f32.mxu0 0.0
  %1498 = vmatmul.mubr.f32.gmra.mxu0 %v1207
  %v1499 = vpop.f32.mrf.mxu0
  %v1500 = vadd.f32 0.0, %v1499
  %v1501 = vpop.f32.mrf.mxu0
  %1502 = vmatprep.mubr.f32.mxu0 0.0
  %1503 = vmatmul.mubr.f32.gmra.mxu0 %v1210
  %v1504 = vpop.f32.mrf.mxu0
  %v1505 = vadd.f32 0.0, %v1504
  %v1506 = vpop.f32.mrf.mxu0
  %1507 = vmatprep.mubr.f32.mxu0 0.0
  %1508 = vmatmul.mubr.f32.gmra.mxu0 %v1213
  %v1509 = vpop.f32.mrf.mxu0
  %v1510 = vadd.f32 0.0, %v1509
  %v1511 = vpop.f32.mrf.mxu0
  %1512 = vmatprep.mubr.f32.mxu0 0.0
  %1513 = vmatmul.mubr.f32.gmra.mxu0 %v1216
  %v1514 = vpop.f32.mrf.mxu0
  %v1515 = vadd.f32 0.0, %v1514
  %v1516 = vpop.f32.mrf.mxu0
  %1517 = vmatprep.mubr.f32.mxu0 0.0
  %1518 = vmatmul.mubr.f32.gmra.mxu0 %v1219
  %v1519 = vpop.f32.mrf.mxu0
  %v1520 = vadd.f32 0.0, %v1519
  %v1521 = vpop.f32.mrf.mxu0
  %1522 = vmatprep.mubr.f32.mxu0 0.0
  %1523 = vmatmul.mubr.f32.gmra.mxu0 %v1222
  %v1524 = vpop.f32.mrf.mxu0
  %v1525 = vadd.f32 0.0, %v1524
  %v1526 = vpop.f32.mrf.mxu0
  %1527 = vmatprep.mubr.f32.mxu0 0.0
  %1528 = vmatmul.mubr.f32.gmra.mxu0 %v1225
  %v1529 = vpop.f32.mrf.mxu0
  %v1530 = vadd.f32 0.0, %v1529
  %v1531 = vpop.f32.mrf.mxu0
  %1532 = vmatprep.mubr.f32.mxu0 0.0
  %1533 = vmatmul.mubr.f32.gmra.mxu0 %v1228
  %v1534 = vpop.f32.mrf.mxu0
  %v1535 = vadd.f32 0.0, %v1534
  %v1536 = vpop.f32.mrf.mxu0
  %1537 = vmatprep.mubr.f32.mxu0 0.0
  %1538 = vmatmul.mubr.f32.gmra.mxu0 %v1231
  %v1539 = vpop.f32.mrf.mxu0
  %v1540 = vadd.f32 0.0, %v1539
  %v1541 = vpop.f32.mrf.mxu0
  %1542 = vdwg.mxu0
  %s1543 = scalar_lea.vmem %s0, 1176
  %v1544 = vld [vmem:[%s1543] sm:$0xff]
  %v1545 = vld [vmem:[%s1543 + $0x8] sm:$0xff]
  %v1546 = vld [vmem:[%s1543 + $0x10] sm:$0xff]
  %v1547 = vld [vmem:[%s1543 + $0x18] sm:$0xff]
  %v1548 = vld [vmem:[%s1543 + $0x20] sm:$0xff]
  %v1549 = vld [vmem:[%s1543 + $0x28] sm:$0xff]
  %v1550 = vld [vmem:[%s1543 + $0x30] sm:$0xff]
  %v1551 = vld [vmem:[%s1543 + $0x38] sm:$0xff]
  %v1552 = vld [vmem:[%s1543 + $0x40] sm:$0xff]
  %v1553 = vld [vmem:[%s1543 + $0x48] sm:$0xff]
  %v1554 = vld [vmem:[%s1543 + $0x50] sm:$0xff]
  %v1555 = vld [vmem:[%s1543 + $0x58] sm:$0xff]
  %v1556 = vld [vmem:[%s1543 + $0x60] sm:$0xff]
  %v1557 = vld [vmem:[%s1543 + $0x68] sm:$0xff]
  %v1558 = vld [vmem:[%s1543 + $0x70] sm:$0xff]
  %v1559 = vld [vmem:[%s1543 + $0x78] sm:$0xff]
  %v1560 = vld [vmem:[%s1543 + $0x80] sm:$0xff]
  %v1561 = vld [vmem:[%s1543 + $0x88] sm:$0xff]
  %v1562 = vld [vmem:[%s1543 + $0x90] sm:$0xff]
  %v1563 = vld [vmem:[%s1543 + $0x98] sm:$0xff]
  %v1564 = vld [vmem:[%s1543 + $0xa0] sm:$0xff]
  %v1565 = vld [vmem:[%s1543 + $0xa8] sm:$0xff]
  %v1566 = vld [vmem:[%s1543 + $0xb0] sm:$0xff]
  %v1567 = vld [vmem:[%s1543 + $0xb8] sm:$0xff]
  %v1568 = vld [vmem:[%s1543 + $0xc0] sm:$0xff]
  %v1569 = vld [vmem:[%s1543 + $0xc8] sm:$0xff]
  %v1570 = vld [vmem:[%s1543 + $0xd0] sm:$0xff]
  %v1571 = vld [vmem:[%s1543 + $0xd8] sm:$0xff]
  %v1572 = vld [vmem:[%s1543 + $0xe0] sm:$0xff]
  %v1573 = vld [vmem:[%s1543 + $0xe8] sm:$0xff]
  %v1574 = vld [vmem:[%s1543 + $0xf0] sm:$0xff]
  %v1575 = vld [vmem:[%s1543 + $0xf8] sm:$0xff]
  %v1576 = vld [vmem:[%s1543 + $0x100] sm:$0xff]
  %v1577 = vld [vmem:[%s1543 + $0x108] sm:$0xff]
  %v1578 = vld [vmem:[%s1543 + $0x110] sm:$0xff]
  %v1579 = vld [vmem:[%s1543 + $0x118] sm:$0xff]
  %v1580 = vld [vmem:[%s1543 + $0x120] sm:$0xff]
  %v1581 = vld [vmem:[%s1543 + $0x128] sm:$0xff]
  %v1582 = vld [vmem:[%s1543 + $0x130] sm:$0xff]
  %v1583 = vld [vmem:[%s1543 + $0x138] sm:$0xff]
  %v1584 = vld [vmem:[%s1543 + $0x140] sm:$0xff]
  %v1585 = vld [vmem:[%s1543 + $0x148] sm:$0xff]
  %v1586 = vld [vmem:[%s1543 + $0x150] sm:$0xff]
  %v1587 = vld [vmem:[%s1543 + $0x158] sm:$0xff]
  %v1588 = vld [vmem:[%s1543 + $0x160] sm:$0xff]
  %v1589 = vld [vmem:[%s1543 + $0x168] sm:$0xff]
  %v1590 = vld [vmem:[%s1543 + $0x170] sm:$0xff]
  %v1591 = vld [vmem:[%s1543 + $0x178] sm:$0xff]
  %v1592 = vld [vmem:[%s1543 + $0x180] sm:$0xff]
  %v1594 = vsel %vm67, %v1544, 0
  %v1597 = vsel %vm67, %v1545, 0
  %v1600 = vsel %vm67, %v1546, 0
  %v1603 = vsel %vm67, %v1547, 0
  %v1606 = vsel %vm67, %v1548, 0
  %v1609 = vsel %vm67, %v1549, 0
  %v1612 = vsel %vm67, %v1550, 0
  %v1615 = vsel %vm67, %v1551, 0
  %v1618 = vsel %vm67, %v1552, 0
  %v1621 = vsel %vm67, %v1553, 0
  %v1624 = vsel %vm67, %v1554, 0
  %v1627 = vsel %vm67, %v1555, 0
  %v1630 = vsel %vm67, %v1556, 0
  %v1633 = vsel %vm67, %v1557, 0
  %v1636 = vsel %vm67, %v1558, 0
  %v1639 = vsel %vm67, %v1559, 0
  %v1642 = vsel %vm67, %v1560, 0
  %v1645 = vsel %vm67, %v1561, 0
  %v1648 = vsel %vm67, %v1562, 0
  %v1651 = vsel %vm67, %v1563, 0
  %v1654 = vsel %vm67, %v1564, 0
  %v1657 = vsel %vm67, %v1565, 0
  %v1660 = vsel %vm67, %v1566, 0
  %v1663 = vsel %vm67, %v1567, 0
  %v1666 = vsel %vm67, %v1568, 0
  %v1669 = vsel %vm67, %v1569, 0
  %v1672 = vsel %vm67, %v1570, 0
  %v1675 = vsel %vm67, %v1571, 0
  %v1678 = vsel %vm67, %v1572, 0
  %v1681 = vsel %vm67, %v1573, 0
  %v1684 = vsel %vm67, %v1574, 0
  %v1687 = vsel %vm67, %v1575, 0
  %v1690 = vsel %vm67, %v1576, 0
  %v1693 = vsel %vm67, %v1577, 0
  %v1696 = vsel %vm67, %v1578, 0
  %v1699 = vsel %vm67, %v1579, 0
  %v1702 = vsel %vm67, %v1580, 0
  %v1705 = vsel %vm67, %v1581, 0
  %v1708 = vsel %vm67, %v1582, 0
  %v1711 = vsel %vm67, %v1583, 0
  %v1714 = vsel %vm67, %v1584, 0
  %v1717 = vsel %vm67, %v1585, 0
  %v1720 = vsel %vm67, %v1586, 0
  %v1723 = vsel %vm67, %v1587, 0
  %v1726 = vsel %vm67, %v1588, 0
  %v1729 = vsel %vm67, %v1589, 0
  %v1732 = vsel %vm67, %v1590, 0
  %v1735 = vsel %vm67, %v1591, 0
  %v1738 = vsel %vm67, %v1592, 0
  %1740 = vmatprep.subr.mxu0 0.0
  %1741 = vmatpush1.msra.mxu0 0.0
  %1742 = vmatprep.subr.mxu0 0.0
  %1743 = vmatpush1.msra.mxu0 0.0
  %1744 = vmatprep.subr.mxu0 0.0
  %1745 = vmatpush1.msra.mxu0 0.0
  %1746 = vmatprep.subr.mxu0 0.0
  %1747 = vmatpush1.msra.mxu0 0.0
  %1748 = vmatprep.subr.mxu0 0.0
  %1749 = vmatpush1.msra.mxu0 0.0
  %1750 = vmatprep.subr.mxu0 0.0
  %1751 = vmatpush1.msra.mxu0 0.0
  %1752 = vmatprep.subr.mxu0 0.0
  %1753 = vmatpush1.msra.mxu0 0.0
  %1754 = vmatprep.subr.mxu0 0.0
  %1755 = vmatpush1.msra.mxu0 0.0
  %1756 = vmatprep.subr.mxu0 0.0
  %1757 = vmatpush1.msra.mxu0 0.0
  %1758 = vmatprep.subr.mxu0 0.0
  %1759 = vmatpush1.msra.mxu0 0.0
  %1760 = vmatprep.subr.mxu0 0.0
  %1761 = vmatpush1.msra.mxu0 0.0
  %1762 = vmatprep.subr.mxu0 0.0
  %1763 = vmatpush1.msra.mxu0 0.0
  %1764 = vmatprep.subr.mxu0 0.0
  %1765 = vmatpush1.msra.mxu0 %v217
  %1766 = vmatprep.subr.mxu0 0.0
  %1767 = vmatpush1.msra.mxu0 %v16
  %1768 = vmatprep.subr.mxu0 0.0
  %1769 = vmatpush1.msra.mxu0 %v15
  %1770 = vmatprep.subr.mxu0 0.0
  %1771 = vmatpush1.msra.mxu0 %v14
  %1772 = vmatprep.subr.mxu0 0.0
  %1773 = vmatpush2.msra.mxu0 0.0
  %1774 = vmatprep.subr.mxu0 0.0
  %1775 = vmatpush2.msra.mxu0 0.0
  %1776 = vmatprep.subr.mxu0 0.0
  %1777 = vmatpush2.msra.mxu0 0.0
  %1778 = vmatprep.subr.mxu0 0.0
  %1779 = vmatpush2.msra.mxu0 0.0
  %1780 = vmatprep.subr.mxu0 0.0
  %1781 = vmatpush2.msra.mxu0 0.0
  %1782 = vmatprep.subr.mxu0 0.0
  %1783 = vmatpush2.msra.mxu0 0.0
  %1784 = vmatprep.subr.mxu0 0.0
  %1785 = vmatpush2.msra.mxu0 0.0
  %1786 = vmatprep.subr.mxu0 0.0
  %1787 = vmatpush2.msra.mxu0 0.0
  %1788 = vmatprep.subr.mxu0 0.0
  %1789 = vmatpush2.msra.mxu0 0.0
  %1790 = vmatprep.subr.mxu0 0.0
  %1791 = vmatpush2.msra.mxu0 0.0
  %1792 = vmatprep.subr.mxu0 0.0
  %1793 = vmatpush2.msra.mxu0 0.0
  %1794 = vmatprep.subr.mxu0 0.0
  %1795 = vmatpush2.msra.mxu0 0.0
  %1796 = vmatprep.subr.mxu0 0.0
  %1797 = vmatpush2.msra.mxu0 0.0
  %1798 = vmatprep.subr.mxu0 0.0
  %1799 = vmatpush2.msra.mxu0 0.0
  %1800 = vmatprep.subr.mxu0 0.0
  %1801 = vmatpush2.msra.mxu0 0.0
  %1802 = vmatprep.subr.mxu0 0.0
  %1803 = vmatpush2.msra.mxu0 0.0
  %1804 = vmatprep.mubr.f32.mxu0 0.0
  %1805 = vmatmul.mubr.f32.gmra.mxu0 %v1594
  %v1806 = vpop.f32.mrf.mxu0
  %v1807 = vadd.f32 0.0, %v1806
  %v1808 = vpop.f32.mrf.mxu0
  %1809 = vmatprep.mubr.f32.mxu0 0.0
  %1810 = vmatmul.mubr.f32.gmra.mxu0 %v1597
  %v1811 = vpop.f32.mrf.mxu0
  %v1812 = vadd.f32 0.0, %v1811
  %v1813 = vpop.f32.mrf.mxu0
  %1814 = vmatprep.mubr.f32.mxu0 0.0
  %1815 = vmatmul.mubr.f32.gmra.mxu0 %v1600
  %v1816 = vpop.f32.mrf.mxu0
  %v1817 = vadd.f32 0.0, %v1816
  %v1818 = vpop.f32.mrf.mxu0
  %1819 = vmatprep.mubr.f32.mxu0 0.0
  %1820 = vmatmul.mubr.f32.gmra.mxu0 %v1603
  %v1821 = vpop.f32.mrf.mxu0
  %v1822 = vadd.f32 0.0, %v1821
  %v1823 = vpop.f32.mrf.mxu0
  %1824 = vmatprep.mubr.f32.mxu0 0.0
  %1825 = vmatmul.mubr.f32.gmra.mxu0 %v1606
  %v1826 = vpop.f32.mrf.mxu0
  %v1827 = vadd.f32 0.0, %v1826
  %v1828 = vpop.f32.mrf.mxu0
  %1829 = vmatprep.mubr.f32.mxu0 0.0
  %1830 = vmatmul.mubr.f32.gmra.mxu0 %v1609
  %v1831 = vpop.f32.mrf.mxu0
  %v1832 = vadd.f32 0.0, %v1831
  %v1833 = vpop.f32.mrf.mxu0
  %1834 = vmatprep.mubr.f32.mxu0 0.0
  %1835 = vmatmul.mubr.f32.gmra.mxu0 %v1612
  %v1836 = vpop.f32.mrf.mxu0
  %v1837 = vadd.f32 0.0, %v1836
  %v1838 = vpop.f32.mrf.mxu0
  %1839 = vmatprep.mubr.f32.mxu0 0.0
  %1840 = vmatmul.mubr.f32.gmra.mxu0 %v1615
  %v1841 = vpop.f32.mrf.mxu0
  %v1842 = vadd.f32 0.0, %v1841
  %v1843 = vpop.f32.mrf.mxu0
  %1844 = vmatprep.mubr.f32.mxu0 0.0
  %1845 = vmatmul.mubr.f32.gmra.mxu0 %v1618
  %v1846 = vpop.f32.mrf.mxu0
  %v1847 = vadd.f32 0.0, %v1846
  %v1848 = vpop.f32.mrf.mxu0
  %1849 = vmatprep.mubr.f32.mxu0 0.0
  %1850 = vmatmul.mubr.f32.gmra.mxu0 %v1621
  %v1851 = vpop.f32.mrf.mxu0
  %v1852 = vadd.f32 0.0, %v1851
  %v1853 = vpop.f32.mrf.mxu0
  %1854 = vmatprep.mubr.f32.mxu0 0.0
  %1855 = vmatmul.mubr.f32.gmra.mxu0 %v1624
  %v1856 = vpop.f32.mrf.mxu0
  %v1857 = vadd.f32 0.0, %v1856
  %v1858 = vpop.f32.mrf.mxu0
  %1859 = vmatprep.mubr.f32.mxu0 0.0
  %1860 = vmatmul.mubr.f32.gmra.mxu0 %v1627
  %v1861 = vpop.f32.mrf.mxu0
  %v1862 = vadd.f32 0.0, %v1861
  %v1863 = vpop.f32.mrf.mxu0
  %1864 = vmatprep.mubr.f32.mxu0 0.0
  %1865 = vmatmul.mubr.f32.gmra.mxu0 %v1630
  %v1866 = vpop.f32.mrf.mxu0
  %v1867 = vadd.f32 0.0, %v1866
  %v1868 = vpop.f32.mrf.mxu0
  %1869 = vmatprep.mubr.f32.mxu0 0.0
  %1870 = vmatmul.mubr.f32.gmra.mxu0 %v1633
  %v1871 = vpop.f32.mrf.mxu0
  %v1872 = vadd.f32 0.0, %v1871
  %v1873 = vpop.f32.mrf.mxu0
  %1874 = vmatprep.mubr.f32.mxu0 0.0
  %1875 = vmatmul.mubr.f32.gmra.mxu0 %v1636
  %v1876 = vpop.f32.mrf.mxu0
  %v1877 = vadd.f32 0.0, %v1876
  %v1878 = vpop.f32.mrf.mxu0
  %1879 = vmatprep.mubr.f32.mxu0 0.0
  %1880 = vmatmul.mubr.f32.gmra.mxu0 %v1639
  %v1881 = vpop.f32.mrf.mxu0
  %v1882 = vadd.f32 0.0, %v1881
  %v1883 = vpop.f32.mrf.mxu0
  %1884 = vmatprep.mubr.f32.mxu0 0.0
  %1885 = vmatmul.mubr.f32.gmra.mxu0 %v1642
  %v1886 = vpop.f32.mrf.mxu0
  %v1887 = vadd.f32 0.0, %v1886
  %v1888 = vpop.f32.mrf.mxu0
  %1889 = vmatprep.mubr.f32.mxu0 0.0
  %1890 = vmatmul.mubr.f32.gmra.mxu0 %v1645
  %v1891 = vpop.f32.mrf.mxu0
  %v1892 = vadd.f32 0.0, %v1891
  %v1893 = vpop.f32.mrf.mxu0
  %1894 = vmatprep.mubr.f32.mxu0 0.0
  %1895 = vmatmul.mubr.f32.gmra.mxu0 %v1648
  %v1896 = vpop.f32.mrf.mxu0
  %v1897 = vadd.f32 0.0, %v1896
  %v1898 = vpop.f32.mrf.mxu0
  %1899 = vmatprep.mubr.f32.mxu0 0.0
  %1900 = vmatmul.mubr.f32.gmra.mxu0 %v1651
  %v1901 = vpop.f32.mrf.mxu0
  %v1902 = vadd.f32 0.0, %v1901
  %v1903 = vpop.f32.mrf.mxu0
  %1904 = vmatprep.mubr.f32.mxu0 0.0
  %1905 = vmatmul.mubr.f32.gmra.mxu0 %v1654
  %v1906 = vpop.f32.mrf.mxu0
  %v1907 = vadd.f32 0.0, %v1906
  %v1908 = vpop.f32.mrf.mxu0
  %1909 = vmatprep.mubr.f32.mxu0 0.0
  %1910 = vmatmul.mubr.f32.gmra.mxu0 %v1657
  %v1911 = vpop.f32.mrf.mxu0
  %v1912 = vadd.f32 0.0, %v1911
  %v1913 = vpop.f32.mrf.mxu0
  %1914 = vmatprep.mubr.f32.mxu0 0.0
  %1915 = vmatmul.mubr.f32.gmra.mxu0 %v1660
  %v1916 = vpop.f32.mrf.mxu0
  %v1917 = vadd.f32 0.0, %v1916
  %v1918 = vpop.f32.mrf.mxu0
  %1919 = vmatprep.mubr.f32.mxu0 0.0
  %1920 = vmatmul.mubr.f32.gmra.mxu0 %v1663
  %v1921 = vpop.f32.mrf.mxu0
  %v1922 = vadd.f32 0.0, %v1921
  %v1923 = vpop.f32.mrf.mxu0
  %1924 = vmatprep.mubr.f32.mxu0 0.0
  %1925 = vmatmul.mubr.f32.gmra.mxu0 %v1666
  %v1926 = vpop.f32.mrf.mxu0
  %v1927 = vadd.f32 0.0, %v1926
  %v1928 = vpop.f32.mrf.mxu0
  %1929 = vmatprep.mubr.f32.mxu0 0.0
  %1930 = vmatmul.mubr.f32.gmra.mxu0 %v1669
  %v1931 = vpop.f32.mrf.mxu0
  %v1932 = vadd.f32 0.0, %v1931
  %v1933 = vpop.f32.mrf.mxu0
  %1934 = vmatprep.mubr.f32.mxu0 0.0
  %1935 = vmatmul.mubr.f32.gmra.mxu0 %v1672
  %v1936 = vpop.f32.mrf.mxu0
  %v1937 = vadd.f32 0.0, %v1936
  %v1938 = vpop.f32.mrf.mxu0
  %1939 = vmatprep.mubr.f32.mxu0 0.0
  %1940 = vmatmul.mubr.f32.gmra.mxu0 %v1675
  %v1941 = vpop.f32.mrf.mxu0
  %v1942 = vadd.f32 0.0, %v1941
  %v1943 = vpop.f32.mrf.mxu0
  %1944 = vmatprep.mubr.f32.mxu0 0.0
  %1945 = vmatmul.mubr.f32.gmra.mxu0 %v1678
  %v1946 = vpop.f32.mrf.mxu0
  %v1947 = vadd.f32 0.0, %v1946
  %v1948 = vpop.f32.mrf.mxu0
  %1949 = vmatprep.mubr.f32.mxu0 0.0
  %1950 = vmatmul.mubr.f32.gmra.mxu0 %v1681
  %v1951 = vpop.f32.mrf.mxu0
  %v1952 = vadd.f32 0.0, %v1951
  %v1953 = vpop.f32.mrf.mxu0
  %1954 = vmatprep.mubr.f32.mxu0 0.0
  %1955 = vmatmul.mubr.f32.gmra.mxu0 %v1684
  %v1956 = vpop.f32.mrf.mxu0
  %v1957 = vadd.f32 0.0, %v1956
  %v1958 = vpop.f32.mrf.mxu0
  %1959 = vmatprep.mubr.f32.mxu0 0.0
  %1960 = vmatmul.mubr.f32.gmra.mxu0 %v1687
  %v1961 = vpop.f32.mrf.mxu0
  %v1962 = vadd.f32 0.0, %v1961
  %v1963 = vpop.f32.mrf.mxu0
  %1964 = vmatprep.mubr.f32.mxu0 0.0
  %1965 = vmatmul.mubr.f32.gmra.mxu0 %v1690
  %v1966 = vpop.f32.mrf.mxu0
  %v1967 = vadd.f32 0.0, %v1966
  %v1968 = vpop.f32.mrf.mxu0
  %1969 = vmatprep.mubr.f32.mxu0 0.0
  %1970 = vmatmul.mubr.f32.gmra.mxu0 %v1693
  %v1971 = vpop.f32.mrf.mxu0
  %v1972 = vadd.f32 0.0, %v1971
  %v1973 = vpop.f32.mrf.mxu0
  %1974 = vmatprep.mubr.f32.mxu0 0.0
  %1975 = vmatmul.mubr.f32.gmra.mxu0 %v1696
  %v1976 = vpop.f32.mrf.mxu0
  %v1977 = vadd.f32 0.0, %v1976
  %v1978 = vpop.f32.mrf.mxu0
  %1979 = vmatprep.mubr.f32.mxu0 0.0
  %1980 = vmatmul.mubr.f32.gmra.mxu0 %v1699
  %v1981 = vpop.f32.mrf.mxu0
  %v1982 = vadd.f32 0.0, %v1981
  %v1983 = vpop.f32.mrf.mxu0
  %1984 = vmatprep.mubr.f32.mxu0 0.0
  %1985 = vmatmul.mubr.f32.gmra.mxu0 %v1702
  %v1986 = vpop.f32.mrf.mxu0
  %v1987 = vadd.f32 0.0, %v1986
  %v1988 = vpop.f32.mrf.mxu0
  %1989 = vmatprep.mubr.f32.mxu0 0.0
  %1990 = vmatmul.mubr.f32.gmra.mxu0 %v1705
  %v1991 = vpop.f32.mrf.mxu0
  %v1992 = vadd.f32 0.0, %v1991
  %v1993 = vpop.f32.mrf.mxu0
  %1994 = vmatprep.mubr.f32.mxu0 0.0
  %1995 = vmatmul.mubr.f32.gmra.mxu0 %v1708
  %v1996 = vpop.f32.mrf.mxu0
  %v1997 = vadd.f32 0.0, %v1996
  %v1998 = vpop.f32.mrf.mxu0
  %1999 = vmatprep.mubr.f32.mxu0 0.0
  %2000 = vmatmul.mubr.f32.gmra.mxu0 %v1711
  %v2001 = vpop.f32.mrf.mxu0
  %v2002 = vadd.f32 0.0, %v2001
  %v2003 = vpop.f32.mrf.mxu0
  %2004 = vmatprep.mubr.f32.mxu0 0.0
  %2005 = vmatmul.mubr.f32.gmra.mxu0 %v1714
  %v2006 = vpop.f32.mrf.mxu0
  %v2007 = vadd.f32 0.0, %v2006
  %v2008 = vpop.f32.mrf.mxu0
  %2009 = vmatprep.mubr.f32.mxu0 0.0
  %2010 = vmatmul.mubr.f32.gmra.mxu0 %v1717
  %v2011 = vpop.f32.mrf.mxu0
  %v2012 = vadd.f32 0.0, %v2011
  %v2013 = vpop.f32.mrf.mxu0
  %2014 = vmatprep.mubr.f32.mxu0 0.0
  %2015 = vmatmul.mubr.f32.gmra.mxu0 %v1720
  %v2016 = vpop.f32.mrf.mxu0
  %v2017 = vadd.f32 0.0, %v2016
  %v2018 = vpop.f32.mrf.mxu0
  %2019 = vmatprep.mubr.f32.mxu0 0.0
  %2020 = vmatmul.mubr.f32.gmra.mxu0 %v1723
  %v2021 = vpop.f32.mrf.mxu0
  %v2022 = vadd.f32 0.0, %v2021
  %v2023 = vpop.f32.mrf.mxu0
  %2024 = vmatprep.mubr.f32.mxu0 0.0
  %2025 = vmatmul.mubr.f32.gmra.mxu0 %v1726
  %v2026 = vpop.f32.mrf.mxu0
  %v2027 = vadd.f32 0.0, %v2026
  %v2028 = vpop.f32.mrf.mxu0
  %2029 = vmatprep.mubr.f32.mxu0 0.0
  %2030 = vmatmul.mubr.f32.gmra.mxu0 %v1729
  %v2031 = vpop.f32.mrf.mxu0
  %v2032 = vadd.f32 0.0, %v2031
  %v2033 = vpop.f32.mrf.mxu0
  %2034 = vmatprep.mubr.f32.mxu0 0.0
  %2035 = vmatmul.mubr.f32.gmra.mxu0 %v1732
  %v2036 = vpop.f32.mrf.mxu0
  %v2037 = vadd.f32 0.0, %v2036
  %v2038 = vpop.f32.mrf.mxu0
  %2039 = vmatprep.mubr.f32.mxu0 0.0
  %2040 = vmatmul.mubr.f32.gmra.mxu0 %v1735
  %v2041 = vpop.f32.mrf.mxu0
  %v2042 = vadd.f32 0.0, %v2041
  %v2043 = vpop.f32.mrf.mxu0
  %2044 = vmatprep.mubr.f32.mxu0 0.0
  %2045 = vmatmul.mubr.f32.gmra.mxu0 %v1738
  %v2046 = vpop.f32.mrf.mxu0
  %v2047 = vadd.f32 0.0, %v2046
  %v2048 = vpop.f32.mrf.mxu0
  %2049 = vdwg.mxu0
  %v2050 = vmax.f32 %v286, %v793
  %v2051 = vmax.f32 %v291, %v798
  %v2052 = vmax.f32 %v296, %v803
  %v2053 = vmax.f32 %v301, %v808
  %v2054 = vmax.f32 %v306, %v813
  %v2055 = vmax.f32 %v311, %v818
  %v2056 = vmax.f32 %v316, %v823
  %v2057 = vmax.f32 %v321, %v828
  %v2058 = vmax.f32 %v326, %v833
  %v2059 = vmax.f32 %v331, %v838
  %v2060 = vmax.f32 %v336, %v843
  %v2061 = vmax.f32 %v341, %v848
  %v2062 = vmax.f32 %v346, %v853
  %v2063 = vmax.f32 %v351, %v858
  %v2064 = vmax.f32 %v356, %v863
  %v2065 = vmax.f32 %v361, %v868
  %v2066 = vmax.f32 %v366, %v873
  %v2067 = vmax.f32 %v371, %v878
  %v2068 = vmax.f32 %v376, %v883
  %v2069 = vmax.f32 %v381, %v888
  %v2070 = vmax.f32 %v386, %v893
  %v2071 = vmax.f32 %v391, %v898
  %v2072 = vmax.f32 %v396, %v903
  %v2073 = vmax.f32 %v401, %v908
  %v2074 = vmax.f32 %v406, %v913
  %v2075 = vmax.f32 %v411, %v918
  %v2076 = vmax.f32 %v416, %v923
  %v2077 = vmax.f32 %v421, %v928
  %v2078 = vmax.f32 %v426, %v933
  %v2079 = vmax.f32 %v431, %v938
  %v2080 = vmax.f32 %v436, %v943
  %v2081 = vmax.f32 %v441, %v948
  %v2082 = vmax.f32 %v446, %v953
  %v2083 = vmax.f32 %v451, %v958
  %v2084 = vmax.f32 %v456, %v963
  %v2085 = vmax.f32 %v461, %v968
  %v2086 = vmax.f32 %v466, %v973
  %v2087 = vmax.f32 %v471, %v978
  %v2088 = vmax.f32 %v476, %v983
  %v2089 = vmax.f32 %v481, %v988
  %v2090 = vmax.f32 %v486, %v993
  %v2091 = vmax.f32 %v491, %v998
  %v2092 = vmax.f32 %v496, %v1003
  %v2093 = vmax.f32 %v501, %v1008
  %v2094 = vmax.f32 %v506, %v1013
  %v2095 = vmax.f32 %v511, %v1018
  %v2096 = vmax.f32 %v516, %v1023
  %v2097 = vmax.f32 %v521, %v1028
  %v2098 = vmax.f32 %v526, %v1033
  %v2099 = vmax.f32 %v1300, %v1807
  %v2100 = vmax.f32 %v1305, %v1812
  %v2101 = vmax.f32 %v1310, %v1817
  %v2102 = vmax.f32 %v1315, %v1822
  %v2103 = vmax.f32 %v1320, %v1827
  %v2104 = vmax.f32 %v1325, %v1832
  %v2105 = vmax.f32 %v1330, %v1837
  %v2106 = vmax.f32 %v1335, %v1842
  %v2107 = vmax.f32 %v1340, %v1847
  %v2108 = vmax.f32 %v1345, %v1852
  %v2109 = vmax.f32 %v1350, %v1857
  %v2110 = vmax.f32 %v1355, %v1862
  %v2111 = vmax.f32 %v1360, %v1867
  %v2112 = vmax.f32 %v1365, %v1872
  %v2113 = vmax.f32 %v1370, %v1877
  %v2114 = vmax.f32 %v1375, %v1882
  %v2115 = vmax.f32 %v1380, %v1887
  %v2116 = vmax.f32 %v1385, %v1892
  %v2117 = vmax.f32 %v1390, %v1897
  %v2118 = vmax.f32 %v1395, %v1902
  %v2119 = vmax.f32 %v1400, %v1907
  %v2120 = vmax.f32 %v1405, %v1912
  %v2121 = vmax.f32 %v1410, %v1917
  %v2122 = vmax.f32 %v1415, %v1922
  %v2123 = vmax.f32 %v1420, %v1927
  %v2124 = vmax.f32 %v1425, %v1932
  %v2125 = vmax.f32 %v1430, %v1937
  %v2126 = vmax.f32 %v1435, %v1942
  %v2127 = vmax.f32 %v1440, %v1947
  %v2128 = vmax.f32 %v1445, %v1952
  %v2129 = vmax.f32 %v1450, %v1957
  %v2130 = vmax.f32 %v1455, %v1962
  %v2131 = vmax.f32 %v1460, %v1967
  %v2132 = vmax.f32 %v1465, %v1972
  %v2133 = vmax.f32 %v1470, %v1977
  %v2134 = vmax.f32 %v1475, %v1982
  %v2135 = vmax.f32 %v1480, %v1987
  %v2136 = vmax.f32 %v1485, %v1992
  %v2137 = vmax.f32 %v1490, %v1997
  %v2138 = vmax.f32 %v1495, %v2002
  %v2139 = vmax.f32 %v1500, %v2007
  %v2140 = vmax.f32 %v1505, %v2012
  %v2141 = vmax.f32 %v1510, %v2017
  %v2142 = vmax.f32 %v1515, %v2022
  %v2143 = vmax.f32 %v1520, %v2027
  %v2144 = vmax.f32 %v1525, %v2032
  %v2145 = vmax.f32 %v1530, %v2037
  %v2146 = vmax.f32 %v1535, %v2042
  %v2147 = vmax.f32 %v1540, %v2047
  %v2148 = vmax.f32 %v2050, %v2099
  %v2149 = vmax.f32 %v2051, %v2100
  %v2150 = vmax.f32 %v2052, %v2101
  %v2151 = vmax.f32 %v2053, %v2102
  %v2152 = vmax.f32 %v2054, %v2103
  %v2153 = vmax.f32 %v2055, %v2104
  %v2154 = vmax.f32 %v2056, %v2105
  %v2155 = vmax.f32 %v2057, %v2106
  %v2156 = vmax.f32 %v2058, %v2107
  %v2157 = vmax.f32 %v2059, %v2108
  %v2158 = vmax.f32 %v2060, %v2109
  %v2159 = vmax.f32 %v2061, %v2110
  %v2160 = vmax.f32 %v2062, %v2111
  %v2161 = vmax.f32 %v2063, %v2112
  %v2162 = vmax.f32 %v2064, %v2113
  %v2163 = vmax.f32 %v2065, %v2114
  %v2164 = vmax.f32 %v2066, %v2115
  %v2165 = vmax.f32 %v2067, %v2116
  %v2166 = vmax.f32 %v2068, %v2117
  %v2167 = vmax.f32 %v2069, %v2118
  %v2168 = vmax.f32 %v2070, %v2119
  %v2169 = vmax.f32 %v2071, %v2120
  %v2170 = vmax.f32 %v2072, %v2121
  %v2171 = vmax.f32 %v2073, %v2122
  %v2172 = vmax.f32 %v2074, %v2123
  %v2173 = vmax.f32 %v2075, %v2124
  %v2174 = vmax.f32 %v2076, %v2125
  %v2175 = vmax.f32 %v2077, %v2126
  %v2176 = vmax.f32 %v2078, %v2127
  %v2177 = vmax.f32 %v2079, %v2128
  %v2178 = vmax.f32 %v2080, %v2129
  %v2179 = vmax.f32 %v2081, %v2130
  %v2180 = vmax.f32 %v2082, %v2131
  %v2181 = vmax.f32 %v2083, %v2132
  %v2182 = vmax.f32 %v2084, %v2133
  %v2183 = vmax.f32 %v2085, %v2134
  %v2184 = vmax.f32 %v2086, %v2135
  %v2185 = vmax.f32 %v2087, %v2136
  %v2186 = vmax.f32 %v2088, %v2137
  %v2187 = vmax.f32 %v2089, %v2138
  %v2188 = vmax.f32 %v2090, %v2139
  %v2189 = vmax.f32 %v2091, %v2140
  %v2190 = vmax.f32 %v2092, %v2141
  %v2191 = vmax.f32 %v2093, %v2142
  %v2192 = vmax.f32 %v2094, %v2143
  %v2193 = vmax.f32 %v2095, %v2144
  %v2194 = vmax.f32 %v2096, %v2145
  %v2195 = vmax.f32 %v2097, %v2146
  %v2196 = vmax.f32 %v2098, %v2147
  %v2197 = vld [vmem:[%s2] sm:$0x1]
  %v2199 = vlaneseq
  %v2200 = vshrl.u32 %v2199, 7
  %v2201 = vsub.s32 0, %v2200
  %v2202 = vrot.slane %v2197, %v2201
  %v2204 = vadd.f32 %v2148, %v2202
  %v2205 = vadd.f32 %v2149, %v2202
  %v2206 = vadd.f32 %v2150, %v2202
  %v2207 = vadd.f32 %v2151, %v2202
  %v2208 = vadd.f32 %v2152, %v2202
  %v2209 = vadd.f32 %v2153, %v2202
  %v2210 = vadd.f32 %v2154, %v2202
  %v2211 = vadd.f32 %v2155, %v2202
  %v2212 = vadd.f32 %v2156, %v2202
  %v2213 = vadd.f32 %v2157, %v2202
  %v2214 = vadd.f32 %v2158, %v2202
  %v2215 = vadd.f32 %v2159, %v2202
  %v2216 = vadd.f32 %v2160, %v2202
  %v2217 = vadd.f32 %v2161, %v2202
  %v2218 = vadd.f32 %v2162, %v2202
  %v2219 = vadd.f32 %v2163, %v2202
  %v2220 = vadd.f32 %v2164, %v2202
  %v2221 = vadd.f32 %v2165, %v2202
  %v2222 = vadd.f32 %v2166, %v2202
  %v2223 = vadd.f32 %v2167, %v2202
  %v2224 = vadd.f32 %v2168, %v2202
  %v2225 = vadd.f32 %v2169, %v2202
  %v2226 = vadd.f32 %v2170, %v2202
  %v2227 = vadd.f32 %v2171, %v2202
  %v2228 = vadd.f32 %v2172, %v2202
  %v2229 = vadd.f32 %v2173, %v2202
  %v2230 = vadd.f32 %v2174, %v2202
  %v2231 = vadd.f32 %v2175, %v2202
  %v2232 = vadd.f32 %v2176, %v2202
  %v2233 = vadd.f32 %v2177, %v2202
  %v2234 = vadd.f32 %v2178, %v2202
  %v2235 = vadd.f32 %v2179, %v2202
  %v2236 = vadd.f32 %v2180, %v2202
  %v2237 = vadd.f32 %v2181, %v2202
  %v2238 = vadd.f32 %v2182, %v2202
  %v2239 = vadd.f32 %v2183, %v2202
  %v2240 = vadd.f32 %v2184, %v2202
  %v2241 = vadd.f32 %v2185, %v2202
  %v2242 = vadd.f32 %v2186, %v2202
  %v2243 = vadd.f32 %v2187, %v2202
  %v2244 = vadd.f32 %v2188, %v2202
  %v2245 = vadd.f32 %v2189, %v2202
  %v2246 = vadd.f32 %v2190, %v2202
  %v2247 = vadd.f32 %v2191, %v2202
  %v2248 = vadd.f32 %v2192, %v2202
  %v2249 = vadd.f32 %v2193, %v2202
  %v2250 = vadd.f32 %v2194, %v2202
  %v2251 = vadd.f32 %v2195, %v2202
  %v2252 = vadd.f32 %v2196, %v2202
  %v2253 = vmax.f32 %v2204, 0.0
  %v2254 = vmax.f32 %v2205, 0.0
  %v2255 = vmax.f32 %v2206, 0.0
  %v2256 = vmax.f32 %v2207, 0.0
  %v2257 = vmax.f32 %v2208, 0.0
  %v2258 = vmax.f32 %v2209, 0.0
  %v2259 = vmax.f32 %v2210, 0.0
  %v2260 = vmax.f32 %v2211, 0.0
  %v2261 = vmax.f32 %v2212, 0.0
  %v2262 = vmax.f32 %v2213, 0.0
  %v2263 = vmax.f32 %v2214, 0.0
  %v2264 = vmax.f32 %v2215, 0.0
  %v2265 = vmax.f32 %v2216, 0.0
  %v2266 = vmax.f32 %v2217, 0.0
  %v2267 = vmax.f32 %v2218, 0.0
  %v2268 = vmax.f32 %v2219, 0.0
  %v2269 = vmax.f32 %v2220, 0.0
  %v2270 = vmax.f32 %v2221, 0.0
  %v2271 = vmax.f32 %v2222, 0.0
  %v2272 = vmax.f32 %v2223, 0.0
  %v2273 = vmax.f32 %v2224, 0.0
  %v2274 = vmax.f32 %v2225, 0.0
  %v2275 = vmax.f32 %v2226, 0.0
  %v2276 = vmax.f32 %v2227, 0.0
  %v2277 = vmax.f32 %v2228, 0.0
  %v2278 = vmax.f32 %v2229, 0.0
  %v2279 = vmax.f32 %v2230, 0.0
  %v2280 = vmax.f32 %v2231, 0.0
  %v2281 = vmax.f32 %v2232, 0.0
  %v2282 = vmax.f32 %v2233, 0.0
  %v2283 = vmax.f32 %v2234, 0.0
  %v2284 = vmax.f32 %v2235, 0.0
  %v2285 = vmax.f32 %v2236, 0.0
  %v2286 = vmax.f32 %v2237, 0.0
  %v2287 = vmax.f32 %v2238, 0.0
  %v2288 = vmax.f32 %v2239, 0.0
  %v2289 = vmax.f32 %v2240, 0.0
  %v2290 = vmax.f32 %v2241, 0.0
  %v2291 = vmax.f32 %v2242, 0.0
  %v2292 = vmax.f32 %v2243, 0.0
  %v2293 = vmax.f32 %v2244, 0.0
  %v2294 = vmax.f32 %v2245, 0.0
  %v2295 = vmax.f32 %v2246, 0.0
  %v2296 = vmax.f32 %v2247, 0.0
  %v2297 = vmax.f32 %v2248, 0.0
  %v2298 = vmax.f32 %v2249, 0.0
  %v2299 = vmax.f32 %v2250, 0.0
  %v2300 = vmax.f32 %v2251, 0.0
  %v2301 = vmax.f32 %v2252, 0.0
  %vm2302 = vcmask 48128
  %2303 = vst.msk [vmem:[%s3] sm:$0xff] %vm2302, %v2253
  %2304 = vst.msk [vmem:[%s3 + $0x8] sm:$0xff] %vm2302, %v2254
  %2305 = vst.msk [vmem:[%s3 + $0x10] sm:$0xff] %vm2302, %v2255
  %2306 = vst.msk [vmem:[%s3 + $0x18] sm:$0xff] %vm2302, %v2256
  %2307 = vst.msk [vmem:[%s3 + $0x20] sm:$0xff] %vm2302, %v2257
  %2308 = vst.msk [vmem:[%s3 + $0x28] sm:$0xff] %vm2302, %v2258
  %2309 = vst.msk [vmem:[%s3 + $0x30] sm:$0xff] %vm2302, %v2259
  %2310 = vst.msk [vmem:[%s3 + $0x38] sm:$0xff] %vm2302, %v2260
  %2311 = vst.msk [vmem:[%s3 + $0x40] sm:$0xff] %vm2302, %v2261
  %2312 = vst.msk [vmem:[%s3 + $0x48] sm:$0xff] %vm2302, %v2262
  %2313 = vst.msk [vmem:[%s3 + $0x50] sm:$0xff] %vm2302, %v2263
  %2314 = vst.msk [vmem:[%s3 + $0x58] sm:$0xff] %vm2302, %v2264
  %2315 = vst.msk [vmem:[%s3 + $0x60] sm:$0xff] %vm2302, %v2265
  %2316 = vst.msk [vmem:[%s3 + $0x68] sm:$0xff] %vm2302, %v2266
  %2317 = vst.msk [vmem:[%s3 + $0x70] sm:$0xff] %vm2302, %v2267
  %2318 = vst.msk [vmem:[%s3 + $0x78] sm:$0xff] %vm2302, %v2268
  %2319 = vst.msk [vmem:[%s3 + $0x80] sm:$0xff] %vm2302, %v2269
  %2320 = vst.msk [vmem:[%s3 + $0x88] sm:$0xff] %vm2302, %v2270
  %2321 = vst.msk [vmem:[%s3 + $0x90] sm:$0xff] %vm2302, %v2271
  %2322 = vst.msk [vmem:[%s3 + $0x98] sm:$0xff] %vm2302, %v2272
  %2323 = vst.msk [vmem:[%s3 + $0xa0] sm:$0xff] %vm2302, %v2273
  %2324 = vst.msk [vmem:[%s3 + $0xa8] sm:$0xff] %vm2302, %v2274
  %2325 = vst.msk [vmem:[%s3 + $0xb0] sm:$0xff] %vm2302, %v2275
  %2326 = vst.msk [vmem:[%s3 + $0xb8] sm:$0xff] %vm2302, %v2276
  %2327 = vst.msk [vmem:[%s3 + $0xc0] sm:$0xff] %vm2302, %v2277
  %2328 = vst.msk [vmem:[%s3 + $0xc8] sm:$0xff] %vm2302, %v2278
  %2329 = vst.msk [vmem:[%s3 + $0xd0] sm:$0xff] %vm2302, %v2279
  %2330 = vst.msk [vmem:[%s3 + $0xd8] sm:$0xff] %vm2302, %v2280
  %2331 = vst.msk [vmem:[%s3 + $0xe0] sm:$0xff] %vm2302, %v2281
  %2332 = vst.msk [vmem:[%s3 + $0xe8] sm:$0xff] %vm2302, %v2282
  %2333 = vst.msk [vmem:[%s3 + $0xf0] sm:$0xff] %vm2302, %v2283
  %2334 = vst.msk [vmem:[%s3 + $0xf8] sm:$0xff] %vm2302, %v2284
  %2335 = vst.msk [vmem:[%s3 + $0x100] sm:$0xff] %vm2302, %v2285
  %2336 = vst.msk [vmem:[%s3 + $0x108] sm:$0xff] %vm2302, %v2286
  %2337 = vst.msk [vmem:[%s3 + $0x110] sm:$0xff] %vm2302, %v2287
  %2338 = vst.msk [vmem:[%s3 + $0x118] sm:$0xff] %vm2302, %v2288
  %2339 = vst.msk [vmem:[%s3 + $0x120] sm:$0xff] %vm2302, %v2289
  %2340 = vst.msk [vmem:[%s3 + $0x128] sm:$0xff] %vm2302, %v2290
  %2341 = vst.msk [vmem:[%s3 + $0x130] sm:$0xff] %vm2302, %v2291
  %2342 = vst.msk [vmem:[%s3 + $0x138] sm:$0xff] %vm2302, %v2292
  %2343 = vst.msk [vmem:[%s3 + $0x140] sm:$0xff] %vm2302, %v2293
  %2344 = vst.msk [vmem:[%s3 + $0x148] sm:$0xff] %vm2302, %v2294
  %2345 = vst.msk [vmem:[%s3 + $0x150] sm:$0xff] %vm2302, %v2295
  %2346 = vst.msk [vmem:[%s3 + $0x158] sm:$0xff] %vm2302, %v2296
  %2347 = vst.msk [vmem:[%s3 + $0x160] sm:$0xff] %vm2302, %v2297
  %2348 = vst.msk [vmem:[%s3 + $0x168] sm:$0xff] %vm2302, %v2298
  %2349 = vst.msk [vmem:[%s3 + $0x170] sm:$0xff] %vm2302, %v2299
  %2350 = vst.msk [vmem:[%s3 + $0x178] sm:$0xff] %vm2302, %v2300
  %2351 = vst.msk [vmem:[%s3 + $0x180] sm:$0xff] %vm2302, %v2301
  // Predicated region
  $region14: #{spheric_cnn_forward.3} parent=0 // pred_check
    _
  $region15: #{spheric_cnn_forward.3} parent=0 // pred_check_branch
    %2353 = sbr.rel (0) target = $region17
  $region16: #{spheric_cnn_forward.3} parent=0 // pred_region
    _
  $region17: #{spheric_cnn_forward.3} parent=0 // pred_fallthru
    _
  // Predicated region
  $region18: #{spheric_cnn_forward.3} parent=0 // pred_check
    _
  $region19: #{spheric_cnn_forward.3} parent=0 // pred_check_branch
    %2355 = sbr.rel (0) target = $region21
  $region20: #{spheric_cnn_forward.3} parent=0 // pred_region
    _
  $region21: #{spheric_cnn_forward.3} parent=0 // pred_fallthru
    _

// kernel: spheric_cnn_forward.4
$region0: #{spheric_cnn_forward.4}
  #allocation0 [shape = 'u32[]', space=smem, size = 0x4, offset = 0x4, fixed_abs, tag = 'smem constant byte address 0x4 - core index']
  #allocation1 [shape = 'u32[144,128]{1,0:T(1,128)}', space=vmem, size = 0x12000, scoped, tag = 'internal scratch']
  %s0 = inlined_call_operand.vmem [shape: f32[4,50,150], index: 0, kind: input, shape index: {}]
  %s1 = inlined_call_operand.vmem [shape: f32[150,16], index: 1, kind: input, shape index: {}]
  %s2 = inlined_call_operand.vmem [shape: f32[1,16], index: 2, kind: input, shape index: {}]
  %s3 = inlined_call_operand.vmem [shape: f32[50,16], index: 3, kind: output, shape index: {}]
  %s4 = sld [smem:[#allocation0]]
  $region22: #{spheric_cnn_forward.4} parent=0
    _
  %s6 = ssub.s32 1, %s4
  %s7 = scalar_select 0, %s6, %s4
  // Predicated region
  $region2: #{spheric_cnn_forward.4} parent=0 // pred_check
    _
  $region3: #{spheric_cnn_forward.4} parent=0 // pred_check_branch
    %9 = sbr.rel (0) target = $region5
  $region4: #{spheric_cnn_forward.4} parent=0 // pred_region
    _
  $region5: #{spheric_cnn_forward.4} parent=0 // pred_fallthru
    _
  // Predicated region
  $region6: #{spheric_cnn_forward.4} parent=0 // pred_check
    _
  $region7: #{spheric_cnn_forward.4} parent=0 // pred_check_branch
    %11 = sbr.rel (0) target = $region9
  $region8: #{spheric_cnn_forward.4} parent=0 // pred_region
    _
  $region9: #{spheric_cnn_forward.4} parent=0 // pred_fallthru
    _
  // Predicated region
  $region10: #{spheric_cnn_forward.4} parent=0 // pred_check
    _
  $region11: #{spheric_cnn_forward.4} parent=0 // pred_check_branch
    %13 = sbr.rel (0) target = $region13
  $region12: #{spheric_cnn_forward.4} parent=0 // pred_region
    _
  $region13: #{spheric_cnn_forward.4} parent=0 // pred_fallthru
    _
  %v14 = vld [vmem:[%s1] sm:$0xff]
  %v15 = vld [vmem:[%s1 + $0x8] sm:$0xff]
  %v16 = vld [vmem:[%s1 + $0x10] sm:$0xff]
  %v17 = vld [vmem:[%s1 + $0x18] sm:$0xff]
  %v18 = vld [vmem:[%s1 + $0x20] sm:$0xff]
  %v19 = vld [vmem:[%s1 + $0x28] sm:$0xff]
  %v20 = vld [vmem:[%s1 + $0x30] sm:$0xff]
  %v21 = vld [vmem:[%s1 + $0x38] sm:$0xff]
  %v22 = vld [vmem:[%s1 + $0x40] sm:$0xff]
  %v23 = vld [vmem:[%s1 + $0x48] sm:$0xff]
  %v24 = vld [vmem:[%s1 + $0x50] sm:$0xff]
  %v25 = vld [vmem:[%s1 + $0x58] sm:$0xff]
  %v26 = vld [vmem:[%s1 + $0x60] sm:$0xff]
  %v27 = vld [vmem:[%s1 + $0x68] sm:$0xff]
  %v28 = vld [vmem:[%s1 + $0x70] sm:$0xff]
  %v29 = vld [vmem:[%s1 + $0x78] sm:$0xff]
  %v30 = vld [vmem:[%s1 + $0x80] sm:$0xff]
  %v31 = vld [vmem:[%s1 + $0x88] sm:$0xff]
  %v32 = vld [vmem:[%s1 + $0x90] sm:$0x3f]
  %v33 = vld [vmem:[%s0] sm:$0xff]
  %v34 = vld [vmem:[%s0 + $0x8] sm:$0xff]
  %v35 = vld [vmem:[%s0 + $0x10] sm:$0xff]
  %v36 = vld [vmem:[%s0 + $0x18] sm:$0xff]
  %v37 = vld [vmem:[%s0 + $0x20] sm:$0xff]
  %v38 = vld [vmem:[%s0 + $0x28] sm:$0xff]
  %v39 = vld [vmem:[%s0 + $0x30] sm:$0xff]
  %v40 = vld [vmem:[%s0 + $0x38] sm:$0xff]
  %v41 = vld [vmem:[%s0 + $0x40] sm:$0xff]
  %v42 = vld [vmem:[%s0 + $0x48] sm:$0xff]
  %v43 = vld [vmem:[%s0 + $0x50] sm:$0xff]
  %v44 = vld [vmem:[%s0 + $0x58] sm:$0xff]
  %v45 = vld [vmem:[%s0 + $0x60] sm:$0x3]
  %v46 = vld [vmem:[%s0 + $0x68] sm:$0x3]
  %vm47 = vcmask 179200
  %v49 = vsel %vm47, %v34, 0
  %v52 = vsel %vm47, %v36, 0
  %v55 = vsel %vm47, %v38, 0
  %v58 = vsel %vm47, %v40, 0
  %v61 = vsel %vm47, %v42, 0
  %v64 = vsel %vm47, %v44, 0
  %v67 = vsel %vm47, %v46, 0
  %vm69 = vcmask 1045504
  %v71 = vsel %vm69, %v32, 0
  %73 = vmatprep.subr.mxu0 0.0
  %74 = vmatpush1.msra.mxu0 %v29
  %75 = vmatprep.subr.mxu0 0.0
  %76 = vmatpush1.msra.mxu0 %v28
  %77 = vmatprep.subr.mxu0 0.0
  %78 = vmatpush1.msra.mxu0 %v27
  %79 = vmatprep.subr.mxu0 0.0
  %80 = vmatpush1.msra.mxu0 %v26
  %81 = vmatprep.subr.mxu0 0.0
  %82 = vmatpush1.msra.mxu0 %v25
  %83 = vmatprep.subr.mxu0 0.0
  %84 = vmatpush1.msra.mxu0 %v24
  %85 = vmatprep.subr.mxu0 0.0
  %86 = vmatpush1.msra.mxu0 %v23
  %87 = vmatprep.subr.mxu0 0.0
  %88 = vmatpush1.msra.mxu0 %v22
  %89 = vmatprep.subr.mxu0 0.0
  %90 = vmatpush1.msra.mxu0 %v21
  %91 = vmatprep.subr.mxu0 0.0
  %92 = vmatpush1.msra.mxu0 %v20
  %93 = vmatprep.subr.mxu0 0.0
  %94 = vmatpush1.msra.mxu0 %v19
  %95 = vmatprep.subr.mxu0 0.0
  %96 = vmatpush1.msra.mxu0 %v18
  %97 = vmatprep.subr.mxu0 0.0
  %98 = vmatpush1.msra.mxu0 %v17
  %99 = vmatprep.subr.mxu0 0.0
  %100 = vmatpush1.msra.mxu0 %v16
  %101 = vmatprep.subr.mxu0 0.0
  %102 = vmatpush1.msra.mxu0 %v15
  %103 = vmatprep.subr.mxu0 0.0
  %104 = vmatpush1.msra.mxu0 %v14
  %105 = vmatprep.subr.mxu0 0.0
  %106 = vmatpush2.msra.mxu0 0.0
  %107 = vmatprep.subr.mxu0 0.0
  %108 = vmatpush2.msra.mxu0 0.0
  %109 = vmatprep.subr.mxu0 0.0
  %110 = vmatpush2.msra.mxu0 0.0
  %111 = vmatprep.subr.mxu0 0.0
  %112 = vmatpush2.msra.mxu0 0.0
  %113 = vmatprep.subr.mxu0 0.0
  %114 = vmatpush2.msra.mxu0 0.0
  %115 = vmatprep.subr.mxu0 0.0
  %116 = vmatpush2.msra.mxu0 0.0
  %117 = vmatprep.subr.mxu0 0.0
  %118 = vmatpush2.msra.mxu0 0.0
  %119 = vmatprep.subr.mxu0 0.0
  %120 = vmatpush2.msra.mxu0 0.0
  %121 = vmatprep.subr.mxu0 0.0
  %122 = vmatpush2.msra.mxu0 0.0
  %123 = vmatprep.subr.mxu0 0.0
  %124 = vmatpush2.msra.mxu0 0.0
  %125 = vmatprep.subr.mxu0 0.0
  %126 = vmatpush2.msra.mxu0 0.0
  %127 = vmatprep.subr.mxu0 0.0
  %128 = vmatpush2.msra.mxu0 0.0
  %129 = vmatprep.subr.mxu0 0.0
  %130 = vmatpush2.msra.mxu0 0.0
  %131 = vmatprep.subr.mxu0 0.0
  %132 = vmatpush2.msra.mxu0 %v71
  %133 = vmatprep.subr.mxu0 0.0
  %134 = vmatpush2.msra.mxu0 %v31
  %135 = vmatprep.subr.mxu0 0.0
  %136 = vmatpush2.msra.mxu0 %v30
  %137 = vmatprep.mubr.f32.mxu0 %v49
  %138 = vmatmul.mubr.f32.gmra.mxu0 %v33
  %v139 = vpop.f32.mrf.mxu0
  %v140 = vadd.f32 0.0, %v139
  %v141 = vpop.f32.mrf.mxu0
  %142 = vmatprep.mubr.f32.mxu0 %v52
  %143 = vmatmul.mubr.f32.gmra.mxu0 %v35
  %v144 = vpop.f32.mrf.mxu0
  %v145 = vadd.f32 0.0, %v144
  %v146 = vpop.f32.mrf.mxu0
  %147 = vmatprep.mubr.f32.mxu0 %v55
  %148 = vmatmul.mubr.f32.gmra.mxu0 %v37
  %v149 = vpop.f32.mrf.mxu0
  %v150 = vadd.f32 0.0, %v149
  %v151 = vpop.f32.mrf.mxu0
  %152 = vmatprep.mubr.f32.mxu0 %v58
  %153 = vmatmul.mubr.f32.gmra.mxu0 %v39
  %v154 = vpop.f32.mrf.mxu0
  %v155 = vadd.f32 0.0, %v154
  %v156 = vpop.f32.mrf.mxu0
  %157 = vmatprep.mubr.f32.mxu0 %v61
  %158 = vmatmul.mubr.f32.gmra.mxu0 %v41
  %v159 = vpop.f32.mrf.mxu0
  %v160 = vadd.f32 0.0, %v159
  %v161 = vpop.f32.mrf.mxu0
  %162 = vmatprep.mubr.f32.mxu0 %v64
  %163 = vmatmul.mubr.f32.gmra.mxu0 %v43
  %v164 = vpop.f32.mrf.mxu0
  %v165 = vadd.f32 0.0, %v164
  %v166 = vpop.f32.mrf.mxu0
  %167 = vmatprep.mubr.f32.mxu0 %v67
  %168 = vmatmul.mubr.f32.gmra.mxu0 %v45
  %v169 = vpop.f32.mrf.mxu0
  %v170 = vadd.f32 0.0, %v169
  %v171 = vpop.f32.mrf.mxu0
  %172 = vdwg.mxu0
  %s173 = scalar_lea.vmem %s0, 112
  %v174 = vld [vmem:[%s173] sm:$0xff]
  %v175 = vld [vmem:[%s173 + $0x8] sm:$0xff]
  %v176 = vld [vmem:[%s173 + $0x10] sm:$0xff]
  %v177 = vld [vmem:[%s173 + $0x18] sm:$0xff]
  %v178 = vld [vmem:[%s173 + $0x20] sm:$0xff]
  %v179 = vld [vmem:[%s173 + $0x28] sm:$0xff]
  %v180 = vld [vmem:[%s173 + $0x30] sm:$0xff]
  %v181 = vld [vmem:[%s173 + $0x38] sm:$0xff]
  %v182 = vld [vmem:[%s173 + $0x40] sm:$0xff]
  %v183 = vld [vmem:[%s173 + $0x48] sm:$0xff]
  %v184 = vld [vmem:[%s173 + $0x50] sm:$0xff]
  %v185 = vld [vmem:[%s173 + $0x58] sm:$0xff]
  %v186 = vld [vmem:[%s173 + $0x60] sm:$0x3]
  %v187 = vld [vmem:[%s173 + $0x68] sm:$0x3]
  %v189 = vsel %vm47, %v175, 0
  %v192 = vsel %vm47, %v177, 0
  %v195 = vsel %vm47, %v179, 0
  %v198 = vsel %vm47, %v181, 0
  %v201 = vsel %vm47, %v183, 0
  %v204 = vsel %vm47, %v185, 0
  %v207 = vsel %vm47, %v187, 0
  %209 = vmatprep.subr.mxu0 0.0
  %210 = vmatpush1.msra.mxu0 %v29
  %211 = vmatprep.subr.mxu0 0.0
  %212 = vmatpush1.msra.mxu0 %v28
  %213 = vmatprep.subr.mxu0 0.0
  %214 = vmatpush1.msra.mxu0 %v27
  %215 = vmatprep.subr.mxu0 0.0
  %216 = vmatpush1.msra.mxu0 %v26
  %217 = vmatprep.subr.mxu0 0.0
  %218 = vmatpush1.msra.mxu0 %v25
  %219 = vmatprep.subr.mxu0 0.0
  %220 = vmatpush1.msra.mxu0 %v24
  %221 = vmatprep.subr.mxu0 0.0
  %222 = vmatpush1.msra.mxu0 %v23
  %223 = vmatprep.subr.mxu0 0.0
  %224 = vmatpush1.msra.mxu0 %v22
  %225 = vmatprep.subr.mxu0 0.0
  %226 = vmatpush1.msra.mxu0 %v21
  %227 = vmatprep.subr.mxu0 0.0
  %228 = vmatpush1.msra.mxu0 %v20
  %229 = vmatprep.subr.mxu0 0.0
  %230 = vmatpush1.msra.mxu0 %v19
  %231 = vmatprep.subr.mxu0 0.0
  %232 = vmatpush1.msra.mxu0 %v18
  %233 = vmatprep.subr.mxu0 0.0
  %234 = vmatpush1.msra.mxu0 %v17
  %235 = vmatprep.subr.mxu0 0.0
  %236 = vmatpush1.msra.mxu0 %v16
  %237 = vmatprep.subr.mxu0 0.0
  %238 = vmatpush1.msra.mxu0 %v15
  %239 = vmatprep.subr.mxu0 0.0
  %240 = vmatpush1.msra.mxu0 %v14
  %241 = vmatprep.subr.mxu0 0.0
  %242 = vmatpush2.msra.mxu0 0.0
  %243 = vmatprep.subr.mxu0 0.0
  %244 = vmatpush2.msra.mxu0 0.0
  %245 = vmatprep.subr.mxu0 0.0
  %246 = vmatpush2.msra.mxu0 0.0
  %247 = vmatprep.subr.mxu0 0.0
  %248 = vmatpush2.msra.mxu0 0.0
  %249 = vmatprep.subr.mxu0 0.0
  %250 = vmatpush2.msra.mxu0 0.0
  %251 = vmatprep.subr.mxu0 0.0
  %252 = vmatpush2.msra.mxu0 0.0
  %253 = vmatprep.subr.mxu0 0.0
  %254 = vmatpush2.msra.mxu0 0.0
  %255 = vmatprep.subr.mxu0 0.0
  %256 = vmatpush2.msra.mxu0 0.0
  %257 = vmatprep.subr.mxu0 0.0
  %258 = vmatpush2.msra.mxu0 0.0
  %259 = vmatprep.subr.mxu0 0.0
  %260 = vmatpush2.msra.mxu0 0.0
  %261 = vmatprep.subr.mxu0 0.0
  %262 = vmatpush2.msra.mxu0 0.0
  %263 = vmatprep.subr.mxu0 0.0
  %264 = vmatpush2.msra.mxu0 0.0
  %265 = vmatprep.subr.mxu0 0.0
  %266 = vmatpush2.msra.mxu0 0.0
  %267 = vmatprep.subr.mxu0 0.0
  %268 = vmatpush2.msra.mxu0 %v71
  %269 = vmatprep.subr.mxu0 0.0
  %270 = vmatpush2.msra.mxu0 %v31
  %271 = vmatprep.subr.mxu0 0.0
  %272 = vmatpush2.msra.mxu0 %v30
  %273 = vmatprep.mubr.f32.mxu0 %v189
  %274 = vmatmul.mubr.f32.gmra.mxu0 %v174
  %v275 = vpop.f32.mrf.mxu0
  %v276 = vadd.f32 0.0, %v275
  %v277 = vpop.f32.mrf.mxu0
  %278 = vmatprep.mubr.f32.mxu0 %v192
  %279 = vmatmul.mubr.f32.gmra.mxu0 %v176
  %v280 = vpop.f32.mrf.mxu0
  %v281 = vadd.f32 0.0, %v280
  %v282 = vpop.f32.mrf.mxu0
  %283 = vmatprep.mubr.f32.mxu0 %v195
  %284 = vmatmul.mubr.f32.gmra.mxu0 %v178
  %v285 = vpop.f32.mrf.mxu0
  %v286 = vadd.f32 0.0, %v285
  %v287 = vpop.f32.mrf.mxu0
  %288 = vmatprep.mubr.f32.mxu0 %v198
  %289 = vmatmul.mubr.f32.gmra.mxu0 %v180
  %v290 = vpop.f32.mrf.mxu0
  %v291 = vadd.f32 0.0, %v290
  %v292 = vpop.f32.mrf.mxu0
  %293 = vmatprep.mubr.f32.mxu0 %v201
  %294 = vmatmul.mubr.f32.gmra.mxu0 %v182
  %v295 = vpop.f32.mrf.mxu0
  %v296 = vadd.f32 0.0, %v295
  %v297 = vpop.f32.mrf.mxu0
  %298 = vmatprep.mubr.f32.mxu0 %v204
  %299 = vmatmul.mubr.f32.gmra.mxu0 %v184
  %v300 = vpop.f32.mrf.mxu0
  %v301 = vadd.f32 0.0, %v300
  %v302 = vpop.f32.mrf.mxu0
  %303 = vmatprep.mubr.f32.mxu0 %v207
  %304 = vmatmul.mubr.f32.gmra.mxu0 %v186
  %v305 = vpop.f32.mrf.mxu0
  %v306 = vadd.f32 0.0, %v305
  %v307 = vpop.f32.mrf.mxu0
  %308 = vdwg.mxu0
  %s309 = scalar_lea.vmem %s0, 224
  %v310 = vld [vmem:[%s309] sm:$0xff]
  %v311 = vld [vmem:[%s309 + $0x8] sm:$0xff]
  %v312 = vld [vmem:[%s309 + $0x10] sm:$0xff]
  %v313 = vld [vmem:[%s309 + $0x18] sm:$0xff]
  %v314 = vld [vmem:[%s309 + $0x20] sm:$0xff]
  %v315 = vld [vmem:[%s309 + $0x28] sm:$0xff]
  %v316 = vld [vmem:[%s309 + $0x30] sm:$0xff]
  %v317 = vld [vmem:[%s309 + $0x38] sm:$0xff]
  %v318 = vld [vmem:[%s309 + $0x40] sm:$0xff]
  %v319 = vld [vmem:[%s309 + $0x48] sm:$0xff]
  %v320 = vld [vmem:[%s309 + $0x50] sm:$0xff]
  %v321 = vld [vmem:[%s309 + $0x58] sm:$0xff]
  %v322 = vld [vmem:[%s309 + $0x60] sm:$0x3]
  %v323 = vld [vmem:[%s309 + $0x68] sm:$0x3]
  %v325 = vsel %vm47, %v311, 0
  %v328 = vsel %vm47, %v313, 0
  %v331 = vsel %vm47, %v315, 0
  %v334 = vsel %vm47, %v317, 0
  %v337 = vsel %vm47, %v319, 0
  %v340 = vsel %vm47, %v321, 0
  %v343 = vsel %vm47, %v323, 0
  %345 = vmatprep.subr.mxu0 0.0
  %346 = vmatpush1.msra.mxu0 %v29
  %347 = vmatprep.subr.mxu0 0.0
  %348 = vmatpush1.msra.mxu0 %v28
  %349 = vmatprep.subr.mxu0 0.0
  %350 = vmatpush1.msra.mxu0 %v27
  %351 = vmatprep.subr.mxu0 0.0
  %352 = vmatpush1.msra.mxu0 %v26
  %353 = vmatprep.subr.mxu0 0.0
  %354 = vmatpush1.msra.mxu0 %v25
  %355 = vmatprep.subr.mxu0 0.0
  %356 = vmatpush1.msra.mxu0 %v24
  %357 = vmatprep.subr.mxu0 0.0
  %358 = vmatpush1.msra.mxu0 %v23
  %359 = vmatprep.subr.mxu0 0.0
  %360 = vmatpush1.msra.mxu0 %v22
  %361 = vmatprep.subr.mxu0 0.0
  %362 = vmatpush1.msra.mxu0 %v21
  %363 = vmatprep.subr.mxu0 0.0
  %364 = vmatpush1.msra.mxu0 %v20
  %365 = vmatprep.subr.mxu0 0.0
  %366 = vmatpush1.msra.mxu0 %v19
  %367 = vmatprep.subr.mxu0 0.0
  %368 = vmatpush1.msra.mxu0 %v18
  %369 = vmatprep.subr.mxu0 0.0
  %370 = vmatpush1.msra.mxu0 %v17
  %371 = vmatprep.subr.mxu0 0.0
  %372 = vmatpush1.msra.mxu0 %v16
  %373 = vmatprep.subr.mxu0 0.0
  %374 = vmatpush1.msra.mxu0 %v15
  %375 = vmatprep.subr.mxu0 0.0
  %376 = vmatpush1.msra.mxu0 %v14
  %377 = vmatprep.subr.mxu0 0.0
  %378 = vmatpush2.msra.mxu0 0.0
  %379 = vmatprep.subr.mxu0 0.0
  %380 = vmatpush2.msra.mxu0 0.0
  %381 = vmatprep.subr.mxu0 0.0
  %382 = vmatpush2.msra.mxu0 0.0
  %383 = vmatprep.subr.mxu0 0.0
  %384 = vmatpush2.msra.mxu0 0.0
  %385 = vmatprep.subr.mxu0 0.0
  %386 = vmatpush2.msra.mxu0 0.0
  %387 = vmatprep.subr.mxu0 0.0
  %388 = vmatpush2.msra.mxu0 0.0
  %389 = vmatprep.subr.mxu0 0.0
  %390 = vmatpush2.msra.mxu0 0.0
  %391 = vmatprep.subr.mxu0 0.0
  %392 = vmatpush2.msra.mxu0 0.0
  %393 = vmatprep.subr.mxu0 0.0
  %394 = vmatpush2.msra.mxu0 0.0
  %395 = vmatprep.subr.mxu0 0.0
  %396 = vmatpush2.msra.mxu0 0.0
  %397 = vmatprep.subr.mxu0 0.0
  %398 = vmatpush2.msra.mxu0 0.0
  %399 = vmatprep.subr.mxu0 0.0
  %400 = vmatpush2.msra.mxu0 0.0
  %401 = vmatprep.subr.mxu0 0.0
  %402 = vmatpush2.msra.mxu0 0.0
  %403 = vmatprep.subr.mxu0 0.0
  %404 = vmatpush2.msra.mxu0 %v71
  %405 = vmatprep.subr.mxu0 0.0
  %406 = vmatpush2.msra.mxu0 %v31
  %407 = vmatprep.subr.mxu0 0.0
  %408 = vmatpush2.msra.mxu0 %v30
  %409 = vmatprep.mubr.f32.mxu0 %v325
  %410 = vmatmul.mubr.f32.gmra.mxu0 %v310
  %v411 = vpop.f32.mrf.mxu0
  %v412 = vadd.f32 0.0, %v411
  %v413 = vpop.f32.mrf.mxu0
  %414 = vmatprep.mubr.f32.mxu0 %v328
  %415 = vmatmul.mubr.f32.gmra.mxu0 %v312
  %v416 = vpop.f32.mrf.mxu0
  %v417 = vadd.f32 0.0, %v416
  %v418 = vpop.f32.mrf.mxu0
  %419 = vmatprep.mubr.f32.mxu0 %v331
  %420 = vmatmul.mubr.f32.gmra.mxu0 %v314
  %v421 = vpop.f32.mrf.mxu0
  %v422 = vadd.f32 0.0, %v421
  %v423 = vpop.f32.mrf.mxu0
  %424 = vmatprep.mubr.f32.mxu0 %v334
  %425 = vmatmul.mubr.f32.gmra.mxu0 %v316
  %v426 = vpop.f32.mrf.mxu0
  %v427 = vadd.f32 0.0, %v426
  %v428 = vpop.f32.mrf.mxu0
  %429 = vmatprep.mubr.f32.mxu0 %v337
  %430 = vmatmul.mubr.f32.gmra.mxu0 %v318
  %v431 = vpop.f32.mrf.mxu0
  %v432 = vadd.f32 0.0, %v431
  %v433 = vpop.f32.mrf.mxu0
  %434 = vmatprep.mubr.f32.mxu0 %v340
  %435 = vmatmul.mubr.f32.gmra.mxu0 %v320
  %v436 = vpop.f32.mrf.mxu0
  %v437 = vadd.f32 0.0, %v436
  %v438 = vpop.f32.mrf.mxu0
  %439 = vmatprep.mubr.f32.mxu0 %v343
  %440 = vmatmul.mubr.f32.gmra.mxu0 %v322
  %v441 = vpop.f32.mrf.mxu0
  %v442 = vadd.f32 0.0, %v441
  %v443 = vpop.f32.mrf.mxu0
  %444 = vdwg.mxu0
  %s445 = scalar_lea.vmem %s0, 336
  %v446 = vld [vmem:[%s445] sm:$0xff]
  %v447 = vld [vmem:[%s445 + $0x8] sm:$0xff]
  %v448 = vld [vmem:[%s445 + $0x10] sm:$0xff]
  %v449 = vld [vmem:[%s445 + $0x18] sm:$0xff]
  %v450 = vld [vmem:[%s445 + $0x20] sm:$0xff]
  %v451 = vld [vmem:[%s445 + $0x28] sm:$0xff]
  %v452 = vld [vmem:[%s445 + $0x30] sm:$0xff]
  %v453 = vld [vmem:[%s445 + $0x38] sm:$0xff]
  %v454 = vld [vmem:[%s445 + $0x40] sm:$0xff]
  %v455 = vld [vmem:[%s445 + $0x48] sm:$0xff]
  %v456 = vld [vmem:[%s445 + $0x50] sm:$0xff]
  %v457 = vld [vmem:[%s445 + $0x58] sm:$0xff]
  %v458 = vld [vmem:[%s445 + $0x60] sm:$0x3]
  %v459 = vld [vmem:[%s445 + $0x68] sm:$0x3]
  %v461 = vsel %vm47, %v447, 0
  %v464 = vsel %vm47, %v449, 0
  %v467 = vsel %vm47, %v451, 0
  %v470 = vsel %vm47, %v453, 0
  %v473 = vsel %vm47, %v455, 0
  %v476 = vsel %vm47, %v457, 0
  %v479 = vsel %vm47, %v459, 0
  %481 = vmatprep.subr.mxu0 0.0
  %482 = vmatpush1.msra.mxu0 %v29
  %483 = vmatprep.subr.mxu0 0.0
  %484 = vmatpush1.msra.mxu0 %v28
  %485 = vmatprep.subr.mxu0 0.0
  %486 = vmatpush1.msra.mxu0 %v27
  %487 = vmatprep.subr.mxu0 0.0
  %488 = vmatpush1.msra.mxu0 %v26
  %489 = vmatprep.subr.mxu0 0.0
  %490 = vmatpush1.msra.mxu0 %v25
  %491 = vmatprep.subr.mxu0 0.0
  %492 = vmatpush1.msra.mxu0 %v24
  %493 = vmatprep.subr.mxu0 0.0
  %494 = vmatpush1.msra.mxu0 %v23
  %495 = vmatprep.subr.mxu0 0.0
  %496 = vmatpush1.msra.mxu0 %v22
  %497 = vmatprep.subr.mxu0 0.0
  %498 = vmatpush1.msra.mxu0 %v21
  %499 = vmatprep.subr.mxu0 0.0
  %500 = vmatpush1.msra.mxu0 %v20
  %501 = vmatprep.subr.mxu0 0.0
  %502 = vmatpush1.msra.mxu0 %v19
  %503 = vmatprep.subr.mxu0 0.0
  %504 = vmatpush1.msra.mxu0 %v18
  %505 = vmatprep.subr.mxu0 0.0
  %506 = vmatpush1.msra.mxu0 %v17
  %507 = vmatprep.subr.mxu0 0.0
  %508 = vmatpush1.msra.mxu0 %v16
  %509 = vmatprep.subr.mxu0 0.0
  %510 = vmatpush1.msra.mxu0 %v15
  %511 = vmatprep.subr.mxu0 0.0
  %512 = vmatpush1.msra.mxu0 %v14
  %513 = vmatprep.subr.mxu0 0.0
  %514 = vmatpush2.msra.mxu0 0.0
  %515 = vmatprep.subr.mxu0 0.0
  %516 = vmatpush2.msra.mxu0 0.0
  %517 = vmatprep.subr.mxu0 0.0
  %518 = vmatpush2.msra.mxu0 0.0
  %519 = vmatprep.subr.mxu0 0.0
  %520 = vmatpush2.msra.mxu0 0.0
  %521 = vmatprep.subr.mxu0 0.0
  %522 = vmatpush2.msra.mxu0 0.0
  %523 = vmatprep.subr.mxu0 0.0
  %524 = vmatpush2.msra.mxu0 0.0
  %525 = vmatprep.subr.mxu0 0.0
  %526 = vmatpush2.msra.mxu0 0.0
  %527 = vmatprep.subr.mxu0 0.0
  %528 = vmatpush2.msra.mxu0 0.0
  %529 = vmatprep.subr.mxu0 0.0
  %530 = vmatpush2.msra.mxu0 0.0
  %531 = vmatprep.subr.mxu0 0.0
  %532 = vmatpush2.msra.mxu0 0.0
  %533 = vmatprep.subr.mxu0 0.0
  %534 = vmatpush2.msra.mxu0 0.0
  %535 = vmatprep.subr.mxu0 0.0
  %536 = vmatpush2.msra.mxu0 0.0
  %537 = vmatprep.subr.mxu0 0.0
  %538 = vmatpush2.msra.mxu0 0.0
  %539 = vmatprep.subr.mxu0 0.0
  %540 = vmatpush2.msra.mxu0 %v71
  %541 = vmatprep.subr.mxu0 0.0
  %542 = vmatpush2.msra.mxu0 %v31
  %543 = vmatprep.subr.mxu0 0.0
  %544 = vmatpush2.msra.mxu0 %v30
  %545 = vmatprep.mubr.f32.mxu0 %v461
  %546 = vmatmul.mubr.f32.gmra.mxu0 %v446
  %v547 = vpop.f32.mrf.mxu0
  %v548 = vadd.f32 0.0, %v547
  %v549 = vpop.f32.mrf.mxu0
  %550 = vmatprep.mubr.f32.mxu0 %v464
  %551 = vmatmul.mubr.f32.gmra.mxu0 %v448
  %v552 = vpop.f32.mrf.mxu0
  %v553 = vadd.f32 0.0, %v552
  %v554 = vpop.f32.mrf.mxu0
  %555 = vmatprep.mubr.f32.mxu0 %v467
  %556 = vmatmul.mubr.f32.gmra.mxu0 %v450
  %v557 = vpop.f32.mrf.mxu0
  %v558 = vadd.f32 0.0, %v557
  %v559 = vpop.f32.mrf.mxu0
  %560 = vmatprep.mubr.f32.mxu0 %v470
  %561 = vmatmul.mubr.f32.gmra.mxu0 %v452
  %v562 = vpop.f32.mrf.mxu0
  %v563 = vadd.f32 0.0, %v562
  %v564 = vpop.f32.mrf.mxu0
  %565 = vmatprep.mubr.f32.mxu0 %v473
  %566 = vmatmul.mubr.f32.gmra.mxu0 %v454
  %v567 = vpop.f32.mrf.mxu0
  %v568 = vadd.f32 0.0, %v567
  %v569 = vpop.f32.mrf.mxu0
  %570 = vmatprep.mubr.f32.mxu0 %v476
  %571 = vmatmul.mubr.f32.gmra.mxu0 %v456
  %v572 = vpop.f32.mrf.mxu0
  %v573 = vadd.f32 0.0, %v572
  %v574 = vpop.f32.mrf.mxu0
  %575 = vmatprep.mubr.f32.mxu0 %v479
  %576 = vmatmul.mubr.f32.gmra.mxu0 %v458
  %v577 = vpop.f32.mrf.mxu0
  %v578 = vadd.f32 0.0, %v577
  %v579 = vpop.f32.mrf.mxu0
  %580 = vdwg.mxu0
  %v581 = vmax.f32 %v140, %v276
  %v582 = vmax.f32 %v145, %v281
  %v583 = vmax.f32 %v150, %v286
  %v584 = vmax.f32 %v155, %v291
  %v585 = vmax.f32 %v160, %v296
  %v586 = vmax.f32 %v165, %v301
  %v587 = vmax.f32 %v170, %v306
  %v588 = vmax.f32 %v412, %v548
  %v589 = vmax.f32 %v417, %v553
  %v590 = vmax.f32 %v422, %v558
  %v591 = vmax.f32 %v427, %v563
  %v592 = vmax.f32 %v432, %v568
  %v593 = vmax.f32 %v437, %v573
  %v594 = vmax.f32 %v442, %v578
  %v595 = vmax.f32 %v581, %v588
  %v596 = vmax.f32 %v582, %v589
  %v597 = vmax.f32 %v583, %v590
  %v598 = vmax.f32 %v584, %v591
  %v599 = vmax.f32 %v585, %v592
  %v600 = vmax.f32 %v586, %v593
  %v601 = vmax.f32 %v587, %v594
  %v602 = vld [vmem:[%s2] sm:$0x1]
  %v604 = vlaneseq
  %v605 = vshrl.u32 %v604, 7
  %v606 = vsub.s32 0, %v605
  %v607 = vrot.slane %v602, %v606
  %v609 = vadd.f32 %v595, %v607
  %v610 = vadd.f32 %v596, %v607
  %v611 = vadd.f32 %v597, %v607
  %v612 = vadd.f32 %v598, %v607
  %v613 = vadd.f32 %v599, %v607
  %v614 = vadd.f32 %v600, %v607
  %v615 = vadd.f32 %v601, %v607
  %v616 = vmax.f32 %v609, 0.0
  %v617 = vmax.f32 %v610, 0.0
  %v618 = vmax.f32 %v611, 0.0
  %v619 = vmax.f32 %v612, 0.0
  %v620 = vmax.f32 %v613, 0.0
  %v621 = vmax.f32 %v614, 0.0
  %v622 = vmax.f32 %v615, 0.0
  %vm623 = vcmask 130048
  %624 = vst.msk [vmem:[%s3] sm:$0xff] %vm623, %v616
  %625 = vst.msk [vmem:[%s3 + $0x8] sm:$0xff] %vm623, %v617
  %626 = vst.msk [vmem:[%s3 + $0x10] sm:$0xff] %vm623, %v618
  %627 = vst.msk [vmem:[%s3 + $0x18] sm:$0xff] %vm623, %v619
  %628 = vst.msk [vmem:[%s3 + $0x20] sm:$0xff] %vm623, %v620
  %629 = vst.msk [vmem:[%s3 + $0x28] sm:$0xff] %vm623, %v621
  %vm630 = vcmask 123904
  %631 = vst.msk [vmem:[%s3 + $0x30] sm:$0x3] %vm630, %v622
  // Predicated region
  $region14: #{spheric_cnn_forward.4} parent=0 // pred_check
    _
  $region15: #{spheric_cnn_forward.4} parent=0 // pred_check_branch
    %633 = sbr.rel (0) target = $region17
  $region16: #{spheric_cnn_forward.4} parent=0 // pred_region
    _
  $region17: #{spheric_cnn_forward.4} parent=0 // pred_fallthru
    _
  // Predicated region
  $region18: #{spheric_cnn_forward.4} parent=0 // pred_check
    _
  $region19: #{spheric_cnn_forward.4} parent=0 // pred_check_branch
    %635 = sbr.rel (0) target = $region21
  $region20: #{spheric_cnn_forward.4} parent=0 // pred_region
    _
  $region21: #{spheric_cnn_forward.4} parent=0 // pred_fallthru
    _

// kernel: spheric_cnn_forward.5
$region0: #{spheric_cnn_forward.5}
  #allocation0 [shape = 'u32[]', space=smem, size = 0x4, offset = 0x4, fixed_abs, tag = 'smem constant byte address 0x4 - core index']
  #allocation1 [shape = 'u32[144,128]{1,0:T(1,128)}', space=vmem, size = 0x12000, scoped, tag = 'internal scratch']
  %s0 = inlined_call_operand.vmem [shape: f32[2,400], index: 0, kind: input, shape index: {}]
  %s1 = inlined_call_operand.vmem [shape: f32[400,120], index: 1, kind: input, shape index: {}]
  %s2 = inlined_call_operand.vmem [shape: f32[1,120], index: 2, kind: input, shape index: {}]
  %s3 = inlined_call_operand.vmem [shape: f32[120,84], index: 3, kind: input, shape index: {}]
  %s4 = inlined_call_operand.vmem [shape: f32[1,84], index: 4, kind: input, shape index: {}]
  %s5 = inlined_call_operand.vmem [shape: f32[84,85], index: 5, kind: input, shape index: {}]
  %s6 = inlined_call_operand.vmem [shape: f32[1,85], index: 6, kind: input, shape index: {}]
  %s7 = inlined_call_operand.vmem [shape: f32[85,85], index: 7, kind: input, shape index: {}]
  %s8 = inlined_call_operand.vmem [shape: f32[85,10], index: 8, kind: input, shape index: {}]
  %s9 = inlined_call_operand.hbm [shape: f32[2,10], index: 9, kind: output, shape index: {}]
  %s10 = sld [smem:[#allocation0]]
  $region46: #{spheric_cnn_forward.5} parent=0
    _
  %s12 = ssub.s32 1, %s10
  %s13 = scalar_select 0, %s12, %s10
  $region1: #{spheric_cnn_forward.5} parent=0
    #allocation2 [shape = 'u8[1024]{0}', space=vmem, size = 0x400, scoped, tag = 'output window, operand 0, single buffered']
    #allocation3 [shape = 's32[1]{0}', space=sflag, size = 0x4, scoped, tag = 'scoped memory for spheric_cnn_forward.5']
    %14 = vsyncpa [#allocation3], 0
    // Predicated region
    $region2: #{spheric_cnn_forward.5} parent=1 // pred_check
      _
    $region3: #{spheric_cnn_forward.5} parent=1 // pred_check_branch
      %16 = sbr.rel (0) target = $region5
    $region4: #{spheric_cnn_forward.5} parent=1 // pred_region
      _
    $region5: #{spheric_cnn_forward.5} parent=1 // pred_fallthru
      _
    // Predicated region
    $region6: #{spheric_cnn_forward.5} parent=1 // pred_check
      _
    $region7: #{spheric_cnn_forward.5} parent=1 // pred_check_branch
      %18 = sbr.rel (0) target = $region9
    $region8: #{spheric_cnn_forward.5} parent=1 // pred_region
      _
    $region9: #{spheric_cnn_forward.5} parent=1 // pred_fallthru
      _
    // Predicated region
    $region10: #{spheric_cnn_forward.5} parent=1 // pred_check
      _
    $region11: #{spheric_cnn_forward.5} parent=1 // pred_check_branch
      %20 = sbr.rel (0) target = $region13
    $region12: #{spheric_cnn_forward.5} parent=1 // pred_region
      _
    $region13: #{spheric_cnn_forward.5} parent=1 // pred_fallthru
      _
    // Predicated region
    $region14: #{spheric_cnn_forward.5} parent=1 // pred_check
      _
    $region15: #{spheric_cnn_forward.5} parent=1 // pred_check_branch
      %22 = sbr.rel (0) target = $region17
    $region16: #{spheric_cnn_forward.5} parent=1 // pred_region
      _
    $region17: #{spheric_cnn_forward.5} parent=1 // pred_fallthru
      _
    // Predicated region
    $region18: #{spheric_cnn_forward.5} parent=1 // pred_check
      _
    $region19: #{spheric_cnn_forward.5} parent=1 // pred_check_branch
      %24 = sbr.rel (0) target = $region21
    $region20: #{spheric_cnn_forward.5} parent=1 // pred_region
      _
    $region21: #{spheric_cnn_forward.5} parent=1 // pred_fallthru
      _
    // Predicated region
    $region22: #{spheric_cnn_forward.5} parent=1 // pred_check
      _
    $region23: #{spheric_cnn_forward.5} parent=1 // pred_check_branch
      %26 = sbr.rel (0) target = $region25
    $region24: #{spheric_cnn_forward.5} parent=1 // pred_region
      _
    $region25: #{spheric_cnn_forward.5} parent=1 // pred_fallthru
      _
    // Predicated region
    $region26: #{spheric_cnn_forward.5} parent=1 // pred_check
      _
    $region27: #{spheric_cnn_forward.5} parent=1 // pred_check_branch
      %28 = sbr.rel (0) target = $region29
    $region28: #{spheric_cnn_forward.5} parent=1 // pred_region
      _
    $region29: #{spheric_cnn_forward.5} parent=1 // pred_fallthru
      _
    // Predicated region
    $region30: #{spheric_cnn_forward.5} parent=1 // pred_check
      _
    $region31: #{spheric_cnn_forward.5} parent=1 // pred_check_branch
      %30 = sbr.rel (0) target = $region33
    $region32: #{spheric_cnn_forward.5} parent=1 // pred_region
      _
    $region33: #{spheric_cnn_forward.5} parent=1 // pred_fallthru
      _
    // Predicated region
    $region34: #{spheric_cnn_forward.5} parent=1 // pred_check
      _
    $region35: #{spheric_cnn_forward.5} parent=1 // pred_check_branch
      %32 = sbr.rel (0) target = $region37
    $region36: #{spheric_cnn_forward.5} parent=1 // pred_region
      _
    $region37: #{spheric_cnn_forward.5} parent=1 // pred_fallthru
      _
    %v33 = vld [vmem:[%s0] sm:$0xff]
    %v34 = vld [vmem:[%s1] sm:$0xff]
    %v35 = vld [vmem:[%s1 + $0x8] sm:$0xff]
    %v36 = vld [vmem:[%s1 + $0x10] sm:$0xff]
    %v37 = vld [vmem:[%s1 + $0x18] sm:$0xff]
    %v38 = vld [vmem:[%s1 + $0x20] sm:$0xff]
    %v39 = vld [vmem:[%s1 + $0x28] sm:$0xff]
    %v40 = vld [vmem:[%s1 + $0x30] sm:$0xff]
    %v41 = vld [vmem:[%s1 + $0x38] sm:$0xff]
    %v42 = vld [vmem:[%s1 + $0x40] sm:$0xff]
    %v43 = vld [vmem:[%s1 + $0x48] sm:$0xff]
    %v44 = vld [vmem:[%s1 + $0x50] sm:$0xff]
    %v45 = vld [vmem:[%s1 + $0x58] sm:$0xff]
    %v46 = vld [vmem:[%s1 + $0x60] sm:$0xff]
    %v47 = vld [vmem:[%s1 + $0x68] sm:$0xff]
    %v48 = vld [vmem:[%s1 + $0x70] sm:$0xff]
    %v49 = vld [vmem:[%s1 + $0x78] sm:$0xff]
    %v50 = vld [vmem:[%s1 + $0x80] sm:$0xff]
    %v51 = vld [vmem:[%s1 + $0x88] sm:$0xff]
    %v52 = vld [vmem:[%s1 + $0x90] sm:$0xff]
    %v53 = vld [vmem:[%s1 + $0x98] sm:$0xff]
    %v54 = vld [vmem:[%s1 + $0xa0] sm:$0xff]
    %v55 = vld [vmem:[%s1 + $0xa8] sm:$0xff]
    %v56 = vld [vmem:[%s1 + $0xb0] sm:$0xff]
    %v57 = vld [vmem:[%s1 + $0xb8] sm:$0xff]
    %v58 = vld [vmem:[%s1 + $0xc0] sm:$0xff]
    %v59 = vld [vmem:[%s1 + $0xc8] sm:$0xff]
    %v60 = vld [vmem:[%s1 + $0xd0] sm:$0xff]
    %v61 = vld [vmem:[%s1 + $0xd8] sm:$0xff]
    %v62 = vld [vmem:[%s1 + $0xe0] sm:$0xff]
    %v63 = vld [vmem:[%s1 + $0xe8] sm:$0xff]
    %v64 = vld [vmem:[%s1 + $0xf0] sm:$0xff]
    %v65 = vld [vmem:[%s1 + $0xf8] sm:$0xff]
    %v66 = vld [vmem:[%s1 + $0x100] sm:$0xff]
    %v67 = vld [vmem:[%s1 + $0x108] sm:$0xff]
    %v68 = vld [vmem:[%s1 + $0x110] sm:$0xff]
    %v69 = vld [vmem:[%s1 + $0x118] sm:$0xff]
    %v70 = vld [vmem:[%s1 + $0x120] sm:$0xff]
    %v71 = vld [vmem:[%s1 + $0x128] sm:$0xff]
    %v72 = vld [vmem:[%s1 + $0x130] sm:$0xff]
    %v73 = vld [vmem:[%s1 + $0x138] sm:$0xff]
    %v74 = vld [vmem:[%s1 + $0x140] sm:$0xff]
    %v75 = vld [vmem:[%s1 + $0x148] sm:$0xff]
    %v76 = vld [vmem:[%s1 + $0x150] sm:$0xff]
    %v77 = vld [vmem:[%s1 + $0x158] sm:$0xff]
    %v78 = vld [vmem:[%s1 + $0x160] sm:$0xff]
    %v79 = vld [vmem:[%s1 + $0x168] sm:$0xff]
    %v80 = vld [vmem:[%s1 + $0x170] sm:$0xff]
    %v81 = vld [vmem:[%s1 + $0x178] sm:$0xff]
    %v82 = vld [vmem:[%s1 + $0x180] sm:$0xff]
    %v83 = vld [vmem:[%s1 + $0x188] sm:$0xff]
    %v84 = vld [vmem:[%s2] sm:$0x1]
    %v86 = vlaneseq
    %v87 = vshrl.u32 %v86, 7
    %v88 = vsub.s32 0, %v87
    %v89 = vrot.slane %v84, %v88
    %v92 = vcombine.high %v33, %v33
    %v94 = vunpack.c.l.s4 1983009808
    %v95 = vunpack.c.0.s8 %v94
    %v96 = vlaneseq
    %v97 = vshrl.u32 %v96, 7
    %v98 = vsub.s32 %v95, %v97
    %v99 = vrot.slane %v33, %v98
    %v101 = vunpack.c.l.s4 1983009808
    %v102 = vunpack.c.0.s8 %v101
    %v103 = vlaneseq
    %v104 = vshrl.u32 %v103, 7
    %v105 = vsub.s32 %v102, %v104
    %v106 = vrot.slane %v92, %v105
    %v107 = vcombine.high %v99, %v99
    %v108 = vcombine.high %v106, %v106
    %vm112 = vcmask 130048
    %v113 = vsel %vm112, %v108, 0
    %115 = vmatprep.subr.mxu0 0.0
    %116 = vmatpush1.msra.mxu0 %v49
    %117 = vmatprep.subr.mxu0 0.0
    %118 = vmatpush1.msra.mxu0 %v48
    %119 = vmatprep.subr.mxu0 0.0
    %120 = vmatpush1.msra.mxu0 %v47
    %121 = vmatprep.subr.mxu0 0.0
    %122 = vmatpush1.msra.mxu0 %v46
    %123 = vmatprep.subr.mxu0 0.0
    %124 = vmatpush1.msra.mxu0 %v45
    %125 = vmatprep.subr.mxu0 0.0
    %126 = vmatpush1.msra.mxu0 %v44
    %127 = vmatprep.subr.mxu0 0.0
    %128 = vmatpush1.msra.mxu0 %v43
    %129 = vmatprep.subr.mxu0 0.0
    %130 = vmatpush1.msra.mxu0 %v42
    %131 = vmatprep.subr.mxu0 0.0
    %132 = vmatpush1.msra.mxu0 %v41
    %133 = vmatprep.subr.mxu0 0.0
    %134 = vmatpush1.msra.mxu0 %v40
    %135 = vmatprep.subr.mxu0 0.0
    %136 = vmatpush1.msra.mxu0 %v39
    %137 = vmatprep.subr.mxu0 0.0
    %138 = vmatpush1.msra.mxu0 %v38
    %139 = vmatprep.subr.mxu0 0.0
    %140 = vmatpush1.msra.mxu0 %v37
    %141 = vmatprep.subr.mxu0 0.0
    %142 = vmatpush1.msra.mxu0 %v36
    %143 = vmatprep.subr.mxu0 0.0
    %144 = vmatpush1.msra.mxu0 %v35
    %145 = vmatprep.subr.mxu0 0.0
    %146 = vmatpush1.msra.mxu0 %v34
    %147 = vmatprep.subr.mxu0 0.0
    %148 = vmatpush2.msra.mxu0 %v65
    %149 = vmatprep.subr.mxu0 0.0
    %150 = vmatpush2.msra.mxu0 %v64
    %151 = vmatprep.subr.mxu0 0.0
    %152 = vmatpush2.msra.mxu0 %v63
    %153 = vmatprep.subr.mxu0 0.0
    %154 = vmatpush2.msra.mxu0 %v62
    %155 = vmatprep.subr.mxu0 0.0
    %156 = vmatpush2.msra.mxu0 %v61
    %157 = vmatprep.subr.mxu0 0.0
    %158 = vmatpush2.msra.mxu0 %v60
    %159 = vmatprep.subr.mxu0 0.0
    %160 = vmatpush2.msra.mxu0 %v59
    %161 = vmatprep.subr.mxu0 0.0
    %162 = vmatpush2.msra.mxu0 %v58
    %163 = vmatprep.subr.mxu0 0.0
    %164 = vmatpush2.msra.mxu0 %v57
    %165 = vmatprep.subr.mxu0 0.0
    %166 = vmatpush2.msra.mxu0 %v56
    %167 = vmatprep.subr.mxu0 0.0
    %168 = vmatpush2.msra.mxu0 %v55
    %169 = vmatprep.subr.mxu0 0.0
    %170 = vmatpush2.msra.mxu0 %v54
    %171 = vmatprep.subr.mxu0 0.0
    %172 = vmatpush2.msra.mxu0 %v53
    %173 = vmatprep.subr.mxu0 0.0
    %174 = vmatpush2.msra.mxu0 %v52
    %175 = vmatprep.subr.mxu0 0.0
    %176 = vmatpush2.msra.mxu0 %v51
    %177 = vmatprep.subr.mxu0 0.0
    %178 = vmatpush2.msra.mxu0 %v50
    %179 = vmatprep.mubr.f32.mxu0 %v107
    %180 = vmatmul.mubr.f32.gmra.mxu0 %v99
    %v181 = vpop.f32.mrf.mxu0
    %v182 = vadd.f32 %v89, %v181
    %v183 = vpop.f32.mrf.mxu0
    %184 = vdwg.mxu0
    %185 = vmatprep.subr.mxu0 0.0
    %186 = vmatpush1.msra.mxu0 %v81
    %187 = vmatprep.subr.mxu0 0.0
    %188 = vmatpush1.msra.mxu0 %v80
    %189 = vmatprep.subr.mxu0 0.0
    %190 = vmatpush1.msra.mxu0 %v79
    %191 = vmatprep.subr.mxu0 0.0
    %192 = vmatpush1.msra.mxu0 %v78
    %193 = vmatprep.subr.mxu0 0.0
    %194 = vmatpush1.msra.mxu0 %v77
    %195 = vmatprep.subr.mxu0 0.0
    %196 = vmatpush1.msra.mxu0 %v76
    %197 = vmatprep.subr.mxu0 0.0
    %198 = vmatpush1.msra.mxu0 %v75
    %199 = vmatprep.subr.mxu0 0.0
    %200 = vmatpush1.msra.mxu0 %v74
    %201 = vmatprep.subr.mxu0 0.0
    %202 = vmatpush1.msra.mxu0 %v73
    %203 = vmatprep.subr.mxu0 0.0
    %204 = vmatpush1.msra.mxu0 %v72
    %205 = vmatprep.subr.mxu0 0.0
    %206 = vmatpush1.msra.mxu0 %v71
    %207 = vmatprep.subr.mxu0 0.0
    %208 = vmatpush1.msra.mxu0 %v70
    %209 = vmatprep.subr.mxu0 0.0
    %210 = vmatpush1.msra.mxu0 %v69
    %211 = vmatprep.subr.mxu0 0.0
    %212 = vmatpush1.msra.mxu0 %v68
    %213 = vmatprep.subr.mxu0 0.0
    %214 = vmatpush1.msra.mxu0 %v67
    %215 = vmatprep.subr.mxu0 0.0
    %216 = vmatpush1.msra.mxu0 %v66
    %217 = vmatprep.subr.mxu0 0.0
    %218 = vmatpush2.msra.mxu0 0.0
    %219 = vmatprep.subr.mxu0 0.0
    %220 = vmatpush2.msra.mxu0 0.0
    %221 = vmatprep.subr.mxu0 0.0
    %222 = vmatpush2.msra.mxu0 0.0
    %223 = vmatprep.subr.mxu0 0.0
    %224 = vmatpush2.msra.mxu0 0.0
    %225 = vmatprep.subr.mxu0 0.0
    %226 = vmatpush2.msra.mxu0 0.0
    %227 = vmatprep.subr.mxu0 0.0
    %228 = vmatpush2.msra.mxu0 0.0
    %229 = vmatprep.subr.mxu0 0.0
    %230 = vmatpush2.msra.mxu0 0.0
    %231 = vmatprep.subr.mxu0 0.0
    %232 = vmatpush2.msra.mxu0 0.0
    %233 = vmatprep.subr.mxu0 0.0
    %234 = vmatpush2.msra.mxu0 0.0
    %235 = vmatprep.subr.mxu0 0.0
    %236 = vmatpush2.msra.mxu0 0.0
    %237 = vmatprep.subr.mxu0 0.0
    %238 = vmatpush2.msra.mxu0 0.0
    %239 = vmatprep.subr.mxu0 0.0
    %240 = vmatpush2.msra.mxu0 0.0
    %241 = vmatprep.subr.mxu0 0.0
    %242 = vmatpush2.msra.mxu0 0.0
    %243 = vmatprep.subr.mxu0 0.0
    %244 = vmatpush2.msra.mxu0 0.0
    %245 = vmatprep.subr.mxu0 0.0
    %246 = vmatpush2.msra.mxu0 %v83
    %247 = vmatprep.subr.mxu0 0.0
    %248 = vmatpush2.msra.mxu0 %v82
    %249 = vmatprep.mubr.f32.mxu0 %v113
    %250 = vmatmul.mubr.f32.gmra.mxu0 %v106
    %v251 = vpop.f32.mrf.mxu0
    %v252 = vadd.f32 %v182, %v251
    %v253 = vpop.f32.mrf.mxu0
    %254 = vdwg.mxu0
    %v255 = vmax.f32 %v252, 0.0
    %v256 = vld [vmem:[%s3] sm:$0xff]
    %v257 = vld [vmem:[%s3 + $0x8] sm:$0xff]
    %v258 = vld [vmem:[%s3 + $0x10] sm:$0xff]
    %v259 = vld [vmem:[%s3 + $0x18] sm:$0xff]
    %v260 = vld [vmem:[%s3 + $0x20] sm:$0xff]
    %v261 = vld [vmem:[%s3 + $0x28] sm:$0xff]
    %v262 = vld [vmem:[%s3 + $0x30] sm:$0xff]
    %v263 = vld [vmem:[%s3 + $0x38] sm:$0xff]
    %v264 = vld [vmem:[%s3 + $0x40] sm:$0xff]
    %v265 = vld [vmem:[%s3 + $0x48] sm:$0xff]
    %v266 = vld [vmem:[%s3 + $0x50] sm:$0xff]
    %v267 = vld [vmem:[%s3 + $0x58] sm:$0xff]
    %v268 = vld [vmem:[%s3 + $0x60] sm:$0xff]
    %v269 = vld [vmem:[%s3 + $0x68] sm:$0xff]
    %v270 = vld [vmem:[%s3 + $0x70] sm:$0xff]
    %v271 = vld [vmem:[%s4] sm:$0x1]
    %v273 = vlaneseq
    %v274 = vshrl.u32 %v273, 7
    %v275 = vsub.s32 0, %v274
    %v276 = vrot.slane %v271, %v275
    %vm278 = vcmask 982016
    %v280 = vsel %vm278, %v255, 0
    %282 = vmatprep.subr.mxu0 0.0
    %283 = vmatpush1.msra.mxu0 0.0
    %284 = vmatprep.subr.mxu0 0.0
    %285 = vmatpush1.msra.mxu0 %v270
    %286 = vmatprep.subr.mxu0 0.0
    %287 = vmatpush1.msra.mxu0 %v269
    %288 = vmatprep.subr.mxu0 0.0
    %289 = vmatpush1.msra.mxu0 %v268
    %290 = vmatprep.subr.mxu0 0.0
    %291 = vmatpush1.msra.mxu0 %v267
    %292 = vmatprep.subr.mxu0 0.0
    %293 = vmatpush1.msra.mxu0 %v266
    %294 = vmatprep.subr.mxu0 0.0
    %295 = vmatpush1.msra.mxu0 %v265
    %296 = vmatprep.subr.mxu0 0.0
    %297 = vmatpush1.msra.mxu0 %v264
    %298 = vmatprep.subr.mxu0 0.0
    %299 = vmatpush1.msra.mxu0 %v263
    %300 = vmatprep.subr.mxu0 0.0
    %301 = vmatpush1.msra.mxu0 %v262
    %302 = vmatprep.subr.mxu0 0.0
    %303 = vmatpush1.msra.mxu0 %v261
    %304 = vmatprep.subr.mxu0 0.0
    %305 = vmatpush1.msra.mxu0 %v260
    %306 = vmatprep.subr.mxu0 0.0
    %307 = vmatpush1.msra.mxu0 %v259
    %308 = vmatprep.subr.mxu0 0.0
    %309 = vmatpush1.msra.mxu0 %v258
    %310 = vmatprep.subr.mxu0 0.0
    %311 = vmatpush1.msra.mxu0 %v257
    %312 = vmatprep.subr.mxu0 0.0
    %313 = vmatpush1.msra.mxu0 %v256
    %314 = vmatprep.subr.mxu0 0.0
    %315 = vmatpush2.msra.mxu0 0.0
    %316 = vmatprep.subr.mxu0 0.0
    %317 = vmatpush2.msra.mxu0 0.0
    %318 = vmatprep.subr.mxu0 0.0
    %319 = vmatpush2.msra.mxu0 0.0
    %320 = vmatprep.subr.mxu0 0.0
    %321 = vmatpush2.msra.mxu0 0.0
    %322 = vmatprep.subr.mxu0 0.0
    %323 = vmatpush2.msra.mxu0 0.0
    %324 = vmatprep.subr.mxu0 0.0
    %325 = vmatpush2.msra.mxu0 0.0
    %326 = vmatprep.subr.mxu0 0.0
    %327 = vmatpush2.msra.mxu0 0.0
    %328 = vmatprep.subr.mxu0 0.0
    %329 = vmatpush2.msra.mxu0 0.0
    %330 = vmatprep.subr.mxu0 0.0
    %331 = vmatpush2.msra.mxu0 0.0
    %332 = vmatprep.subr.mxu0 0.0
    %333 = vmatpush2.msra.mxu0 0.0
    %334 = vmatprep.subr.mxu0 0.0
    %335 = vmatpush2.msra.mxu0 0.0
    %336 = vmatprep.subr.mxu0 0.0
    %337 = vmatpush2.msra.mxu0 0.0
    %338 = vmatprep.subr.mxu0 0.0
    %339 = vmatpush2.msra.mxu0 0.0
    %340 = vmatprep.subr.mxu0 0.0
    %341 = vmatpush2.msra.mxu0 0.0
    %342 = vmatprep.subr.mxu0 0.0
    %343 = vmatpush2.msra.mxu0 0.0
    %344 = vmatprep.subr.mxu0 0.0
    %345 = vmatpush2.msra.mxu0 0.0
    %346 = vmatprep.mubr.f32.mxu0 0.0
    %347 = vmatmul.mubr.f32.gmra.mxu0 %v280
    %v348 = vpop.f32.mrf.mxu0
    %v349 = vadd.f32 %v276, %v348
    %v350 = vpop.f32.mrf.mxu0
    %351 = vdwg.mxu0
    %v352 = vsub.f32 0.0, %v349
    %v353 = vmul.f32 %v352, 1.442695
    %v354 = vpow.pop %v353
    %v355 = vadd.f32 %v354, 1.0
    %v356 = vrcp.pop %v355
    %v357 = vmul.f32 %v356, 0.55794847
    %v358 = vadd.f32 %v357, 1.0128475
    %v359 = vld [vmem:[%s5] sm:$0xff]
    %v360 = vld [vmem:[%s5 + $0x8] sm:$0xff]
    %v361 = vld [vmem:[%s5 + $0x10] sm:$0xff]
    %v362 = vld [vmem:[%s5 + $0x18] sm:$0xff]
    %v363 = vld [vmem:[%s5 + $0x20] sm:$0xff]
    %v364 = vld [vmem:[%s5 + $0x28] sm:$0xff]
    %v365 = vld [vmem:[%s5 + $0x30] sm:$0xff]
    %v366 = vld [vmem:[%s5 + $0x38] sm:$0xff]
    %v367 = vld [vmem:[%s5 + $0x40] sm:$0xff]
    %v368 = vld [vmem:[%s5 + $0x48] sm:$0xff]
    %v369 = vld [vmem:[%s5 + $0x50] sm:$0xf]
    %vm370 = vcmask 687104
    %v372 = vsel %vm370, %v358, 0
    %vm374 = vcmask 1043456
    %v376 = vsel %vm374, %v369, 0
    %378 = vmatprep.subr.mxu0 0.0
    %379 = vmatpush1.msra.mxu0 0.0
    %380 = vmatprep.subr.mxu0 0.0
    %381 = vmatpush1.msra.mxu0 0.0
    %382 = vmatprep.subr.mxu0 0.0
    %383 = vmatpush1.msra.mxu0 0.0
    %384 = vmatprep.subr.mxu0 0.0
    %385 = vmatpush1.msra.mxu0 0.0
    %386 = vmatprep.subr.mxu0 0.0
    %387 = vmatpush1.msra.mxu0 0.0
    %388 = vmatprep.subr.mxu0 0.0
    %389 = vmatpush1.msra.mxu0 %v376
    %390 = vmatprep.subr.mxu0 0.0
    %391 = vmatpush1.msra.mxu0 %v368
    %392 = vmatprep.subr.mxu0 0.0
    %393 = vmatpush1.msra.mxu0 %v367
    %394 = vmatprep.subr.mxu0 0.0
    %395 = vmatpush1.msra.mxu0 %v366
    %396 = vmatprep.subr.mxu0 0.0
    %397 = vmatpush1.msra.mxu0 %v365
    %398 = vmatprep.subr.mxu0 0.0
    %399 = vmatpush1.msra.mxu0 %v364
    %400 = vmatprep.subr.mxu0 0.0
    %401 = vmatpush1.msra.mxu0 %v363
    %402 = vmatprep.subr.mxu0 0.0
    %403 = vmatpush1.msra.mxu0 %v362
    %404 = vmatprep.subr.mxu0 0.0
    %405 = vmatpush1.msra.mxu0 %v361
    %406 = vmatprep.subr.mxu0 0.0
    %407 = vmatpush1.msra.mxu0 %v360
    %408 = vmatprep.subr.mxu0 0.0
    %409 = vmatpush1.msra.mxu0 %v359
    %410 = vmatprep.subr.mxu0 0.0
    %411 = vmatpush2.msra.mxu0 0.0
    %412 = vmatprep.subr.mxu0 0.0
    %413 = vmatpush2.msra.mxu0 0.0
    %414 = vmatprep.subr.mxu0 0.0
    %415 = vmatpush2.msra.mxu0 0.0
    %416 = vmatprep.subr.mxu0 0.0
    %417 = vmatpush2.msra.mxu0 0.0
    %418 = vmatprep.subr.mxu0 0.0
    %419 = vmatpush2.msra.mxu0 0.0
    %420 = vmatprep.subr.mxu0 0.0
    %421 = vmatpush2.msra.mxu0 0.0
    %422 = vmatprep.subr.mxu0 0.0
    %423 = vmatpush2.msra.mxu0 0.0
    %424 = vmatprep.subr.mxu0 0.0
    %425 = vmatpush2.msra.mxu0 0.0
    %426 = vmatprep.subr.mxu0 0.0
    %427 = vmatpush2.msra.mxu0 0.0
    %428 = vmatprep.subr.mxu0 0.0
    %429 = vmatpush2.msra.mxu0 0.0
    %430 = vmatprep.subr.mxu0 0.0
    %431 = vmatpush2.msra.mxu0 0.0
    %432 = vmatprep.subr.mxu0 0.0
    %433 = vmatpush2.msra.mxu0 0.0
    %434 = vmatprep.subr.mxu0 0.0
    %435 = vmatpush2.msra.mxu0 0.0
    %436 = vmatprep.subr.mxu0 0.0
    %437 = vmatpush2.msra.mxu0 0.0
    %438 = vmatprep.subr.mxu0 0.0
    %439 = vmatpush2.msra.mxu0 0.0
    %440 = vmatprep.subr.mxu0 0.0
    %441 = vmatpush2.msra.mxu0 0.0
    %442 = vmatprep.mubr.f32.mxu0 0.0
    %443 = vmatmul.mubr.f32.gmra.mxu0 %v372
    %v444 = vpop.f32.mrf.mxu0
    %v445 = vadd.f32 0.0, %v444
    %v446 = vpop.f32.mrf.mxu0
    %447 = vdwg.mxu0
    %v448 = vand.u32 2147483647, %v445
    %vm449 = vcmp.le.f32.partialorder %v448, 0.7853982
    %vm450 = vcmp.lt.s32.totalorder %v445, 0
    %v451 = vand.u32 %v445, 2139095040
    %v452 = vshrl.u32 %v451, 23
    %v453 = vsub.s32 %v452, 127
    %v454 = vand.u32 2147483647, %v445
    %v455 = vand.u32 %v454, 8388607
    %v456 = vor.u32 %v455, 8388608
    %v457 = vsub.s32 0, %v456
    %v458 = vadd.s32 %v453, 1
    %vm459 = vcmp.gt.s32.totalorder %v458, 0
    %v460 = vsel %vm459, %v458, 0
    %v461 = vshrl.u32 %v460, 5
    %v462 = vand.u32 %v460, 31
    %v463 = vsub.s32 32, %v462
    %v464 = vshrl.u32 683565275, %v463
    %v465 = vshll.u32 683565275, %v462
    %v466 = vshrl.u32 2475754826, %v463
    %v467 = vor.u32 %v465, %v466
    %v468 = vshll.u32 2475754826, %v462
    %v469 = vshrl.u32 2131351028, %v463
    %v470 = vor.u32 %v468, %v469
    %v471 = vshll.u32 2131351028, %v462
    %v472 = vshrl.u32 2102212464, %v463
    %v473 = vor.u32 %v471, %v472
    %v474 = vshll.u32 2102212464, %v462
    %v475 = vshrl.u32 920167782, %v463
    %v476 = vor.u32 %v474, %v475
    %v477 = vshll.u32 920167782, %v462
    %v478 = vshrl.u32 1326507024, %v463
    %v479 = vor.u32 %v477, %v478
    %vm480 = vcmp.lt.s32.totalorder %v461, 1
    %vm481 = vcmp.lt.s32.totalorder %v461, 2
    %vm482 = vcmp.lt.s32.totalorder %v461, 3
    %vm483 = vcmp.lt.s32.totalorder %v461, 4
    %v484 = vsel %vm480, %v464, %v467
    %v485 = vsel %vm483, %v473, 2102212464
    %v486 = vsel %vm482, %v470, %v485
    %v487 = vsel %vm481, %v484, %v486
    %v488 = vsel %vm480, %v467, %v470
    %v489 = vsel %vm483, %v476, 920167782
    %v490 = vsel %vm482, %v473, %v489
    %v491 = vsel %vm481, %v488, %v490
    %v492 = vsel %vm480, %v470, %v473
    %v493 = vsel %vm483, %v479, 1326507024
    %v494 = vsel %vm482, %v476, %v493
    %v495 = vsel %vm481, %v492, %v494
    %v496 = vshll.u32 %v456, 8
    %v497 = vmul.u32.u64.compose %v496, %v495
    %v498 = vextract.low.u32 %v497
    %v499 = vextract.high.u32 %v497
    %v500 = vmul.u32.u64.compose %v496, %v491
    %v501 = vextract.low.u32 %v500
    %v502 = vextract.high.u32 %v500
    %v503 = vmul.u32 %v496, %v487
    %v504 = vadd.s32 %v499, %v501
    %vm505 = vc.u32 %v499, %v501
    %v506 = vadd.s32 %v502, 1
    %v507 = vsel %vm505, %v506, %v502
    %v508 = vadd.s32 %v503, %v507
    %v509 = vadd.s32 %v508, 536870912
    %v510 = vshrl.u32 %v509, 30
    %v511 = vshll.u32 %v510, 30
    %v512 = vsub.s32 %v508, %v511
    %vm513 = vcmp.lt.s32.totalorder %v512, 0
    %v514 = vsub.s32 0, %v512
    %v515 = vsel %vm513, %v514, %v512
    %v516 = vclz %v515
    %v517 = vsub.s32 %v516, 2
    %vm518 = vcmp.gt.s32.totalorder 0, %v517
    %v519 = vsel %vm518, 0, %v517
    %v520 = vsub.s32 32, %v519
    %v521 = vshll.u32 %v512, %v519
    %v522 = vshrl.u32 %v504, %v520
    %v523 = vor.u32 %v521, %v522
    %v524 = vsub.s32 4294967266, %v519
    %v525 = vadd.s32 %v524, 127
    %v526 = vshll.u32 %v525, 23
    %v527 = vor.u32 4788187, %v526
    %v528 = vand.u32 2147483647, %v527
    %v530 = vcvt.s32.f32 %v523
    %v531 = vmul.f32 %v530, %v528
    %v532 = vxor.u32 %v531, 2147483648
    %v533 = vsel %vm450, %v532, %v531
    %v534 = vsub.s32 4, %v510
    %v535 = vsel %vm450, %v534, %v510
    %v536 = vsel %vm449, %v445, %v533
    %v537 = vsel %vm449, 0, %v535
    %v538 = vcosq.f32.pop %v536
    %v539 = vsinq.f32.pop %v536
    %vm540 = vweird.f32 %v445
    %v541 = vadd.s32 %v537, 3
    %v542 = vand.u32 %v541, 3
    %vm543 = vcmp.lt.s32.totalorder %v542, 2
    %vm544 = vcmp.eq.s32.totalorder %v542, 0
    %v545 = vxor.u32 %v539, 2147483648
    %v546 = vsel %vm544, %v538, %v545
    %vm547 = vcmp.eq.s32.totalorder %v542, 2
    %v548 = vxor.u32 %v538, 2147483648
    %v549 = vsel %vm547, %v548, %v539
    %v550 = vsel %vm543, %v546, %v549
    %v551 = vsel %vm540, nan, %v550
    %v552 = vld [vmem:[%s6] sm:$0x1]
    %v554 = vlaneseq
    %v555 = vshrl.u32 %v554, 7
    %v556 = vsub.s32 0, %v555
    %v557 = vrot.slane %v552, %v556
    %v559 = vadd.f32 %v445, %v557
    %v560 = vand.u32 2147483647, %v559
    %vm561 = vcmp.le.f32.partialorder %v560, 0.7853982
    %vm562 = vcmp.lt.s32.totalorder %v559, 0
    %v563 = vand.u32 %v559, 2139095040
    %v564 = vshrl.u32 %v563, 23
    %v565 = vsub.s32 %v564, 127
    %v566 = vand.u32 2147483647, %v559
    %v567 = vand.u32 %v566, 8388607
    %v568 = vor.u32 %v567, 8388608
    %v569 = vsub.s32 0, %v568
    %v570 = vadd.s32 %v565, 1
    %vm571 = vcmp.gt.s32.totalorder %v570, 0
    %v572 = vsel %vm571, %v570, 0
    %v573 = vshrl.u32 %v572, 5
    %v574 = vand.u32 %v572, 31
    %v575 = vsub.s32 32, %v574
    %v576 = vshrl.u32 683565275, %v575
    %v577 = vshll.u32 683565275, %v574
    %v578 = vshrl.u32 2475754826, %v575
    %v579 = vor.u32 %v577, %v578
    %v580 = vshll.u32 2475754826, %v574
    %v581 = vshrl.u32 2131351028, %v575
    %v582 = vor.u32 %v580, %v581
    %v583 = vshll.u32 2131351028, %v574
    %v584 = vshrl.u32 2102212464, %v575
    %v585 = vor.u32 %v583, %v584
    %v586 = vshll.u32 2102212464, %v574
    %v587 = vshrl.u32 920167782, %v575
    %v588 = vor.u32 %v586, %v587
    %v589 = vshll.u32 920167782, %v574
    %v590 = vshrl.u32 1326507024, %v575
    %v591 = vor.u32 %v589, %v590
    %vm592 = vcmp.lt.s32.totalorder %v573, 1
    %vm593 = vcmp.lt.s32.totalorder %v573, 2
    %vm594 = vcmp.lt.s32.totalorder %v573, 3
    %vm595 = vcmp.lt.s32.totalorder %v573, 4
    %v596 = vsel %vm592, %v576, %v579
    %v597 = vsel %vm595, %v585, 2102212464
    %v598 = vsel %vm594, %v582, %v597
    %v599 = vsel %vm593, %v596, %v598
    %v600 = vsel %vm592, %v579, %v582
    %v601 = vsel %vm595, %v588, 920167782
    %v602 = vsel %vm594, %v585, %v601
    %v603 = vsel %vm593, %v600, %v602
    %v604 = vsel %vm592, %v582, %v585
    %v605 = vsel %vm595, %v591, 1326507024
    %v606 = vsel %vm594, %v588, %v605
    %v607 = vsel %vm593, %v604, %v606
    %v608 = vshll.u32 %v568, 8
    %v609 = vmul.u32.u64.compose %v608, %v607
    %v610 = vextract.low.u32 %v609
    %v611 = vextract.high.u32 %v609
    %v612 = vmul.u32.u64.compose %v608, %v603
    %v613 = vextract.low.u32 %v612
    %v614 = vextract.high.u32 %v612
    %v615 = vmul.u32 %v608, %v599
    %v616 = vadd.s32 %v611, %v613
    %vm617 = vc.u32 %v611, %v613
    %v618 = vadd.s32 %v614, 1
    %v619 = vsel %vm617, %v618, %v614
    %v620 = vadd.s32 %v615, %v619
    %v621 = vadd.s32 %v620, 536870912
    %v622 = vshrl.u32 %v621, 30
    %v623 = vshll.u32 %v622, 30
    %v624 = vsub.s32 %v620, %v623
    %vm625 = vcmp.lt.s32.totalorder %v624, 0
    %v626 = vsub.s32 0, %v624
    %v627 = vsel %vm625, %v626, %v624
    %v628 = vclz %v627
    %v629 = vsub.s32 %v628, 2
    %vm630 = vcmp.gt.s32.totalorder 0, %v629
    %v631 = vsel %vm630, 0, %v629
    %v632 = vsub.s32 32, %v631
    %v633 = vshll.u32 %v624, %v631
    %v634 = vshrl.u32 %v616, %v632
    %v635 = vor.u32 %v633, %v634
    %v636 = vsub.s32 4294967266, %v631
    %v637 = vadd.s32 %v636, 127
    %v638 = vshll.u32 %v637, 23
    %v639 = vor.u32 4788187, %v638
    %v640 = vand.u32 2147483647, %v639
    %v642 = vcvt.s32.f32 %v635
    %v643 = vmul.f32 %v642, %v640
    %v644 = vxor.u32 %v643, 2147483648
    %v645 = vsel %vm562, %v644, %v643
    %v646 = vsub.s32 4, %v622
    %v647 = vsel %vm562, %v646, %v622
    %v648 = vsel %vm561, %v559, %v645
    %v649 = vsel %vm561, 0, %v647
    %v650 = vcosq.f32.pop %v648
    %v651 = vsinq.f32.pop %v648
    %vm652 = vweird.f32 %v559
    %v653 = vand.u32 %v649, 3
    %vm654 = vcmp.lt.s32.totalorder %v653, 2
    %vm655 = vcmp.eq.s32.totalorder %v653, 0
    %v656 = vxor.u32 %v651, 2147483648
    %v657 = vsel %vm655, %v650, %v656
    %vm658 = vcmp.eq.s32.totalorder %v653, 2
    %v659 = vxor.u32 %v650, 2147483648
    %v660 = vsel %vm658, %v659, %v651
    %v661 = vsel %vm654, %v657, %v660
    %v662 = vsel %vm652, nan, %v661
    %v663 = vand.u32 2147483647, %v551
    %v664 = vadd.f32 %v663, 1e-06
    %v665 = vlog2.pop %v664
    %v666 = vmul.f32 %v665, 0.6931472
    %v667 = vld [vmem:[%s7] sm:$0xff]
    %v668 = vld [vmem:[%s7 + $0x8] sm:$0xff]
    %v669 = vld [vmem:[%s7 + $0x10] sm:$0xff]
    %v670 = vld [vmem:[%s7 + $0x18] sm:$0xff]
    %v671 = vld [vmem:[%s7 + $0x20] sm:$0xff]
    %v672 = vld [vmem:[%s7 + $0x28] sm:$0xff]
    %v673 = vld [vmem:[%s7 + $0x30] sm:$0xff]
    %v674 = vld [vmem:[%s7 + $0x38] sm:$0xff]
    %v675 = vld [vmem:[%s7 + $0x40] sm:$0xff]
    %v676 = vld [vmem:[%s7 + $0x48] sm:$0xff]
    %v677 = vld [vmem:[%s7 + $0x50] sm:$0x1f]
    %v678 = vand.u32 2147483647, %v662
    %v679 = vadd.f32 %v678, 1e-06
    %v680 = vlog2.pop %v679
    %v681 = vmul.f32 %v680, 0.6931472
    %vm682 = vcmask 695296
    %v684 = vsel %vm682, %v666, 0
    %vm686 = vcmask 1044480
    %v688 = vsel %vm686, %v677, 0
    %690 = vmatprep.subr.mxu0 0.0
    %691 = vmatpush1.msra.mxu0 0.0
    %692 = vmatprep.subr.mxu0 0.0
    %693 = vmatpush1.msra.mxu0 0.0
    %694 = vmatprep.subr.mxu0 0.0
    %695 = vmatpush1.msra.mxu0 0.0
    %696 = vmatprep.subr.mxu0 0.0
    %697 = vmatpush1.msra.mxu0 0.0
    %698 = vmatprep.subr.mxu0 0.0
    %699 = vmatpush1.msra.mxu0 0.0
    %700 = vmatprep.subr.mxu0 0.0
    %701 = vmatpush1.msra.mxu0 %v688
    %702 = vmatprep.subr.mxu0 0.0
    %703 = vmatpush1.msra.mxu0 %v676
    %704 = vmatprep.subr.mxu0 0.0
    %705 = vmatpush1.msra.mxu0 %v675
    %706 = vmatprep.subr.mxu0 0.0
    %707 = vmatpush1.msra.mxu0 %v674
    %708 = vmatprep.subr.mxu0 0.0
    %709 = vmatpush1.msra.mxu0 %v673
    %710 = vmatprep.subr.mxu0 0.0
    %711 = vmatpush1.msra.mxu0 %v672
    %712 = vmatprep.subr.mxu0 0.0
    %713 = vmatpush1.msra.mxu0 %v671
    %714 = vmatprep.subr.mxu0 0.0
    %715 = vmatpush1.msra.mxu0 %v670
    %716 = vmatprep.subr.mxu0 0.0
    %717 = vmatpush1.msra.mxu0 %v669
    %718 = vmatprep.subr.mxu0 0.0
    %719 = vmatpush1.msra.mxu0 %v668
    %720 = vmatprep.subr.mxu0 0.0
    %721 = vmatpush1.msra.mxu0 %v667
    %722 = vmatprep.subr.mxu0 0.0
    %723 = vmatpush2.msra.mxu0 0.0
    %724 = vmatprep.subr.mxu0 0.0
    %725 = vmatpush2.msra.mxu0 0.0
    %726 = vmatprep.subr.mxu0 0.0
    %727 = vmatpush2.msra.mxu0 0.0
    %728 = vmatprep.subr.mxu0 0.0
    %729 = vmatpush2.msra.mxu0 0.0
    %730 = vmatprep.subr.mxu0 0.0
    %731 = vmatpush2.msra.mxu0 0.0
    %732 = vmatprep.subr.mxu0 0.0
    %733 = vmatpush2.msra.mxu0 0.0
    %734 = vmatprep.subr.mxu0 0.0
    %735 = vmatpush2.msra.mxu0 0.0
    %736 = vmatprep.subr.mxu0 0.0
    %737 = vmatpush2.msra.mxu0 0.0
    %738 = vmatprep.subr.mxu0 0.0
    %739 = vmatpush2.msra.mxu0 0.0
    %740 = vmatprep.subr.mxu0 0.0
    %741 = vmatpush2.msra.mxu0 0.0
    %742 = vmatprep.subr.mxu0 0.0
    %743 = vmatpush2.msra.mxu0 0.0
    %744 = vmatprep.subr.mxu0 0.0
    %745 = vmatpush2.msra.mxu0 0.0
    %746 = vmatprep.subr.mxu0 0.0
    %747 = vmatpush2.msra.mxu0 0.0
    %748 = vmatprep.subr.mxu0 0.0
    %749 = vmatpush2.msra.mxu0 0.0
    %750 = vmatprep.subr.mxu0 0.0
    %751 = vmatpush2.msra.mxu0 0.0
    %752 = vmatprep.subr.mxu0 0.0
    %753 = vmatpush2.msra.mxu0 0.0
    %754 = vmatprep.mubr.f32.mxu0 0.0
    %755 = vmatmul.mubr.f32.gmra.mxu0 %v684
    %v756 = vpop.f32.mrf.mxu0
    %v757 = vadd.f32 %v681, %v756
    %v758 = vpop.f32.mrf.mxu0
    %759 = vdwg.mxu0
    %v760 = vmul.f32 %v757, 1.442695
    %v761 = vpow.pop %v760
    %v762 = vld [vmem:[%s8] sm:$0xff]
    %v763 = vld [vmem:[%s8 + $0x8] sm:$0xff]
    %v764 = vld [vmem:[%s8 + $0x10] sm:$0xff]
    %v765 = vld [vmem:[%s8 + $0x18] sm:$0xff]
    %v766 = vld [vmem:[%s8 + $0x20] sm:$0xff]
    %v767 = vld [vmem:[%s8 + $0x28] sm:$0xff]
    %v768 = vld [vmem:[%s8 + $0x30] sm:$0xff]
    %v769 = vld [vmem:[%s8 + $0x38] sm:$0xff]
    %v770 = vld [vmem:[%s8 + $0x40] sm:$0xff]
    %v771 = vld [vmem:[%s8 + $0x48] sm:$0xff]
    %v772 = vld [vmem:[%s8 + $0x50] sm:$0x1f]
    %v774 = vsel %vm682, %v761, 0
    %v777 = vsel %vm686, %v772, 0
    %779 = vmatprep.subr.mxu0 0.0
    %780 = vmatpush1.msra.mxu0 0.0
    %781 = vmatprep.subr.mxu0 0.0
    %782 = vmatpush1.msra.mxu0 0.0
    %783 = vmatprep.subr.mxu0 0.0
    %784 = vmatpush1.msra.mxu0 0.0
    %785 = vmatprep.subr.mxu0 0.0
    %786 = vmatpush1.msra.mxu0 0.0
    %787 = vmatprep.subr.mxu0 0.0
    %788 = vmatpush1.msra.mxu0 0.0
    %789 = vmatprep.subr.mxu0 0.0
    %790 = vmatpush1.msra.mxu0 %v777
    %791 = vmatprep.subr.mxu0 0.0
    %792 = vmatpush1.msra.mxu0 %v771
    %793 = vmatprep.subr.mxu0 0.0
    %794 = vmatpush1.msra.mxu0 %v770
    %795 = vmatprep.subr.mxu0 0.0
    %796 = vmatpush1.msra.mxu0 %v769
    %797 = vmatprep.subr.mxu0 0.0
    %798 = vmatpush1.msra.mxu0 %v768
    %799 = vmatprep.subr.mxu0 0.0
    %800 = vmatpush1.msra.mxu0 %v767
    %801 = vmatprep.subr.mxu0 0.0
    %802 = vmatpush1.msra.mxu0 %v766
    %803 = vmatprep.subr.mxu0 0.0
    %804 = vmatpush1.msra.mxu0 %v765
    %805 = vmatprep.subr.mxu0 0.0
    %806 = vmatpush1.msra.mxu0 %v764
    %807 = vmatprep.subr.mxu0 0.0
    %808 = vmatpush1.msra.mxu0 %v763
    %809 = vmatprep.subr.mxu0 0.0
    %810 = vmatpush1.msra.mxu0 %v762
    %811 = vmatprep.subr.mxu0 0.0
    %812 = vmatpush2.msra.mxu0 0.0
    %813 = vmatprep.subr.mxu0 0.0
    %814 = vmatpush2.msra.mxu0 0.0
    %815 = vmatprep.subr.mxu0 0.0
    %816 = vmatpush2.msra.mxu0 0.0
    %817 = vmatprep.subr.mxu0 0.0
    %818 = vmatpush2.msra.mxu0 0.0
    %819 = vmatprep.subr.mxu0 0.0
    %820 = vmatpush2.msra.mxu0 0.0
    %821 = vmatprep.subr.mxu0 0.0
    %822 = vmatpush2.msra.mxu0 0.0
    %823 = vmatprep.subr.mxu0 0.0
    %824 = vmatpush2.msra.mxu0 0.0
    %825 = vmatprep.subr.mxu0 0.0
    %826 = vmatpush2.msra.mxu0 0.0
    %827 = vmatprep.subr.mxu0 0.0
    %828 = vmatpush2.msra.mxu0 0.0
    %829 = vmatprep.subr.mxu0 0.0
    %830 = vmatpush2.msra.mxu0 0.0
    %831 = vmatprep.subr.mxu0 0.0
    %832 = vmatpush2.msra.mxu0 0.0
    %833 = vmatprep.subr.mxu0 0.0
    %834 = vmatpush2.msra.mxu0 0.0
    %835 = vmatprep.subr.mxu0 0.0
    %836 = vmatpush2.msra.mxu0 0.0
    %837 = vmatprep.subr.mxu0 0.0
    %838 = vmatpush2.msra.mxu0 0.0
    %839 = vmatprep.subr.mxu0 0.0
    %840 = vmatpush2.msra.mxu0 0.0
    %841 = vmatprep.subr.mxu0 0.0
    %842 = vmatpush2.msra.mxu0 0.0
    %843 = vmatprep.mubr.f32.mxu0 0.0
    %844 = vmatmul.mubr.f32.gmra.mxu0 %v774
    %v845 = vpop.f32.mrf.mxu0
    %v846 = vadd.f32 0.0, %v845
    %v847 = vpop.f32.mrf.mxu0
    %848 = vdwg.mxu0
    %vm849 = vcmask 74752
    %850 = vst.msk [vmem:[#allocation2] sm:$0x3] %vm849, %v846
    // Predicated region
    $region38: #{spheric_cnn_forward.5} parent=1 // pred_check
      _
    $region39: #{spheric_cnn_forward.5} parent=1 // pred_check_branch
      %852 = sbr.rel (0) target = $region41
    $region40: #{spheric_cnn_forward.5} parent=1 // pred_region
      %s854 = ssub.s32 32, 32
      %855 = vsyncadd [#allocation3], %s854
      %s857 = sshll.u32 [#allocation2], 4
      %s858 = int_to_ptr.vmem [resolvable:$true] %s857
      %860 = dma.vmem_to_hbm [thread:$0]  %s858, 32, %s9, [#allocation3]
    $region41: #{spheric_cnn_forward.5} parent=1 // pred_fallthru
      _
    // Predicated region
    $region42: #{spheric_cnn_forward.5} parent=1 // pred_check
      _
    $region43: #{spheric_cnn_forward.5} parent=1 // pred_check_branch
      %862 = sbr.rel (0) target = $region45
    $region44: #{spheric_cnn_forward.5} parent=1 // pred_region
      %863 = dma.done [#allocation3], 32
    $region45: #{spheric_cnn_forward.5} parent=1 // pred_fallthru
      _
    %864 = vsyncpa [#allocation3], 1

</llo_original>
